<compile_context>
chip_gen: v7x
topology: tpu7x:2x2x1
jax: 0.10.0
libtpu: 0.0.40
codegen_flags: <defaults>
</compile_context>

<pallas_src>
import functools
import math

import jax
import jax.numpy as jnp
from jax.experimental import pallas as pl
from jax.experimental.pallas import tpu as pltpu


def _round_up(x, m):
    return ((x + m - 1) // m) * m


# ---------------------------------------------------------------------------
# Kernel 0: K/V projections (once per batch)
# ---------------------------------------------------------------------------
def _kv_proj_kernel(src_ref, wk_ref, bk_ref, wv_ref, bv_ref, k_ref, v_ref):
    src = src_ref[...]                                                  # (M, D)
    k = jnp.dot(src, wk_ref[...], preferred_element_type=jnp.float32) + bk_ref[...]
    v = jnp.dot(src, wv_ref[...], preferred_element_type=jnp.float32) + bv_ref[...]
    k_ref[...] = k.astype(k_ref.dtype)
    v_ref[...] = v.astype(v_ref.dtype)


# ---------------------------------------------------------------------------
# Kernel A: q projection + multi-head attention + merge + first MLP conv
#           -> h1 tile (compute dtype) + per-tile BN partial stats (f32)
# ---------------------------------------------------------------------------
def _attn_h1_kernel(x_ref, k_ref, v_ref,
                    wq_ref, bq_ref, wm_ref, bm_ref,
                    w1x_ref, w1m_ref, b1_ref,
                    h1_ref, stats_ref,
                    o_slab,
                    *, num_heads, head_dim, n_valid, needs_mask):
    cdt = k_ref.dtype                       # matmul-operand dtype (bf16 fast / f32 exact)

    x = x_ref[...]                                                      # (TQ, D) cdt
    # softmax scale is pre-folded into wq/bq
    q = jnp.dot(x, wq_ref[...], preferred_element_type=jnp.float32) + bq_ref[...]
    k = k_ref[...]                                                      # (M, D) cdt
    v = v_ref[...]

    # Per-head attention.  Head channels are contiguous (wrapper permutation), so each
    # head is a static lane slice.  Only a (TQ, M) score tile is live per head.
    for h in range(num_heads):
        lo = h * head_dim
        qh = q[:, lo:lo + head_dim].astype(cdt)
        kh = k[:, lo:lo + head_dim]
        vh = v[:, lo:lo + head_dim]
        s = jax.lax.dot_general(qh, kh, (((1,), (1,)), ((), ())),
                                preferred_element_type=jnp.float32)     # (TQ, M) f32
        s = s - jnp.max(s, axis=-1, keepdims=True)
        e = jnp.exp(s.astype(cdt))          # bf16 EUP on the fast path, f32 on exact path
        denom = jnp.sum(e, axis=-1, keepdims=True, dtype=jnp.float32)   # (TQ, 1) f32
        pv = jnp.dot(e, vh, preferred_element_type=jnp.float32)         # (TQ, hd) f32
        # normalize AFTER the PV matmul: (TQ, hd) muls instead of (TQ, M)
        o_slab[:, lo:lo + head_dim] = (pv * pl.reciprocal(denom, approx=False)).astype(cdt)

    # Fused merge projection: one K=D matmul on the head-contiguous slab.
    merged = jnp.dot(o_slab[...], wm_ref[...],
                     preferred_element_type=jnp.float32) + bm_ref[...]

    # First MLP conv on cat([x, message]): split weight -> two K=D matmuls, no concat.
    h1 = (jnp.dot(x, w1x_ref[...], preferred_element_type=jnp.float32)
          + jnp.dot(merged.astype(cdt), w1m_ref[...], preferred_element_type=jnp.float32)
          + b1_ref[...])                                                # (TQ, 2D) f32
    h1_ref[...] = h1.astype(h1_ref.dtype)

    # Per-tile BatchNorm partial stats from the f32 h1 (padded rows masked out).
    if needs_mask:
        rows = (jax.lax.broadcasted_iota(jnp.int32, (h1.shape[0], 1), 0)
                + pl.program_id(1) * h1.shape[0])
        hm = h1 * (rows < n_valid).astype(jnp.float32)
    else:
        hm = h1
    stats_ref[...] = jnp.concatenate(
        [jnp.sum(hm, axis=0, keepdims=True),          # per-channel sum
         jnp.sum(hm * h1, axis=0, keepdims=True)],    # per-channel sum of squares
        axis=0)


# ---------------------------------------------------------------------------
# Kernel B: BatchNorm (precomputed scale/shift) + ReLU + final conv
# ---------------------------------------------------------------------------
def _bn_relu_out_kernel(h1_ref, scale_ref, shift_ref, w2_ref, b2_ref, o_ref):
    h = h1_ref[...].astype(jnp.float32) * scale_ref[...] + shift_ref[...]
    h = jnp.maximum(h, 0.0)
    o_ref[...] = (jnp.dot(h.astype(w2_ref.dtype), w2_ref[...],
                          preferred_element_type=jnp.float32)
                  + b2_ref[...]).astype(o_ref.dtype)


# ---------------------------------------------------------------------------
# One-time weight preprocessing
# ---------------------------------------------------------------------------
def prepare_params(P, num_heads, compute_dtype=jnp.bfloat16):
    """Transpose, head-contiguous channel permutation, softmax-scale folding, dtype cast.

    PyTorch's .view(B, head_dim, H, N) interleaves heads as channel = d*H + h; we permute
    the q/k/v output channels (and the merge input channels) so each head occupies a
    contiguous block -> static lane slices per head, single fused merge matmul.
    """
    D = P['Wq'].shape[0]
    head_dim = D // num_heads
    perm = (jnp.arange(head_dim)[None, :] * num_heads
            + jnp.arange(num_heads)[:, None]).reshape(-1)
    cdt = compute_dtype
    row = lambda b: jnp.asarray(b, jnp.float32).reshape(1, -1)
    scale = 1.0 / math.sqrt(head_dim)
    w1 = P['W1'].T
    return dict(
        wq=(P['Wq'].T[:, perm] * scale).astype(cdt), bq=row(P['bq'][perm] * scale),
        wk=P['Wk'].T[:, perm].astype(cdt), bk=row(P['bk'][perm]),
        wv=P['Wv'].T[:, perm].astype(cdt), bv=row(P['bv'][perm]),
        wm=P['Wm'].T[perm, :].astype(cdt), bm=row(P['bm']),
        w1x=w1[:D, :].astype(cdt), w1m=w1[D:, :].astype(cdt), b1=row(P['b1']),
        gamma=row(P['gamma']), beta=row(P['beta']),
        w2=P['W2'].T.astype(cdt), b2=row(P['b2']),
    )


# ---------------------------------------------------------------------------
# Wrapper
# ---------------------------------------------------------------------------
def attentional_propagation(x_ncw, src_ncw, prep, *, num_heads, block_q=256,
                            vmem_limit_bytes=None):
    """x_ncw: (B, D, N), src_ncw: (B, D, M) — PyTorch Conv1d (NCW) layout."""
    B, D, N = x_ncw.shape
    M = src_ncw.shape[2]
    assert D % num_heads == 0
    head_dim = D // num_heads
    two_d = 2 * D
    cdt = prep['wq'].dtype

    x = jnp.transpose(x_ncw, (0, 2, 1)).astype(cdt)        # (B, N, D)
    src = jnp.transpose(src_ncw, (0, 2, 1)).astype(cdt)    # (B, M, D)

    # Query tiling with padded tail (TQ multiple of 16 for bf16 sublane packing).
    tq = _round_up(min(int(block_q), _round_up(N, 16)), 16)
    n_pad = _round_up(N, tq)
    if n_pad != N:
        x = jnp.pad(x, ((0, 0), (0, n_pad - N), (0, 0)))
    nq = n_pad // tq
    grid = (B, nq)

    cparams = pltpu.CompilerParams(dimension_semantics=("parallel", "parallel"),
                                   vmem_limit_bytes=vmem_limit_bytes)

    # --- K/V projections (once per batch, small dedicated kernel) -----------
    k_all, v_all = pl.pallas_call(
        _kv_proj_kernel,
        grid=(B,),
        in_specs=[pl.BlockSpec((None, M, D), lambda b: (b, 0, 0)),
                  pl.BlockSpec((D, D), lambda b: (0, 0)),
                  pl.BlockSpec((1, D), lambda b: (0, 0)),
                  pl.BlockSpec((D, D), lambda b: (0, 0)),
                  pl.BlockSpec((1, D), lambda b: (0, 0))],
        out_specs=[pl.BlockSpec((None, M, D), lambda b: (b, 0, 0)),
                   pl.BlockSpec((None, M, D), lambda b: (b, 0, 0))],
        out_shape=[jax.ShapeDtypeStruct((B, M, D), cdt),
                   jax.ShapeDtypeStruct((B, M, D), cdt)],
        compiler_params=pltpu.CompilerParams(dimension_semantics=("parallel",),
                                             vmem_limit_bytes=vmem_limit_bytes),
    )(src, prep['wk'], prep['bk'], prep['wv'], prep['bv'])

    # --- Kernel A: attention + merge + first MLP conv + BN partial stats ----
    weight_args = [prep['wq'], prep['bq'], prep['wm'], prep['bm'],
                   prep['w1x'], prep['w1m'], prep['b1']]
    weight_specs = [pl.BlockSpec(w.shape, lambda b, i: (0, 0)) for w in weight_args]

    kern_a = functools.partial(_attn_h1_kernel, num_heads=num_heads, head_dim=head_dim,
                               n_valid=N, needs_mask=(n_pad != N))
    h1, stats = pl.pallas_call(
        kern_a,
        grid=grid,
        in_specs=[pl.BlockSpec((None, tq, D), lambda b, i: (b, i, 0)),   # x tile
                  pl.BlockSpec((None, M, D), lambda b, i: (b, 0, 0)),    # K (full, per batch)
                  pl.BlockSpec((None, M, D), lambda b, i: (b, 0, 0))     # V (full, per batch)
                  ] + weight_specs,
        out_specs=[pl.BlockSpec((None, tq, two_d), lambda b, i: (b, i, 0)),
                   pl.BlockSpec((None, None, 2, two_d), lambda b, i: (b, i, 0, 0))],
        out_shape=[jax.ShapeDtypeStruct((B, n_pad, two_d), cdt),          # h1 (bf16 fast path)
                   jax.ShapeDtypeStruct((B, nq, 2, two_d), jnp.float32)], # BN partial stats
        scratch_shapes=[pltpu.VMEM((tq, D), cdt)],                        # head-output slab
        compiler_params=cparams,
    )(x, k_all, v_all, *weight_args)

    # --- BatchNorm1d training-mode stats from the f32 partial sums (tiny XLA reduce) ---
    count = B * N
    sums = jnp.sum(stats[:, :, 0, :], axis=(0, 1))                       # (2D,)
    sumsq = jnp.sum(stats[:, :, 1, :], axis=(0, 1))
    mean = sums / count
    var = jnp.maximum(sumsq / count - mean * mean, 0.0)                  # biased variance
    bn_scale = prep['gamma'] * jax.lax.rsqrt(var + 1e-5)                 # (1, 2D)
    bn_shift = prep['beta'] - mean * bn_scale                            # (1, 2D)

    # --- Kernel B: BN affine + ReLU + final conv -----------------------------
    out = pl.pallas_call(
        _bn_relu_out_kernel,
        grid=grid,
        in_specs=[pl.BlockSpec((None, tq, two_d), lambda b, i: (b, i, 0)),
                  pl.BlockSpec((1, two_d), lambda b, i: (0, 0)),
                  pl.BlockSpec((1, two_d), lambda b, i: (0, 0)),
                  pl.BlockSpec((two_d, D), lambda b, i: (0, 0)),
                  pl.BlockSpec((1, D), lambda b, i: (0, 0))],
        out_specs=pl.BlockSpec((None, tq, D), lambda b, i: (b, i, 0)),
        out_shape=jax.ShapeDtypeStruct((B, n_pad, D), jnp.float32),
        compiler_params=cparams,
    )(h1, bn_scale, bn_shift, prep['w2'], prep['b2'])

    return jnp.transpose(out[:, :N, :], (0, 2, 1))    # back to (B, D, N)


# ---------------------------------------------------------------------------
# Plain-JAX mirror of the PyTorch forward (NCW layout) for validation
# ---------------------------------------------------------------------------
def reference_ncw(x, src, P, H):
    B, D, N = x.shape
    dim = D // H

    def conv(w, b, inp):
        return jnp.einsum('oc,bcn->bon', w, inp) + b[None, :, None]

    q = conv(P['Wq'], P['bq'], x).reshape(B, dim, H, -1)
    k = conv(P['Wk'], P['bk'], src).reshape(B, dim, H, -1)
    v = conv(P['Wv'], P['bv'], src).reshape(B, dim, H, -1)
    scores = jnp.einsum('bdhn,bdhm->bhnm', q, k) / (dim ** 0.5)
    prob = jax.nn.softmax(scores, axis=-1)
    o = jnp.einsum('bhnm,bdhm->bdhn', prob, v)
    msg = conv(P['Wm'], P['bm'], o.reshape(B, D, -1))
    y = jnp.concatenate([x, msg], axis=1)
    h1 = conv(P['W1'], P['b1'], y)
    mean = jnp.mean(h1, axis=(0, 2), keepdims=True)
    var = jnp.mean((h1 - mean) ** 2, axis=(0, 2), keepdims=True)
    h1 = (h1 - mean) / jnp.sqrt(var + 1e-5) * P['gamma'][None, :, None] + P['beta'][None, :, None]
    h1 = jnp.maximum(h1, 0.0)
    return conv(P['W2'], P['b2'], h1)


if __name__ == "__main__":
    # Small but tiling-exercising shapes: B=2 batches, 2 query tiles of 64, M != N.
    B, D, H, N, M = 2, 32, 4, 128, 96

    key = jax.random.PRNGKey(0)
    ks = jax.random.split(key, 17)

    def w(k, shape, scale=0.1):
        return scale * jax.random.normal(k, shape, jnp.float32)

    # PyTorch-convention parameter shapes: Conv1d weight (Cout, Cin), bias (Cout,)
    P = dict(
        Wq=w(ks[0], (D, D)),  bq=w(ks[1], (D,)),
        Wk=w(ks[2], (D, D)),  bk=w(ks[3], (D,)),
        Wv=w(ks[4], (D, D)),  bv=w(ks[5], (D,)),
        Wm=w(ks[6], (D, D)),  bm=w(ks[7], (D,)),
        W1=w(ks[8], (2 * D, 2 * D)), b1=w(ks[9], (2 * D,)),
        gamma=1.0 + w(ks[10], (2 * D,)), beta=w(ks[11], (2 * D,)),
        W2=w(ks[12], (D, 2 * D)),
        b2=jnp.zeros((D,), jnp.float32),   # nn.init.constant_(self.mlp[-1].bias, 0.0)
    )

    x = jax.random.normal(ks[13], (B, D, N), jnp.float32)
    source = jax.random.normal(ks[14], (B, D, M), jnp.float32)

    ref = reference_ncw(x, source, P, H)

    fwd = jax.jit(functools.partial(attentional_propagation, num_heads=H, block_q=64))

    # 1) exact-semantics path (f32 matmul operands / f32 h1) — tight tolerance
    prep_f32 = prepare_params(P, H, compute_dtype=jnp.float32)
    out_f32 = jax.block_until_ready(fwd(x, source, prep_f32))
    assert out_f32.shape == (B, D, N)
    err_f32 = float(jnp.max(jnp.abs(out_f32 - ref)))
    assert err_f32 < 2e-3, err_f32

    # 2) fast path (bf16 MXU operands, bf16 exp, bf16 h1; f32 accumulation & stats)
    prep_bf16 = prepare_params(P, H, compute_dtype=jnp.bfloat16)
    out_bf16 = jax.block_until_ready(fwd(x, source, prep_bf16))
    assert out_bf16.shape == (B, D, N)
    err_bf16 = float(jnp.max(jnp.abs(out_bf16 - ref)))
    assert err_bf16 < 2e-1, err_bf16

    # 3) padded-tail path: N not a multiple of the query tile (exercises the stats mask)
    N2 = 100
    x2 = jax.random.normal(ks[15], (B, D, N2), jnp.float32)
    ref2 = reference_ncw(x2, source, P, H)
    out2 = jax.block_until_ready(
        attentional_propagation(x2, source, prep_f32, num_heads=H, block_q=64))
    assert out2.shape == (B, D, N2)
    err2 = float(jnp.max(jnp.abs(out2 - ref2)))
    assert err2 < 2e-3, err2

    print("KERNEL_OK")
</pallas_src>

<mosaic_0001>
module attributes {stable_mosaic.version = 11 : i64} {
  func.func @_attn_h1_kernel(%arg0: i32, %arg1: i32, %arg2: memref<1x64x32xf32, #tpu.memory_space<vmem>>, %arg3: memref<1x96x32xf32, #tpu.memory_space<vmem>>, %arg4: memref<1x96x32xf32, #tpu.memory_space<vmem>>, %arg5: memref<32x32xf32, #tpu.memory_space<vmem>>, %arg6: memref<1x32xf32, #tpu.memory_space<vmem>>, %arg7: memref<32x32xf32, #tpu.memory_space<vmem>>, %arg8: memref<1x32xf32, #tpu.memory_space<vmem>>, %arg9: memref<32x64xf32, #tpu.memory_space<vmem>>, %arg10: memref<32x64xf32, #tpu.memory_space<vmem>>, %arg11: memref<1x64xf32, #tpu.memory_space<vmem>>, %arg12: memref<1x64x64xf32, #tpu.memory_space<vmem>>, %arg13: memref<1x1x2x64xf32, #tpu.memory_space<vmem>>, %arg14: memref<64x32xf32, #tpu.memory_space<vmem>>) attributes {dimension_semantics = [#tpu.dimension_semantics<parallel>, #tpu.dimension_semantics<parallel>], iteration_bounds = array<i64: 2, 2>, scalar_prefetch = 0 : i64, scratch_operands = 1 : i64, tpu.core_type = #tpu.core_type<tc>, window_params = [{transform_indices = @transform_0, window_bounds = array<i64: 1, 64, 32>}, {transform_indices = @transform_1, window_bounds = array<i64: 1, 96, 32>}, {transform_indices = @transform_2, window_bounds = array<i64: 1, 96, 32>}, {pipeline_mode = #tpu.pipeline_mode<synchronous>, transform_indices = @transform_3, window_bounds = array<i64: 32, 32>}, {pipeline_mode = #tpu.pipeline_mode<synchronous>, transform_indices = @transform_4, window_bounds = array<i64: 1, 32>}, {pipeline_mode = #tpu.pipeline_mode<synchronous>, transform_indices = @transform_5, window_bounds = array<i64: 32, 32>}, {pipeline_mode = #tpu.pipeline_mode<synchronous>, transform_indices = @transform_6, window_bounds = array<i64: 1, 32>}, {pipeline_mode = #tpu.pipeline_mode<synchronous>, transform_indices = @transform_7, window_bounds = array<i64: 32, 64>}, {pipeline_mode = #tpu.pipeline_mode<synchronous>, transform_indices = @transform_8, window_bounds = array<i64: 32, 64>}, {pipeline_mode = #tpu.pipeline_mode<synchronous>, transform_indices = @transform_9, window_bounds = array<i64: 1, 64>}, {transform_indices = @transform_10, window_bounds = array<i64: 1, 64, 64>}, {transform_indices = @transform_11, window_bounds = array<i64: 1, 1, 2, 64>}]} {
    %c0 = arith.constant 0 : index
    %c0_0 = arith.constant 0 : index
    %c0_1 = arith.constant 0 : index
    %0 = vector.load %arg2[%c0, %c0_0, %c0_1] : memref<1x64x32xf32, #tpu.memory_space<vmem>>, vector<1x64x32xf32>
    %1 = vector.shape_cast %0 : vector<1x64x32xf32> to vector<64x32xf32>
    %c0_2 = arith.constant 0 : index
    %c0_3 = arith.constant 0 : index
    %2 = vector.load %arg5[%c0_2, %c0_3] : memref<32x32xf32, #tpu.memory_space<vmem>>, vector<32x32xf32>
    %cst = arith.constant dense<0.000000e+00> : vector<64x32xf32>
    %3 = tpu.matmul %1, %2, %cst {dimension_numbers = #tpu.dot_dimension_numbers<[1], [0], [0], [1], [0, 0, 1, 1], [], []>} : vector<64x32xf32>, vector<32x32xf32>, vector<64x32xf32> -> vector<64x32xf32>
    %c0_4 = arith.constant 0 : index
    %c0_5 = arith.constant 0 : index
    %4 = vector.load %arg6[%c0_4, %c0_5] : memref<1x32xf32, #tpu.memory_space<vmem>>, vector<1x32xf32>
    %5 = vector.broadcast %4 : vector<1x32xf32> to vector<64x32xf32>
    %6 = arith.addf %3, %5 : vector<64x32xf32>
    %c0_6 = arith.constant 0 : index
    %c0_7 = arith.constant 0 : index
    %c0_8 = arith.constant 0 : index
    %7 = vector.load %arg3[%c0_6, %c0_7, %c0_8] : memref<1x96x32xf32, #tpu.memory_space<vmem>>, vector<1x96x32xf32>
    %8 = vector.shape_cast %7 : vector<1x96x32xf32> to vector<96x32xf32>
    %c0_9 = arith.constant 0 : index
    %c0_10 = arith.constant 0 : index
    %c0_11 = arith.constant 0 : index
    %9 = vector.load %arg4[%c0_9, %c0_10, %c0_11] : memref<1x96x32xf32, #tpu.memory_space<vmem>>, vector<1x96x32xf32>
    %10 = vector.shape_cast %9 : vector<1x96x32xf32> to vector<96x32xf32>
    %11 = vector.extract_strided_slice %6 {offsets = [0, 0], sizes = [64, 8], strides = [1, 1]} : vector<64x32xf32> to vector<64x8xf32>
    %12 = vector.extract_strided_slice %8 {offsets = [0, 0], sizes = [96, 8], strides = [1, 1]} : vector<96x32xf32> to vector<96x8xf32>
    %13 = vector.extract_strided_slice %10 {offsets = [0, 0], sizes = [96, 8], strides = [1, 1]} : vector<96x32xf32> to vector<96x8xf32>
    %cst_12 = arith.constant dense<0.000000e+00> : vector<64x96xf32>
    %14 = tpu.matmul %11, %12, %cst_12 {dimension_numbers = #tpu.dot_dimension_numbers<[1], [1], [0], [0], [0, 0, 1, 0], [], []>} : vector<64x8xf32>, vector<96x8xf32>, vector<64x96xf32> -> vector<64x96xf32>
    %cst_13 = arith.constant dense<0xFF800000> : vector<64xf32>
    %15 = vector.multi_reduction <maximumf>, %14, %cst_13 [1] : vector<64x96xf32> to vector<64xf32>
    %16 = vector.shape_cast %15 : vector<64xf32> to vector<64x1xf32>
    %17 = vector.broadcast %16 : vector<64x1xf32> to vector<64x96xf32>
    %18 = arith.subf %14, %17 : vector<64x96xf32>
    %19 = math.exp %18 : vector<64x96xf32>
    %cst_14 = arith.constant dense<0.000000e+00> : vector<64xf32>
    %20 = vector.multi_reduction <add>, %19, %cst_14 [1] : vector<64x96xf32> to vector<64xf32>
    %21 = vector.shape_cast %20 : vector<64xf32> to vector<64x1xf32>
    %cst_15 = arith.constant dense<0.000000e+00> : vector<64x8xf32>
    %22 = tpu.matmul %19, %13, %cst_15 {dimension_numbers = #tpu.dot_dimension_numbers<[1], [0], [0], [1], [0, 0, 1, 1], [], []>} : vector<64x96xf32>, vector<96x8xf32>, vector<64x8xf32> -> vector<64x8xf32>
    %23 = tpu.reciprocal %21 : vector<64x1xf32> -> vector<64x1xf32>
    %24 = vector.broadcast %23 : vector<64x1xf32> to vector<64x8xf32>
    %25 = arith.mulf %22, %24 : vector<64x8xf32>
    %c0_16 = arith.constant 0 : index
    %c0_17 = arith.constant 0 : index
    %26 = vector.load %arg14[%c0_16, %c0_17] : memref<64x32xf32, #tpu.memory_space<vmem>>, vector<64x8xf32>
    tpu.vector_store %arg14[%c0_16, %c0_17], %25 {strides = array<i32>} : memref<64x32xf32, #tpu.memory_space<vmem>>, vector<64x8xf32>,
    %27 = vector.extract_strided_slice %6 {offsets = [0, 8], sizes = [64, 8], strides = [1, 1]} : vector<64x32xf32> to vector<64x8xf32>
    %28 = vector.extract_strided_slice %8 {offsets = [0, 8], sizes = [96, 8], strides = [1, 1]} : vector<96x32xf32> to vector<96x8xf32>
    %29 = vector.extract_strided_slice %10 {offsets = [0, 8], sizes = [96, 8], strides = [1, 1]} : vector<96x32xf32> to vector<96x8xf32>
    %cst_18 = arith.constant dense<0.000000e+00> : vector<64x96xf32>
    %30 = tpu.matmul %27, %28, %cst_18 {dimension_numbers = #tpu.dot_dimension_numbers<[1], [1], [0], [0], [0, 0, 1, 0], [], []>} : vector<64x8xf32>, vector<96x8xf32>, vector<64x96xf32> -> vector<64x96xf32>
    %cst_19 = arith.constant dense<0xFF800000> : vector<64xf32>
    %31 = vector.multi_reduction <maximumf>, %30, %cst_19 [1] : vector<64x96xf32> to vector<64xf32>
    %32 = vector.shape_cast %31 : vector<64xf32> to vector<64x1xf32>
    %33 = vector.broadcast %32 : vector<64x1xf32> to vector<64x96xf32>
    %34 = arith.subf %30, %33 : vector<64x96xf32>
    %35 = math.exp %34 : vector<64x96xf32>
    %cst_20 = arith.constant dense<0.000000e+00> : vector<64xf32>
    %36 = vector.multi_reduction <add>, %35, %cst_20 [1] : vector<64x96xf32> to vector<64xf32>
    %37 = vector.shape_cast %36 : vector<64xf32> to vector<64x1xf32>
    %cst_21 = arith.constant dense<0.000000e+00> : vector<64x8xf32>
    %38 = tpu.matmul %35, %29, %cst_21 {dimension_numbers = #tpu.dot_dimension_numbers<[1], [0], [0], [1], [0, 0, 1, 1], [], []>} : vector<64x96xf32>, vector<96x8xf32>, vector<64x8xf32> -> vector<64x8xf32>
    %39 = tpu.reciprocal %37 : vector<64x1xf32> -> vector<64x1xf32>
    %40 = vector.broadcast %39 : vector<64x1xf32> to vector<64x8xf32>
    %41 = arith.mulf %38, %40 : vector<64x8xf32>
    %c0_22 = arith.constant 0 : index
    %c8 = arith.constant 8 : index
    %42 = vector.load %arg14[%c0_22, %c8] : memref<64x32xf32, #tpu.memory_space<vmem>>, vector<64x8xf32>
    tpu.vector_store %arg14[%c0_22, %c8], %41 {strides = array<i32>} : memref<64x32xf32, #tpu.memory_space<vmem>>, vector<64x8xf32>,
    %43 = vector.extract_strided_slice %6 {offsets = [0, 16], sizes = [64, 8], strides = [1, 1]} : vector<64x32xf32> to vector<64x8xf32>
    %44 = vector.extract_strided_slice %8 {offsets = [0, 16], sizes = [96, 8], strides = [1, 1]} : vector<96x32xf32> to vector<96x8xf32>
    %45 = vector.extract_strided_slice %10 {offsets = [0, 16], sizes = [96, 8], strides = [1, 1]} : vector<96x32xf32> to vector<96x8xf32>
    %cst_23 = arith.constant dense<0.000000e+00> : vector<64x96xf32>
    %46 = tpu.matmul %43, %44, %cst_23 {dimension_numbers = #tpu.dot_dimension_numbers<[1], [1], [0], [0], [0, 0, 1, 0], [], []>} : vector<64x8xf32>, vector<96x8xf32>, vector<64x96xf32> -> vector<64x96xf32>
    %cst_24 = arith.constant dense<0xFF800000> : vector<64xf32>
    %47 = vector.multi_reduction <maximumf>, %46, %cst_24 [1] : vector<64x96xf32> to vector<64xf32>
    %48 = vector.shape_cast %47 : vector<64xf32> to vector<64x1xf32>
    %49 = vector.broadcast %48 : vector<64x1xf32> to vector<64x96xf32>
    %50 = arith.subf %46, %49 : vector<64x96xf32>
    %51 = math.exp %50 : vector<64x96xf32>
    %cst_25 = arith.constant dense<0.000000e+00> : vector<64xf32>
    %52 = vector.multi_reduction <add>, %51, %cst_25 [1] : vector<64x96xf32> to vector<64xf32>
    %53 = vector.shape_cast %52 : vector<64xf32> to vector<64x1xf32>
    %cst_26 = arith.constant dense<0.000000e+00> : vector<64x8xf32>
    %54 = tpu.matmul %51, %45, %cst_26 {dimension_numbers = #tpu.dot_dimension_numbers<[1], [0], [0], [1], [0, 0, 1, 1], [], []>} : vector<64x96xf32>, vector<96x8xf32>, vector<64x8xf32> -> vector<64x8xf32>
    %55 = tpu.reciprocal %53 : vector<64x1xf32> -> vector<64x1xf32>
    %56 = vector.broadcast %55 : vector<64x1xf32> to vector<64x8xf32>
    %57 = arith.mulf %54, %56 : vector<64x8xf32>
    %c0_27 = arith.constant 0 : index
    %c16 = arith.constant 16 : index
    %58 = vector.load %arg14[%c0_27, %c16] : memref<64x32xf32, #tpu.memory_space<vmem>>, vector<64x8xf32>
    tpu.vector_store %arg14[%c0_27, %c16], %57 {strides = array<i32>} : memref<64x32xf32, #tpu.memory_space<vmem>>, vector<64x8xf32>,
    %59 = vector.extract_strided_slice %6 {offsets = [0, 24], sizes = [64, 8], strides = [1, 1]} : vector<64x32xf32> to vector<64x8xf32>
    %60 = vector.extract_strided_slice %8 {offsets = [0, 24], sizes = [96, 8], strides = [1, 1]} : vector<96x32xf32> to vector<96x8xf32>
    %61 = vector.extract_strided_slice %10 {offsets = [0, 24], sizes = [96, 8], strides = [1, 1]} : vector<96x32xf32> to vector<96x8xf32>
    %cst_28 = arith.constant dense<0.000000e+00> : vector<64x96xf32>
    %62 = tpu.matmul %59, %60, %cst_28 {dimension_numbers = #tpu.dot_dimension_numbers<[1], [1], [0], [0], [0, 0, 1, 0], [], []>} : vector<64x8xf32>, vector<96x8xf32>, vector<64x96xf32> -> vector<64x96xf32>
    %cst_29 = arith.constant dense<0xFF800000> : vector<64xf32>
    %63 = vector.multi_reduction <maximumf>, %62, %cst_29 [1] : vector<64x96xf32> to vector<64xf32>
    %64 = vector.shape_cast %63 : vector<64xf32> to vector<64x1xf32>
    %65 = vector.broadcast %64 : vector<64x1xf32> to vector<64x96xf32>
    %66 = arith.subf %62, %65 : vector<64x96xf32>
    %67 = math.exp %66 : vector<64x96xf32>
    %cst_30 = arith.constant dense<0.000000e+00> : vector<64xf32>
    %68 = vector.multi_reduction <add>, %67, %cst_30 [1] : vector<64x96xf32> to vector<64xf32>
    %69 = vector.shape_cast %68 : vector<64xf32> to vector<64x1xf32>
    %cst_31 = arith.constant dense<0.000000e+00> : vector<64x8xf32>
    %70 = tpu.matmul %67, %61, %cst_31 {dimension_numbers = #tpu.dot_dimension_numbers<[1], [0], [0], [1], [0, 0, 1, 1], [], []>} : vector<64x96xf32>, vector<96x8xf32>, vector<64x8xf32> -> vector<64x8xf32>
    %71 = tpu.reciprocal %69 : vector<64x1xf32> -> vector<64x1xf32>
    %72 = vector.broadcast %71 : vector<64x1xf32> to vector<64x8xf32>
    %73 = arith.mulf %70, %72 : vector<64x8xf32>
    %c0_32 = arith.constant 0 : index
    %c24 = arith.constant 24 : index
    %74 = vector.load %arg14[%c0_32, %c24] : memref<64x32xf32, #tpu.memory_space<vmem>>, vector<64x8xf32>
    tpu.vector_store %arg14[%c0_32, %c24], %73 {strides = array<i32>} : memref<64x32xf32, #tpu.memory_space<vmem>>, vector<64x8xf32>,
    %c0_33 = arith.constant 0 : index
    %c0_34 = arith.constant 0 : index
    %75 = vector.load %arg14[%c0_33, %c0_34] : memref<64x32xf32, #tpu.memory_space<vmem>>, vector<64x32xf32>
    %c0_35 = arith.constant 0 : index
    %c0_36 = arith.constant 0 : index
    %76 = vector.load %arg7[%c0_35, %c0_36] : memref<32x32xf32, #tpu.memory_space<vmem>>, vector<32x32xf32>
    %cst_37 = arith.constant dense<0.000000e+00> : vector<64x32xf32>
    %77 = tpu.matmul %75, %76, %cst_37 {dimension_numbers = #tpu.dot_dimension_numbers<[1], [0], [0], [1], [0, 0, 1, 1], [], []>} : vector<64x32xf32>, vector<32x32xf32>, vector<64x32xf32> -> vector<64x32xf32>
    %c0_38 = arith.constant 0 : index
    %c0_39 = arith.constant 0 : index
    %78 = vector.load %arg8[%c0_38, %c0_39] : memref<1x32xf32, #tpu.memory_space<vmem>>, vector<1x32xf32>
    %79 = vector.broadcast %78 : vector<1x32xf32> to vector<64x32xf32>
    %80 = arith.addf %77, %79 : vector<64x32xf32>
    %c0_40 = arith.constant 0 : index
    %c0_41 = arith.constant 0 : index
    %81 = vector.load %arg9[%c0_40, %c0_41] : memref<32x64xf32, #tpu.memory_space<vmem>>, vector<32x64xf32>
    %cst_42 = arith.constant dense<0.000000e+00> : vector<64x64xf32>
    %82 = tpu.matmul %1, %81, %cst_42 {dimension_numbers = #tpu.dot_dimension_numbers<[1], [0], [0], [1], [0, 0, 1, 1], [], []>} : vector<64x32xf32>, vector<32x64xf32>, vector<64x64xf32> -> vector<64x64xf32>
    %c0_43 = arith.constant 0 : index
    %c0_44 = arith.constant 0 : index
    %83 = vector.load %arg10[%c0_43, %c0_44] : memref<32x64xf32, #tpu.memory_space<vmem>>, vector<32x64xf32>
    %cst_45 = arith.constant dense<0.000000e+00> : vector<64x64xf32>
    %84 = tpu.matmul %80, %83, %cst_45 {dimension_numbers = #tpu.dot_dimension_numbers<[1], [0], [0], [1], [0, 0, 1, 1], [], []>} : vector<64x32xf32>, vector<32x64xf32>, vector<64x64xf32> -> vector<64x64xf32>
    %85 = arith.addf %82, %84 : vector<64x64xf32>
    %c0_46 = arith.constant 0 : index
    %c0_47 = arith.constant 0 : index
    %86 = vector.load %arg11[%c0_46, %c0_47] : memref<1x64xf32, #tpu.memory_space<vmem>>, vector<1x64xf32>
    %87 = vector.broadcast %86 : vector<1x64xf32> to vector<64x64xf32>
    %88 = arith.addf %85, %87 : vector<64x64xf32>
    %c0_48 = arith.constant 0 : index
    %c0_49 = arith.constant 0 : index
    %c0_50 = arith.constant 0 : index
    %89 = vector.load %arg12[%c0_48, %c0_49, %c0_50] : memref<1x64x64xf32, #tpu.memory_space<vmem>>, vector<1x64x64xf32>
    %90 = vector.shape_cast %89 : vector<1x64x64xf32> to vector<64x64xf32>
    %91 = vector.shape_cast %88 : vector<64x64xf32> to vector<1x64x64xf32>
    tpu.vector_store %arg12[%c0_48, %c0_49, %c0_50], %91 {strides = array<i32>} : memref<1x64x64xf32, #tpu.memory_space<vmem>>, vector<1x64x64xf32>,
    %cst_51 = arith.constant dense<0.000000e+00> : vector<64xf32>
    %92 = vector.multi_reduction <add>, %88, %cst_51 [0] : vector<64x64xf32> to vector<64xf32>
    %93 = vector.shape_cast %92 : vector<64xf32> to vector<1x64xf32>
    %94 = arith.mulf %88, %88 : vector<64x64xf32>
    %cst_52 = arith.constant dense<0.000000e+00> : vector<64xf32>
    %95 = vector.multi_reduction <add>, %94, %cst_52 [0] : vector<64x64xf32> to vector<64xf32>
    %96 = vector.shape_cast %95 : vector<64xf32> to vector<1x64xf32>
    %97 = tpu.concatenate %93, %96 in 0 : vector<1x64xf32>, vector<1x64xf32> -> vector<2x64xf32>
    %c0_53 = arith.constant 0 : index
    %c0_54 = arith.constant 0 : index
    %c0_55 = arith.constant 0 : index
    %c0_56 = arith.constant 0 : index
    %98 = vector.load %arg13[%c0_53, %c0_54, %c0_55, %c0_56] : memref<1x1x2x64xf32, #tpu.memory_space<vmem>>, vector<1x1x2x64xf32>
    %99 = vector.shape_cast %98 : vector<1x1x2x64xf32> to vector<2x64xf32>
    %100 = vector.shape_cast %97 : vector<2x64xf32> to vector<1x1x2x64xf32>
    tpu.vector_store %arg13[%c0_53, %c0_54, %c0_55, %c0_56], %100 {strides = array<i32>} : memref<1x1x2x64xf32, #tpu.memory_space<vmem>>, vector<1x1x2x64xf32>,
    return
  }
  func.func @transform_0(%arg0: i32, %arg1: i32) -> (i32, i32, i32) {
    %c0_i32 = arith.constant 0 : i32
    %c0_i32_0 = arith.constant 0 : i32
    return %arg0, %arg1, %c0_i32 : i32, i32, i32
  }
  func.func @transform_1(%arg0: i32, %arg1: i32) -> (i32, i32, i32) {
    %c0_i32 = arith.constant 0 : i32
    %c0_i32_0 = arith.constant 0 : i32
    %c0_i32_1 = arith.constant 0 : i32
    return %arg0, %c0_i32, %c0_i32_0 : i32, i32, i32
  }
  func.func @transform_2(%arg0: i32, %arg1: i32) -> (i32, i32, i32) {
    %c0_i32 = arith.constant 0 : i32
    %c0_i32_0 = arith.constant 0 : i32
    %c0_i32_1 = arith.constant 0 : i32
    return %arg0, %c0_i32, %c0_i32_0 : i32, i32, i32
  }
  func.func @transform_3(%arg0: i32, %arg1: i32) -> (i32, i32) {
    %c0_i32 = arith.constant 0 : i32
    %c0_i32_0 = arith.constant 0 : i32
    %c0_i32_1 = arith.constant 0 : i32
    return %c0_i32, %c0_i32_0 : i32, i32
  }
  func.func @transform_4(%arg0: i32, %arg1: i32) -> (i32, i32) {
    %c0_i32 = arith.constant 0 : i32
    %c0_i32_0 = arith.constant 0 : i32
    %c0_i32_1 = arith.constant 0 : i32
    return %c0_i32, %c0_i32_0 : i32, i32
  }
  func.func @transform_5(%arg0: i32, %arg1: i32) -> (i32, i32) {
    %c0_i32 = arith.constant 0 : i32
    %c0_i32_0 = arith.constant 0 : i32
    %c0_i32_1 = arith.constant 0 : i32
    return %c0_i32, %c0_i32_0 : i32, i32
  }
  func.func @transform_6(%arg0: i32, %arg1: i32) -> (i32, i32) {
    %c0_i32 = arith.constant 0 : i32
    %c0_i32_0 = arith.constant 0 : i32
    %c0_i32_1 = arith.constant 0 : i32
    return %c0_i32, %c0_i32_0 : i32, i32
  }
  func.func @transform_7(%arg0: i32, %arg1: i32) -> (i32, i32) {
    %c0_i32 = arith.constant 0 : i32
    %c0_i32_0 = arith.constant 0 : i32
    %c0_i32_1 = arith.constant 0 : i32
    return %c0_i32, %c0_i32_0 : i32, i32
  }
  func.func @transform_8(%arg0: i32, %arg1: i32) -> (i32, i32) {
    %c0_i32 = arith.constant 0 : i32
    %c0_i32_0 = arith.constant 0 : i32
    %c0_i32_1 = arith.constant 0 : i32
    return %c0_i32, %c0_i32_0 : i32, i32
  }
  func.func @transform_9(%arg0: i32, %arg1: i32) -> (i32, i32) {
    %c0_i32 = arith.constant 0 : i32
    %c0_i32_0 = arith.constant 0 : i32
    %c0_i32_1 = arith.constant 0 : i32
    return %c0_i32, %c0_i32_0 : i32, i32
  }
  func.func @transform_10(%arg0: i32, %arg1: i32) -> (i32, i32, i32) {
    %c0_i32 = arith.constant 0 : i32
    %c0_i32_0 = arith.constant 0 : i32
    return %arg0, %arg1, %c0_i32 : i32, i32, i32
  }
  func.func @transform_11(%arg0: i32, %arg1: i32) -> (i32, i32, i32, i32) {
    %c0_i32 = arith.constant 0 : i32
    %c0_i32_0 = arith.constant 0 : i32
    %c0_i32_1 = arith.constant 0 : i32
    return %arg0, %arg1, %c0_i32, %c0_i32_0 : i32, i32, i32, i32
  }
}

module attributes {stable_mosaic.version = 11 : i64} {
  func.func @_kv_proj_kernel(%arg0: i32, %arg1: memref<1x96x32xf32, #tpu.memory_space<vmem>>, %arg2: memref<32x32xf32, #tpu.memory_space<vmem>>, %arg3: memref<1x32xf32, #tpu.memory_space<vmem>>, %arg4: memref<32x32xf32, #tpu.memory_space<vmem>>, %arg5: memref<1x32xf32, #tpu.memory_space<vmem>>, %arg6: memref<1x96x32xf32, #tpu.memory_space<vmem>>, %arg7: memref<1x96x32xf32, #tpu.memory_space<vmem>>) attributes {dimension_semantics = [#tpu.dimension_semantics<parallel>], iteration_bounds = array<i64: 2>, scalar_prefetch = 0 : i64, scratch_operands = 0 : i64, tpu.core_type = #tpu.core_type<tc>, window_params = [{transform_indices = @transform_0, window_bounds = array<i64: 1, 96, 32>}, {pipeline_mode = #tpu.pipeline_mode<synchronous>, transform_indices = @transform_1, window_bounds = array<i64: 32, 32>}, {pipeline_mode = #tpu.pipeline_mode<synchronous>, transform_indices = @transform_2, window_bounds = array<i64: 1, 32>}, {pipeline_mode = #tpu.pipeline_mode<synchronous>, transform_indices = @transform_3, window_bounds = array<i64: 32, 32>}, {pipeline_mode = #tpu.pipeline_mode<synchronous>, transform_indices = @transform_4, window_bounds = array<i64: 1, 32>}, {transform_indices = @transform_5, window_bounds = array<i64: 1, 96, 32>}, {transform_indices = @transform_6, window_bounds = array<i64: 1, 96, 32>}]} {
    %c0 = arith.constant 0 : index
    %c0_0 = arith.constant 0 : index
    %c0_1 = arith.constant 0 : index
    %0 = vector.load %arg1[%c0, %c0_0, %c0_1] : memref<1x96x32xf32, #tpu.memory_space<vmem>>, vector<1x96x32xf32>
    %1 = vector.shape_cast %0 : vector<1x96x32xf32> to vector<96x32xf32>
    %c0_2 = arith.constant 0 : index
    %c0_3 = arith.constant 0 : index
    %2 = vector.load %arg2[%c0_2, %c0_3] : memref<32x32xf32, #tpu.memory_space<vmem>>, vector<32x32xf32>
    %cst = arith.constant dense<0.000000e+00> : vector<96x32xf32>
    %3 = tpu.matmul %1, %2, %cst {dimension_numbers = #tpu.dot_dimension_numbers<[1], [0], [0], [1], [0, 0, 1, 1], [], []>} : vector<96x32xf32>, vector<32x32xf32>, vector<96x32xf32> -> vector<96x32xf32>
    %c0_4 = arith.constant 0 : index
    %c0_5 = arith.constant 0 : index
    %4 = vector.load %arg3[%c0_4, %c0_5] : memref<1x32xf32, #tpu.memory_space<vmem>>, vector<1x32xf32>
    %5 = vector.broadcast %4 : vector<1x32xf32> to vector<96x32xf32>
    %6 = arith.addf %3, %5 : vector<96x32xf32>
    %c0_6 = arith.constant 0 : index
    %c0_7 = arith.constant 0 : index
    %7 = vector.load %arg4[%c0_6, %c0_7] : memref<32x32xf32, #tpu.memory_space<vmem>>, vector<32x32xf32>
    %cst_8 = arith.constant dense<0.000000e+00> : vector<96x32xf32>
    %8 = tpu.matmul %1, %7, %cst_8 {dimension_numbers = #tpu.dot_dimension_numbers<[1], [0], [0], [1], [0, 0, 1, 1], [], []>} : vector<96x32xf32>, vector<32x32xf32>, vector<96x32xf32> -> vector<96x32xf32>
    %c0_9 = arith.constant 0 : index
    %c0_10 = arith.constant 0 : index
    %9 = vector.load %arg5[%c0_9, %c0_10] : memref<1x32xf32, #tpu.memory_space<vmem>>, vector<1x32xf32>
    %10 = vector.broadcast %9 : vector<1x32xf32> to vector<96x32xf32>
    %11 = arith.addf %8, %10 : vector<96x32xf32>
    %c0_11 = arith.constant 0 : index
    %c0_12 = arith.constant 0 : index
    %c0_13 = arith.constant 0 : index
    %12 = vector.load %arg6[%c0_11, %c0_12, %c0_13] : memref<1x96x32xf32, #tpu.memory_space<vmem>>, vector<1x96x32xf32>
    %13 = vector.shape_cast %12 : vector<1x96x32xf32> to vector<96x32xf32>
    %14 = vector.shape_cast %6 : vector<96x32xf32> to vector<1x96x32xf32>
    tpu.vector_store %arg6[%c0_11, %c0_12, %c0_13], %14 {strides = array<i32>} : memref<1x96x32xf32, #tpu.memory_space<vmem>>, vector<1x96x32xf32>,
    %c0_14 = arith.constant 0 : index
    %c0_15 = arith.constant 0 : index
    %c0_16 = arith.constant 0 : index
    %15 = vector.load %arg7[%c0_14, %c0_15, %c0_16] : memref<1x96x32xf32, #tpu.memory_space<vmem>>, vector<1x96x32xf32>
    %16 = vector.shape_cast %15 : vector<1x96x32xf32> to vector<96x32xf32>
    %17 = vector.shape_cast %11 : vector<96x32xf32> to vector<1x96x32xf32>
    tpu.vector_store %arg7[%c0_14, %c0_15, %c0_16], %17 {strides = array<i32>} : memref<1x96x32xf32, #tpu.memory_space<vmem>>, vector<1x96x32xf32>,
    return
  }
  func.func @transform_0(%arg0: i32) -> (i32, i32, i32) {
    %c0_i32 = arith.constant 0 : i32
    %c0_i32_0 = arith.constant 0 : i32
    %c0_i32_1 = arith.constant 0 : i32
    return %arg0, %c0_i32, %c0_i32_0 : i32, i32, i32
  }
  func.func @transform_1(%arg0: i32) -> (i32, i32) {
    %c0_i32 = arith.constant 0 : i32
    %c0_i32_0 = arith.constant 0 : i32
    %c0_i32_1 = arith.constant 0 : i32
    return %c0_i32, %c0_i32_0 : i32, i32
  }
  func.func @transform_2(%arg0: i32) -> (i32, i32) {
    %c0_i32 = arith.constant 0 : i32
    %c0_i32_0 = arith.constant 0 : i32
    %c0_i32_1 = arith.constant 0 : i32
    return %c0_i32, %c0_i32_0 : i32, i32
  }
  func.func @transform_3(%arg0: i32) -> (i32, i32) {
    %c0_i32 = arith.constant 0 : i32
    %c0_i32_0 = arith.constant 0 : i32
    %c0_i32_1 = arith.constant 0 : i32
    return %c0_i32, %c0_i32_0 : i32, i32
  }
  func.func @transform_4(%arg0: i32) -> (i32, i32) {
    %c0_i32 = arith.constant 0 : i32
    %c0_i32_0 = arith.constant 0 : i32
    %c0_i32_1 = arith.constant 0 : i32
    return %c0_i32, %c0_i32_0 : i32, i32
  }
  func.func @transform_5(%arg0: i32) -> (i32, i32, i32) {
    %c0_i32 = arith.constant 0 : i32
    %c0_i32_0 = arith.constant 0 : i32
    %c0_i32_1 = arith.constant 0 : i32
    return %arg0, %c0_i32, %c0_i32_0 : i32, i32, i32
  }
  func.func @transform_6(%arg0: i32) -> (i32, i32, i32) {
    %c0_i32 = arith.constant 0 : i32
    %c0_i32_0 = arith.constant 0 : i32
    %c0_i32_1 = arith.constant 0 : i32
    return %arg0, %c0_i32, %c0_i32_0 : i32, i32, i32
  }
}

module attributes {stable_mosaic.version = 11 : i64} {
  func.func @_bn_relu_out_kernel(%arg0: i32, %arg1: i32, %arg2: memref<1x64x64xf32, #tpu.memory_space<vmem>>, %arg3: memref<1x64xf32, #tpu.memory_space<vmem>>, %arg4: memref<1x64xf32, #tpu.memory_space<vmem>>, %arg5: memref<64x32xf32, #tpu.memory_space<vmem>>, %arg6: memref<1x32xf32, #tpu.memory_space<vmem>>, %arg7: memref<1x64x32xf32, #tpu.memory_space<vmem>>) attributes {dimension_semantics = [#tpu.dimension_semantics<parallel>, #tpu.dimension_semantics<parallel>], iteration_bounds = array<i64: 2, 2>, scalar_prefetch = 0 : i64, scratch_operands = 0 : i64, tpu.core_type = #tpu.core_type<tc>, window_params = [{transform_indices = @transform_0, window_bounds = array<i64: 1, 64, 64>}, {pipeline_mode = #tpu.pipeline_mode<synchronous>, transform_indices = @transform_1, window_bounds = array<i64: 1, 64>}, {pipeline_mode = #tpu.pipeline_mode<synchronous>, transform_indices = @transform_2, window_bounds = array<i64: 1, 64>}, {pipeline_mode = #tpu.pipeline_mode<synchronous>, transform_indices = @transform_3, window_bounds = array<i64: 64, 32>}, {pipeline_mode = #tpu.pipeline_mode<synchronous>, transform_indices = @transform_4, window_bounds = array<i64: 1, 32>}, {transform_indices = @transform_5, window_bounds = array<i64: 1, 64, 32>}]} {
    %c0 = arith.constant 0 : index
    %c0_0 = arith.constant 0 : index
    %c0_1 = arith.constant 0 : index
    %0 = vector.load %arg2[%c0, %c0_0, %c0_1] : memref<1x64x64xf32, #tpu.memory_space<vmem>>, vector<1x64x64xf32>
    %1 = vector.shape_cast %0 : vector<1x64x64xf32> to vector<64x64xf32>
    %c0_2 = arith.constant 0 : index
    %c0_3 = arith.constant 0 : index
    %2 = vector.load %arg3[%c0_2, %c0_3] : memref<1x64xf32, #tpu.memory_space<vmem>>, vector<1x64xf32>
    %3 = vector.broadcast %2 : vector<1x64xf32> to vector<64x64xf32>
    %4 = arith.mulf %1, %3 : vector<64x64xf32>
    %c0_4 = arith.constant 0 : index
    %c0_5 = arith.constant 0 : index
    %5 = vector.load %arg4[%c0_4, %c0_5] : memref<1x64xf32, #tpu.memory_space<vmem>>, vector<1x64xf32>
    %6 = vector.broadcast %5 : vector<1x64xf32> to vector<64x64xf32>
    %7 = arith.addf %4, %6 : vector<64x64xf32>
    %cst = arith.constant 0.000000e+00 : f32
    %8 = vector.broadcast %cst : f32 to vector<64x64xf32>
    %9 = arith.maximumf %7, %8 : vector<64x64xf32>
    %c0_6 = arith.constant 0 : index
    %c0_7 = arith.constant 0 : index
    %10 = vector.load %arg5[%c0_6, %c0_7] : memref<64x32xf32, #tpu.memory_space<vmem>>, vector<64x32xf32>
    %cst_8 = arith.constant dense<0.000000e+00> : vector<64x32xf32>
    %11 = tpu.matmul %9, %10, %cst_8 {dimension_numbers = #tpu.dot_dimension_numbers<[1], [0], [0], [1], [0, 0, 1, 1], [], []>} : vector<64x64xf32>, vector<64x32xf32>, vector<64x32xf32> -> vector<64x32xf32>
    %c0_9 = arith.constant 0 : index
    %c0_10 = arith.constant 0 : index
    %12 = vector.load %arg6[%c0_9, %c0_10] : memref<1x32xf32, #tpu.memory_space<vmem>>, vector<1x32xf32>
    %13 = vector.broadcast %12 : vector<1x32xf32> to vector<64x32xf32>
    %14 = arith.addf %11, %13 : vector<64x32xf32>
    %c0_11 = arith.constant 0 : index
    %c0_12 = arith.constant 0 : index
    %c0_13 = arith.constant 0 : index
    %15 = vector.load %arg7[%c0_11, %c0_12, %c0_13] : memref<1x64x32xf32, #tpu.memory_space<vmem>>, vector<1x64x32xf32>
    %16 = vector.shape_cast %15 : vector<1x64x32xf32> to vector<64x32xf32>
    %17 = vector.shape_cast %14 : vector<64x32xf32> to vector<1x64x32xf32>
    tpu.vector_store %arg7[%c0_11, %c0_12, %c0_13], %17 {strides = array<i32>} : memref<1x64x32xf32, #tpu.memory_space<vmem>>, vector<1x64x32xf32>,
    return
  }
  func.func @transform_0(%arg0: i32, %arg1: i32) -> (i32, i32, i32) {
    %c0_i32 = arith.constant 0 : i32
    %c0_i32_0 = arith.constant 0 : i32
    return %arg0, %arg1, %c0_i32 : i32, i32, i32
  }
  func.func @transform_1(%arg0: i32, %arg1: i32) -> (i32, i32) {
    %c0_i32 = arith.constant 0 : i32
    %c0_i32_0 = arith.constant 0 : i32
    %c0_i32_1 = arith.constant 0 : i32
    return %c0_i32, %c0_i32_0 : i32, i32
  }
  func.func @transform_2(%arg0: i32, %arg1: i32) -> (i32, i32) {
    %c0_i32 = arith.constant 0 : i32
    %c0_i32_0 = arith.constant 0 : i32
    %c0_i32_1 = arith.constant 0 : i32
    return %c0_i32, %c0_i32_0 : i32, i32
  }
  func.func @transform_3(%arg0: i32, %arg1: i32) -> (i32, i32) {
    %c0_i32 = arith.constant 0 : i32
    %c0_i32_0 = arith.constant 0 : i32
    %c0_i32_1 = arith.constant 0 : i32
    return %c0_i32, %c0_i32_0 : i32, i32
  }
  func.func @transform_4(%arg0: i32, %arg1: i32) -> (i32, i32) {
    %c0_i32 = arith.constant 0 : i32
    %c0_i32_0 = arith.constant 0 : i32
    %c0_i32_1 = arith.constant 0 : i32
    return %c0_i32, %c0_i32_0 : i32, i32
  }
  func.func @transform_5(%arg0: i32, %arg1: i32) -> (i32, i32, i32) {
    %c0_i32 = arith.constant 0 : i32
    %c0_i32_0 = arith.constant 0 : i32
    return %arg0, %arg1, %c0_i32 : i32, i32, i32
  }
}

</mosaic_0001>

<llo_original>
// kernel: attentional_propagation.3
$region0: #{attentional_propagation.3}
  #allocation0 [shape = 'u32[]', space=smem, size = 0x4, offset = 0x4, fixed_abs, tag = 'smem constant byte address 0x4 - core index']
  #allocation1 [shape = 'u32[144,128]{1,0:T(1,128)}', space=vmem, size = 0x12000, scoped, tag = 'internal scratch']
  %s0 = inlined_call_operand.vmem [shape: f32[2,96,32], index: 0, kind: input, shape index: {}]
  %s1 = inlined_call_operand.vmem [shape: f32[32,32], index: 1, kind: input, shape index: {}]
  %s2 = inlined_call_operand.vmem [shape: f32[1,32], index: 2, kind: input, shape index: {}]
  %s3 = inlined_call_operand.vmem [shape: f32[32,32], index: 3, kind: input, shape index: {}]
  %s4 = inlined_call_operand.vmem [shape: f32[1,32], index: 4, kind: input, shape index: {}]
  %s5 = inlined_call_operand.vmem [shape: f32[2,96,32], index: 5, kind: output, shape index: {0}]
  %s6 = inlined_call_operand.vmem [shape: f32[2,96,32], index: 6, kind: output, shape index: {1}]
  %7 = xla_tuple %s5, %s6
  %s8 = sld [smem:[#allocation0]]
  $region61: #{attentional_propagation.3} parent=0
    _
  %s10 = ssub.s32 1, %s8
  %s11 = scalar_select 0, %s10, %s8
  loop: start=0, step=1, limit=4
  $region2: #{attentional_propagation.3} parent=0 // loop_pre_header
    _
  $region3: #{attentional_propagation.3} parent=0 // loop_header
    %s13 = sphi 0, %s17
    %p14 = scmp.ge.s32.totalorder %s13, 4
    %s23 = sphi 0, %s25
    %s26 = sphi 0, %s23
    %s27 = sphi 0, %s26
    %s43 = sphi 0, %s27
    %s47 = sphi 0, %s47
    %s49 = sphi 0, %s47
    %s50 = sphi 0, %s49
    %s64 = sphi 0, %s50
    %s68 = sphi 0, %s68
    %s70 = sphi 0, %s68
    %s71 = sphi 0, %s70
    %s85 = sphi 0, %s71
    %s89 = sphi 0, %s89
    %s91 = sphi 0, %s89
    %s92 = sphi 0, %s91
    %s106 = sphi 0, %s92
    %s110 = sphi 0, %s110
    %s112 = sphi 0, %s110
    %s113 = sphi 0, %s112
    %s127 = sphi 0, %s113
    %s133 = sphi 0, %s135
    %s136 = sphi 0, %s133
    %s137 = sphi 0, %s136
    %s153 = sphi 0, %s137
    %s159 = sphi 0, %s161
    %s162 = sphi 0, %s159
    %s163 = sphi 0, %s162
    %s179 = sphi 0, %s163
  $region4: #{attentional_propagation.3} parent=0 // loop_header_branch
    %16 = sbr.rel (%p14) target = $region8
  $region5: #{attentional_propagation.3} parent=0 // loop_body
    %s18 = ssub.s32 %s13, 1
    %s19 = ssub.s32 %s13, 2
    %s20 = sadd.s32 %s13, 1
    %s21 = ssub.s32 %s13, %s20
    %p22 = scmp.eq.s32.totalorder %s21, 0
    %s24 = sadd.s32 %s23, 1
    %s25 = scalar_select %p22, %s23, %s24
    %p28 = pneg %p22
    %p29 = scmp.eq.s32.totalorder %s13, 1
    %p30 = por %p28, %p29
    %p31 = scmp.ne.s32.totalorder %s23, %s26
    %p32 = scmp.eq.s32.totalorder %s13, 0
    %p33 = por %p31, %p32
    %p34 = scmp.ne.s32.totalorder %s23, %s26
    %p35 = scmp.eq.s32.totalorder %s18, 1
    %p36 = por %p34, %p35
    %p37 = scmp.ne.s32.totalorder %s26, %s27
    %p38 = scmp.eq.s32.totalorder %s18, 0
    %p39 = por %p37, %p38
    %p40 = scmp.ne.s32.totalorder %s26, %s27
    %p41 = scmp.eq.s32.totalorder %s19, 1
    %p42 = por %p40, %p41
    %p44 = scmp.ne.s32.totalorder %s27, %s43
    %p45 = scmp.eq.s32.totalorder %s19, 0
    %p46 = por %p44, %p45
    %s48 = sadd.s32 %s47, 1
    %p51 = scmp.eq.s32.totalorder %s13, 1
    %p52 = scmp.ne.s32.totalorder %s47, %s49
    %p53 = scmp.eq.s32.totalorder %s13, 0
    %p54 = por %p52, %p53
    %p55 = scmp.ne.s32.totalorder %s47, %s49
    %p56 = scmp.eq.s32.totalorder %s18, 1
    %p57 = por %p55, %p56
    %p58 = scmp.ne.s32.totalorder %s49, %s50
    %p59 = scmp.eq.s32.totalorder %s18, 0
    %p60 = por %p58, %p59
    %p61 = scmp.ne.s32.totalorder %s49, %s50
    %p62 = scmp.eq.s32.totalorder %s19, 1
    %p63 = por %p61, %p62
    %p65 = scmp.ne.s32.totalorder %s50, %s64
    %p66 = scmp.eq.s32.totalorder %s19, 0
    %p67 = por %p65, %p66
    %s69 = sadd.s32 %s68, 1
    %p72 = scmp.eq.s32.totalorder %s13, 1
    %p73 = scmp.ne.s32.totalorder %s68, %s70
    %p74 = scmp.eq.s32.totalorder %s13, 0
    %p75 = por %p73, %p74
    %p76 = scmp.ne.s32.totalorder %s68, %s70
    %p77 = scmp.eq.s32.totalorder %s18, 1
    %p78 = por %p76, %p77
    %p79 = scmp.ne.s32.totalorder %s70, %s71
    %p80 = scmp.eq.s32.totalorder %s18, 0
    %p81 = por %p79, %p80
    %p82 = scmp.ne.s32.totalorder %s70, %s71
    %p83 = scmp.eq.s32.totalorder %s19, 1
    %p84 = por %p82, %p83
    %p86 = scmp.ne.s32.totalorder %s71, %s85
    %p87 = scmp.eq.s32.totalorder %s19, 0
    %p88 = por %p86, %p87
    %s90 = sadd.s32 %s89, 1
    %p93 = scmp.eq.s32.totalorder %s13, 1
    %p94 = scmp.ne.s32.totalorder %s89, %s91
    %p95 = scmp.eq.s32.totalorder %s13, 0
    %p96 = por %p94, %p95
    %p97 = scmp.ne.s32.totalorder %s89, %s91
    %p98 = scmp.eq.s32.totalorder %s18, 1
    %p99 = por %p97, %p98
    %p100 = scmp.ne.s32.totalorder %s91, %s92
    %p101 = scmp.eq.s32.totalorder %s18, 0
    %p102 = por %p100, %p101
    %p103 = scmp.ne.s32.totalorder %s91, %s92
    %p104 = scmp.eq.s32.totalorder %s19, 1
    %p105 = por %p103, %p104
    %p107 = scmp.ne.s32.totalorder %s92, %s106
    %p108 = scmp.eq.s32.totalorder %s19, 0
    %p109 = por %p107, %p108
    %s111 = sadd.s32 %s110, 1
    %p114 = scmp.eq.s32.totalorder %s13, 1
    %p115 = scmp.ne.s32.totalorder %s110, %s112
    %p116 = scmp.eq.s32.totalorder %s13, 0
    %p117 = por %p115, %p116
    %p118 = scmp.ne.s32.totalorder %s110, %s112
    %p119 = scmp.eq.s32.totalorder %s18, 1
    %p120 = por %p118, %p119
    %p121 = scmp.ne.s32.totalorder %s112, %s113
    %p122 = scmp.eq.s32.totalorder %s18, 0
    %p123 = por %p121, %p122
    %p124 = scmp.ne.s32.totalorder %s112, %s113
    %p125 = scmp.eq.s32.totalorder %s19, 1
    %p126 = por %p124, %p125
    %p128 = scmp.ne.s32.totalorder %s113, %s127
    %p129 = scmp.eq.s32.totalorder %s19, 0
    %p130 = por %p128, %p129
    %s131 = ssub.s32 %s13, %s20
    %p132 = scmp.eq.s32.totalorder %s131, 0
    %s134 = sadd.s32 %s133, 1
    %s135 = scalar_select %p132, %s133, %s134
    %p138 = pneg %p132
    %p139 = scmp.eq.s32.totalorder %s13, 1
    %p140 = por %p138, %p139
    %p141 = scmp.ne.s32.totalorder %s133, %s136
    %p142 = scmp.eq.s32.totalorder %s13, 0
    %p143 = por %p141, %p142
    %p144 = scmp.ne.s32.totalorder %s133, %s136
    %p145 = scmp.eq.s32.totalorder %s18, 1
    %p146 = por %p144, %p145
    %p147 = scmp.ne.s32.totalorder %s136, %s137
    %p148 = scmp.eq.s32.totalorder %s18, 0
    %p149 = por %p147, %p148
    %p150 = scmp.ne.s32.totalorder %s136, %s137
    %p151 = scmp.eq.s32.totalorder %s19, 1
    %p152 = por %p150, %p151
    %p154 = scmp.ne.s32.totalorder %s137, %s153
    %p155 = scmp.eq.s32.totalorder %s19, 0
    %p156 = por %p154, %p155
    %s157 = ssub.s32 %s13, %s20
    %p158 = scmp.eq.s32.totalorder %s157, 0
    %s160 = sadd.s32 %s159, 1
    %s161 = scalar_select %p158, %s159, %s160
    %p164 = pneg %p158
    %p165 = scmp.eq.s32.totalorder %s13, 1
    %p166 = por %p164, %p165
    %p167 = scmp.ne.s32.totalorder %s159, %s162
    %p168 = scmp.eq.s32.totalorder %s13, 0
    %p169 = por %p167, %p168
    %p170 = scmp.ne.s32.totalorder %s159, %s162
    %p171 = scmp.eq.s32.totalorder %s18, 1
    %p172 = por %p170, %p171
    %p173 = scmp.ne.s32.totalorder %s162, %s163
    %p174 = scmp.eq.s32.totalorder %s18, 0
    %p175 = por %p173, %p174
    %p176 = scmp.ne.s32.totalorder %s162, %s163
    %p177 = scmp.eq.s32.totalorder %s19, 1
    %p178 = por %p176, %p177
    %p180 = scmp.ne.s32.totalorder %s163, %s179
    %p181 = scmp.eq.s32.totalorder %s19, 0
    %p182 = por %p180, %p181
    %p183 = scmp.le.s32.totalorder 1, %s13
    %p184 = scmp.lt.s32.totalorder %s13, 3
    %p185 = pnand %p183, %p184
    %p186 = pneg %p185
    // Predicated region
    $region9: #{attentional_propagation.3} parent=5 // pred_check
      _
    $region10: #{attentional_propagation.3} parent=5 // pred_check_branch
      %188 = sbr.rel (%p185) target = $region12
    $region11: #{attentional_propagation.3} parent=5 // pred_region
      %s189 = ssub.s32 %s13, 1
      // Predicated region
      $region13: #{attentional_propagation.3} parent=11 // pred_check
        %p190 = pneg %p60
      $region14: #{attentional_propagation.3} parent=11 // pred_check_branch
        %192 = sbr.rel (%p190) target = $region16
      $region15: #{attentional_propagation.3} parent=11 // pred_region
        _
      $region16: #{attentional_propagation.3} parent=11 // pred_fallthru
        _
      // Predicated region
      $region17: #{attentional_propagation.3} parent=11 // pred_check
        %p193 = pneg %p81
      $region18: #{attentional_propagation.3} parent=11 // pred_check_branch
        %195 = sbr.rel (%p193) target = $region20
      $region19: #{attentional_propagation.3} parent=11 // pred_region
        _
      $region20: #{attentional_propagation.3} parent=11 // pred_fallthru
        _
      // Predicated region
      $region21: #{attentional_propagation.3} parent=11 // pred_check
        %p196 = pneg %p102
      $region22: #{attentional_propagation.3} parent=11 // pred_check_branch
        %198 = sbr.rel (%p196) target = $region24
      $region23: #{attentional_propagation.3} parent=11 // pred_region
        _
      $region24: #{attentional_propagation.3} parent=11 // pred_fallthru
        _
      // Predicated region
      $region25: #{attentional_propagation.3} parent=11 // pred_check
        %p199 = pneg %p123
      $region26: #{attentional_propagation.3} parent=11 // pred_check_branch
        %201 = sbr.rel (%p199) target = $region28
      $region27: #{attentional_propagation.3} parent=11 // pred_region
        _
      $region28: #{attentional_propagation.3} parent=11 // pred_fallthru
        _
    $region12: #{attentional_propagation.3} parent=5 // pred_fallthru
      _
    %p202 = scmp.lt.s32.totalorder %s13, 2
    // Predicated region
    $region29: #{attentional_propagation.3} parent=5 // pred_check
      %p203 = pneg %p202
    $region30: #{attentional_propagation.3} parent=5 // pred_check_branch
      %205 = sbr.rel (%p203) target = $region32
    $region31: #{attentional_propagation.3} parent=5 // pred_region
      // Predicated region
      $region33: #{attentional_propagation.3} parent=31 // pred_check
        %p206 = pneg %p33
      $region34: #{attentional_propagation.3} parent=31 // pred_check_branch
        %208 = sbr.rel (%p206) target = $region36
      $region35: #{attentional_propagation.3} parent=31 // pred_region
        %p209 = scmp.lt.s32.totalorder %s13, 1
        %s210 = scalar_select %p209, %s13, 1
        %s211 = smul.addr %s210, 12
        %s212 = smul.addr %s211, 8
        %s213 = scalar_lea.vmem %s0, %s212
      $region36: #{attentional_propagation.3} parent=31 // pred_fallthru
        _
    $region32: #{attentional_propagation.3} parent=5 // pred_fallthru
      _
    %p214 = scmp.le.s32.totalorder 1, %s13
    %p215 = scmp.lt.s32.totalorder %s13, 3
    %p216 = pnand %p214, %p215
    %p217 = pneg %p216
    // Predicated region
    $region37: #{attentional_propagation.3} parent=5 // pred_check
      _
    $region38: #{attentional_propagation.3} parent=5 // pred_check_branch
      %219 = sbr.rel (%p216) target = $region40
    $region39: #{attentional_propagation.3} parent=5 // pred_region
      %s220 = ssub.s32 %s13, 1
      %p221 = scmp.lt.s32.totalorder %s18, 1
      %s222 = scalar_select %p221, %s18, 1
      %s223 = smul.addr %s222, 12
      %s224 = smul.addr %s223, 8
      %s225 = scalar_lea.vmem %s0, %s224
      %p226 = pneg %p39
      %p227 = pneg %p36
      %p228 = pneg %p60
      %p229 = pneg %p57
      %p230 = pneg %p81
      %p231 = pneg %p78
      %p232 = pneg %p102
      %p233 = pneg %p99
      %p234 = pneg %p123
      %p235 = pneg %p120
      %p236 = pneg %p149
      %p237 = pneg %p146
      %p238 = scmp.lt.s32.totalorder %s18, 1
      %s239 = scalar_select %p238, %s18, 1
      %s240 = smul.addr %s239, 12
      %s241 = smul.addr %s240, 8
      %s242 = scalar_lea.vmem %s5, %s241
      %p243 = pneg %p175
      %p244 = pneg %p172
      %p245 = scmp.lt.s32.totalorder %s18, 1
      %s246 = scalar_select %p245, %s18, 1
      %s247 = smul.addr %s246, 12
      %s248 = smul.addr %s247, 8
      %s249 = scalar_lea.vmem %s6, %s248
      %p250 = scmp.lt.s32.totalorder %s18, 1
      %s251 = scalar_select %p250, %s18, 1
      %s252 = smul.addr %s251, 12
      %s253 = smul.addr %s252, 8
      %s254 = scalar_lea.vmem %s0, %s253
      %p255 = scmp.lt.s32.totalorder %s18, 1
      %s256 = scalar_select %p255, %s18, 1
      %s257 = smul.addr %s256, 12
      %s258 = smul.addr %s257, 8
      %s259 = scalar_lea.vmem %s5, %s258
      %p260 = scmp.lt.s32.totalorder %s18, 1
      %s261 = scalar_select %p260, %s18, 1
      %s262 = smul.addr %s261, 12
      %s263 = smul.addr %s262, 8
      %s264 = scalar_lea.vmem %s6, %s263
      %v265 = vld [vmem:[%s254] sm:$0xff]
      %v266 = vld [vmem:[%s254 + $0x8] sm:$0xff]
      %v267 = vld [vmem:[%s254 + $0x10] sm:$0xff]
      %v268 = vld [vmem:[%s254 + $0x18] sm:$0xff]
      %v269 = vld [vmem:[%s254 + $0x20] sm:$0xff]
      %v270 = vld [vmem:[%s254 + $0x28] sm:$0xff]
      %v271 = vld [vmem:[%s254 + $0x30] sm:$0xff]
      %v272 = vld [vmem:[%s254 + $0x38] sm:$0xff]
      %v273 = vld [vmem:[%s254 + $0x40] sm:$0xff]
      %v274 = vld [vmem:[%s254 + $0x48] sm:$0xff]
      %v275 = vld [vmem:[%s254 + $0x50] sm:$0xff]
      %v276 = vld [vmem:[%s254 + $0x58] sm:$0xff]
      %v277 = vld [vmem:[%s1] sm:$0xff]
      %v278 = vld [vmem:[%s1 + $0x8] sm:$0xff]
      %v279 = vld [vmem:[%s1 + $0x10] sm:$0xff]
      %v280 = vld [vmem:[%s1 + $0x18] sm:$0xff]
      %v281 = vld [vmem:[%s2] sm:$0x1]
      %v283 = vlaneseq
      %v284 = vshrl.u32 %v283, 7
      %v285 = vsub.s32 0, %v284
      %v286 = vrot.slane %v281, %v285
      %vm288 = vcmask 261120
      %v290 = vsel %vm288, %v265, 0
      %v293 = vsel %vm288, %v266, 0
      %v296 = vsel %vm288, %v267, 0
      %v299 = vsel %vm288, %v268, 0
      %v302 = vsel %vm288, %v269, 0
      %v305 = vsel %vm288, %v270, 0
      %v308 = vsel %vm288, %v271, 0
      %v311 = vsel %vm288, %v272, 0
      %v314 = vsel %vm288, %v273, 0
      %v317 = vsel %vm288, %v274, 0
      %v320 = vsel %vm288, %v275, 0
      %v323 = vsel %vm288, %v276, 0
      %325 = vmatprep.subr.mxu0 0.0
      %326 = vmatpush1.msra.mxu0 %v277
      %327 = vmatprep.subr.mxu0 0.0
      %328 = vmatpush1.msra.mxu0 %v278
      %329 = vmatprep.subr.mxu0 0.0
      %330 = vmatpush1.msra.mxu0 %v279
      %331 = vmatprep.subr.mxu0 0.0
      %332 = vmatpush1.msra.mxu0 %v280
      %333 = vmatprep.subr.mxu0 0.0
      %334 = vmatpush1.msra.mxu0 0.0
      %335 = vmatprep.subr.mxu0 0.0
      %336 = vmatpush1.msra.mxu0 0.0
      %337 = vmatprep.subr.mxu0 0.0
      %338 = vmatpush1.msra.mxu0 0.0
      %339 = vmatprep.subr.mxu0 0.0
      %340 = vmatpush1.msra.mxu0 0.0
      %341 = vmatprep.subr.mxu0 0.0
      %342 = vmatpush1.msra.mxu0 0.0
      %343 = vmatprep.subr.mxu0 0.0
      %344 = vmatpush1.msra.mxu0 0.0
      %345 = vmatprep.subr.mxu0 0.0
      %346 = vmatpush1.msra.mxu0 0.0
      %347 = vmatprep.subr.mxu0 0.0
      %348 = vmatpush1.msra.mxu0 0.0
      %349 = vmatprep.subr.mxu0 0.0
      %350 = vmatpush1.msra.mxu0 0.0
      %351 = vmatprep.subr.mxu0 0.0
      %352 = vmatpush1.msra.mxu0 0.0
      %353 = vmatprep.subr.mxu0 0.0
      %354 = vmatpush1.msra.mxu0 0.0
      %355 = vmatprep.subr.mxu0 0.0
      %356 = vmatpush1.msra.mxu0 0.0
      %357 = vmatprep.subr.mxu0 0.0
      %358 = vmatpush1.msra.mxu0 0.0
      %359 = vmatprep.subr.mxu0 0.0
      %360 = vmatpush1.msra.mxu0 0.0
      %361 = vmatprep.subr.mxu0 0.0
      %362 = vmatpush1.msra.mxu0 0.0
      %363 = vmatprep.subr.mxu0 0.0
      %364 = vmatpush1.msra.mxu0 0.0
      %365 = vmatprep.subr.mxu0 0.0
      %366 = vmatpush1.msra.mxu0 0.0
      %367 = vmatprep.subr.mxu0 0.0
      %368 = vmatpush1.msra.mxu0 0.0
      %369 = vmatprep.subr.mxu0 0.0
      %370 = vmatpush1.msra.mxu0 0.0
      %371 = vmatprep.subr.mxu0 0.0
      %372 = vmatpush1.msra.mxu0 0.0
      %373 = vmatprep.subr.mxu0 0.0
      %374 = vmatpush1.msra.mxu0 0.0
      %375 = vmatprep.subr.mxu0 0.0
      %376 = vmatpush1.msra.mxu0 0.0
      %377 = vmatprep.subr.mxu0 0.0
      %378 = vmatpush1.msra.mxu0 0.0
      %379 = vmatprep.subr.mxu0 0.0
      %380 = vmatpush1.msra.mxu0 0.0
      %381 = vmatprep.subr.mxu0 0.0
      %382 = vmatpush1.msra.mxu0 0.0
      %383 = vmatprep.subr.mxu0 0.0
      %384 = vmatpush1.msra.mxu0 0.0
      %385 = vmatprep.subr.mxu0 0.0
      %386 = vmatpush1.msra.mxu0 0.0
      %387 = vmatprep.subr.mxu0 0.0
      %388 = vmatpush1.msra.mxu0 0.0
      %389 = vmatprep.mubr.f32.mxu0 0.0
      %390 = vmatmul.mubr.f32.gmra.mrb[0].mxu0 %v290
      %v391 = vpop.f32.mrb[0].mxu0
      %v392 = vadd.f32 %v286, %v391
      %v393 = vpop.f32.mrb[0].mxu0
      %394 = vmatprep.mubr.f32.mxu0 0.0
      %395 = vmatmul.mubr.f32.gmra.mrb[0].mxu0 %v293
      %v396 = vpop.f32.mrb[0].mxu0
      %v397 = vadd.f32 %v286, %v396
      %v398 = vpop.f32.mrb[0].mxu0
      %399 = vmatprep.mubr.f32.mxu0 0.0
      %400 = vmatmul.mubr.f32.gmra.mrb[0].mxu0 %v296
      %v401 = vpop.f32.mrb[0].mxu0
      %v402 = vadd.f32 %v286, %v401
      %v403 = vpop.f32.mrb[0].mxu0
      %404 = vmatprep.mubr.f32.mxu0 0.0
      %405 = vmatmul.mubr.f32.gmra.mrb[0].mxu0 %v299
      %v406 = vpop.f32.mrb[0].mxu0
      %v407 = vadd.f32 %v286, %v406
      %v408 = vpop.f32.mrb[0].mxu0
      %409 = vmatprep.mubr.f32.mxu0 0.0
      %410 = vmatmul.mubr.f32.gmra.mrb[0].mxu0 %v302
      %v411 = vpop.f32.mrb[0].mxu0
      %v412 = vadd.f32 %v286, %v411
      %v413 = vpop.f32.mrb[0].mxu0
      %414 = vmatprep.mubr.f32.mxu0 0.0
      %415 = vmatmul.mubr.f32.gmra.mrb[0].mxu0 %v305
      %v416 = vpop.f32.mrb[0].mxu0
      %v417 = vadd.f32 %v286, %v416
      %v418 = vpop.f32.mrb[0].mxu0
      %419 = vmatprep.mubr.f32.mxu0 0.0
      %420 = vmatmul.mubr.f32.gmra.mrb[0].mxu0 %v308
      %v421 = vpop.f32.mrb[0].mxu0
      %v422 = vadd.f32 %v286, %v421
      %v423 = vpop.f32.mrb[0].mxu0
      %424 = vmatprep.mubr.f32.mxu0 0.0
      %425 = vmatmul.mubr.f32.gmra.mrb[0].mxu0 %v311
      %v426 = vpop.f32.mrb[0].mxu0
      %v427 = vadd.f32 %v286, %v426
      %v428 = vpop.f32.mrb[0].mxu0
      %429 = vmatprep.mubr.f32.mxu0 0.0
      %430 = vmatmul.mubr.f32.gmra.mrb[0].mxu0 %v314
      %v431 = vpop.f32.mrb[0].mxu0
      %v432 = vadd.f32 %v286, %v431
      %v433 = vpop.f32.mrb[0].mxu0
      %434 = vmatprep.mubr.f32.mxu0 0.0
      %435 = vmatmul.mubr.f32.gmra.mrb[0].mxu0 %v317
      %v436 = vpop.f32.mrb[0].mxu0
      %v437 = vadd.f32 %v286, %v436
      %v438 = vpop.f32.mrb[0].mxu0
      %439 = vmatprep.mubr.f32.mxu0 0.0
      %440 = vmatmul.mubr.f32.gmra.mrb[0].mxu0 %v320
      %v441 = vpop.f32.mrb[0].mxu0
      %v442 = vadd.f32 %v286, %v441
      %v443 = vpop.f32.mrb[0].mxu0
      %444 = vmatprep.mubr.f32.mxu0 0.0
      %445 = vmatmul.mubr.f32.gmra.mrb[0].mxu0 %v323
      %v446 = vpop.f32.mrb[0].mxu0
      %v447 = vadd.f32 %v286, %v446
      %v448 = vpop.f32.mrb[0].mxu0
      %449 = vdwg.mxu0
      %v450 = vld [vmem:[%s3] sm:$0xff]
      %v451 = vld [vmem:[%s3 + $0x8] sm:$0xff]
      %v452 = vld [vmem:[%s3 + $0x10] sm:$0xff]
      %v453 = vld [vmem:[%s3 + $0x18] sm:$0xff]
      %v454 = vld [vmem:[%s4] sm:$0x1]
      %v456 = vlaneseq
      %v457 = vshrl.u32 %v456, 7
      %v458 = vsub.s32 0, %v457
      %v459 = vrot.slane %v454, %v458
      %461 = vmatprep.subr.mxu0 0.0
      %462 = vmatpush1.msra.mxu0 %v450
      %463 = vmatprep.subr.mxu0 0.0
      %464 = vmatpush1.msra.mxu0 %v451
      %465 = vmatprep.subr.mxu0 0.0
      %466 = vmatpush1.msra.mxu0 %v452
      %467 = vmatprep.subr.mxu0 0.0
      %468 = vmatpush1.msra.mxu0 %v453
      %469 = vmatprep.subr.mxu0 0.0
      %470 = vmatpush1.msra.mxu0 0.0
      %471 = vmatprep.subr.mxu0 0.0
      %472 = vmatpush1.msra.mxu0 0.0
      %473 = vmatprep.subr.mxu0 0.0
      %474 = vmatpush1.msra.mxu0 0.0
      %475 = vmatprep.subr.mxu0 0.0
      %476 = vmatpush1.msra.mxu0 0.0
      %477 = vmatprep.subr.mxu0 0.0
      %478 = vmatpush1.msra.mxu0 0.0
      %479 = vmatprep.subr.mxu0 0.0
      %480 = vmatpush1.msra.mxu0 0.0
      %481 = vmatprep.subr.mxu0 0.0
      %482 = vmatpush1.msra.mxu0 0.0
      %483 = vmatprep.subr.mxu0 0.0
      %484 = vmatpush1.msra.mxu0 0.0
      %485 = vmatprep.subr.mxu0 0.0
      %486 = vmatpush1.msra.mxu0 0.0
      %487 = vmatprep.subr.mxu0 0.0
      %488 = vmatpush1.msra.mxu0 0.0
      %489 = vmatprep.subr.mxu0 0.0
      %490 = vmatpush1.msra.mxu0 0.0
      %491 = vmatprep.subr.mxu0 0.0
      %492 = vmatpush1.msra.mxu0 0.0
      %493 = vmatprep.subr.mxu0 0.0
      %494 = vmatpush1.msra.mxu0 0.0
      %495 = vmatprep.subr.mxu0 0.0
      %496 = vmatpush1.msra.mxu0 0.0
      %497 = vmatprep.subr.mxu0 0.0
      %498 = vmatpush1.msra.mxu0 0.0
      %499 = vmatprep.subr.mxu0 0.0
      %500 = vmatpush1.msra.mxu0 0.0
      %501 = vmatprep.subr.mxu0 0.0
      %502 = vmatpush1.msra.mxu0 0.0
      %503 = vmatprep.subr.mxu0 0.0
      %504 = vmatpush1.msra.mxu0 0.0
      %505 = vmatprep.subr.mxu0 0.0
      %506 = vmatpush1.msra.mxu0 0.0
      %507 = vmatprep.subr.mxu0 0.0
      %508 = vmatpush1.msra.mxu0 0.0
      %509 = vmatprep.subr.mxu0 0.0
      %510 = vmatpush1.msra.mxu0 0.0
      %511 = vmatprep.subr.mxu0 0.0
      %512 = vmatpush1.msra.mxu0 0.0
      %513 = vmatprep.subr.mxu0 0.0
      %514 = vmatpush1.msra.mxu0 0.0
      %515 = vmatprep.subr.mxu0 0.0
      %516 = vmatpush1.msra.mxu0 0.0
      %517 = vmatprep.subr.mxu0 0.0
      %518 = vmatpush1.msra.mxu0 0.0
      %519 = vmatprep.subr.mxu0 0.0
      %520 = vmatpush1.msra.mxu0 0.0
      %521 = vmatprep.subr.mxu0 0.0
      %522 = vmatpush1.msra.mxu0 0.0
      %523 = vmatprep.subr.mxu0 0.0
      %524 = vmatpush1.msra.mxu0 0.0
      %525 = vmatprep.mubr.f32.mxu0 0.0
      %526 = vmatmul.mubr.f32.gmra.mrb[0].mxu0 %v290
      %v527 = vpop.f32.mrb[0].mxu0
      %v528 = vadd.f32 %v459, %v527
      %v529 = vpop.f32.mrb[0].mxu0
      %530 = vmatprep.mubr.f32.mxu0 0.0
      %531 = vmatmul.mubr.f32.gmra.mrb[0].mxu0 %v293
      %v532 = vpop.f32.mrb[0].mxu0
      %v533 = vadd.f32 %v459, %v532
      %v534 = vpop.f32.mrb[0].mxu0
      %535 = vmatprep.mubr.f32.mxu0 0.0
      %536 = vmatmul.mubr.f32.gmra.mrb[0].mxu0 %v296
      %v537 = vpop.f32.mrb[0].mxu0
      %v538 = vadd.f32 %v459, %v537
      %v539 = vpop.f32.mrb[0].mxu0
      %540 = vmatprep.mubr.f32.mxu0 0.0
      %541 = vmatmul.mubr.f32.gmra.mrb[0].mxu0 %v299
      %v542 = vpop.f32.mrb[0].mxu0
      %v543 = vadd.f32 %v459, %v542
      %v544 = vpop.f32.mrb[0].mxu0
      %545 = vmatprep.mubr.f32.mxu0 0.0
      %546 = vmatmul.mubr.f32.gmra.mrb[0].mxu0 %v302
      %v547 = vpop.f32.mrb[0].mxu0
      %v548 = vadd.f32 %v459, %v547
      %v549 = vpop.f32.mrb[0].mxu0
      %550 = vmatprep.mubr.f32.mxu0 0.0
      %551 = vmatmul.mubr.f32.gmra.mrb[0].mxu0 %v305
      %v552 = vpop.f32.mrb[0].mxu0
      %v553 = vadd.f32 %v459, %v552
      %v554 = vpop.f32.mrb[0].mxu0
      %555 = vmatprep.mubr.f32.mxu0 0.0
      %556 = vmatmul.mubr.f32.gmra.mrb[0].mxu0 %v308
      %v557 = vpop.f32.mrb[0].mxu0
      %v558 = vadd.f32 %v459, %v557
      %v559 = vpop.f32.mrb[0].mxu0
      %560 = vmatprep.mubr.f32.mxu0 0.0
      %561 = vmatmul.mubr.f32.gmra.mrb[0].mxu0 %v311
      %v562 = vpop.f32.mrb[0].mxu0
      %v563 = vadd.f32 %v459, %v562
      %v564 = vpop.f32.mrb[0].mxu0
      %565 = vmatprep.mubr.f32.mxu0 0.0
      %566 = vmatmul.mubr.f32.gmra.mrb[0].mxu0 %v314
      %v567 = vpop.f32.mrb[0].mxu0
      %v568 = vadd.f32 %v459, %v567
      %v569 = vpop.f32.mrb[0].mxu0
      %570 = vmatprep.mubr.f32.mxu0 0.0
      %571 = vmatmul.mubr.f32.gmra.mrb[0].mxu0 %v317
      %v572 = vpop.f32.mrb[0].mxu0
      %v573 = vadd.f32 %v459, %v572
      %v574 = vpop.f32.mrb[0].mxu0
      %575 = vmatprep.mubr.f32.mxu0 0.0
      %576 = vmatmul.mubr.f32.gmra.mrb[0].mxu0 %v320
      %v577 = vpop.f32.mrb[0].mxu0
      %v578 = vadd.f32 %v459, %v577
      %v579 = vpop.f32.mrb[0].mxu0
      %580 = vmatprep.mubr.f32.mxu0 0.0
      %581 = vmatmul.mubr.f32.gmra.mrb[0].mxu0 %v323
      %v582 = vpop.f32.mrb[0].mxu0
      %v583 = vadd.f32 %v459, %v582
      %v584 = vpop.f32.mrb[0].mxu0
      %585 = vdwg.mxu0
      %586 = vst.msk [vmem:[%s259] sm:$0xff] %vm288, %v392
      %587 = vst.msk [vmem:[%s259 + $0x8] sm:$0xff] %vm288, %v397
      %588 = vst.msk [vmem:[%s259 + $0x10] sm:$0xff] %vm288, %v402
      %589 = vst.msk [vmem:[%s259 + $0x18] sm:$0xff] %vm288, %v407
      %590 = vst.msk [vmem:[%s259 + $0x20] sm:$0xff] %vm288, %v412
      %591 = vst.msk [vmem:[%s259 + $0x28] sm:$0xff] %vm288, %v417
      %592 = vst.msk [vmem:[%s259 + $0x30] sm:$0xff] %vm288, %v422
      %593 = vst.msk [vmem:[%s259 + $0x38] sm:$0xff] %vm288, %v427
      %594 = vst.msk [vmem:[%s259 + $0x40] sm:$0xff] %vm288, %v432
      %595 = vst.msk [vmem:[%s259 + $0x48] sm:$0xff] %vm288, %v437
      %596 = vst.msk [vmem:[%s259 + $0x50] sm:$0xff] %vm288, %v442
      %597 = vst.msk [vmem:[%s259 + $0x58] sm:$0xff] %vm288, %v447
      %598 = vst.msk [vmem:[%s264] sm:$0xff] %vm288, %v528
      %599 = vst.msk [vmem:[%s264 + $0x8] sm:$0xff] %vm288, %v533
      %600 = vst.msk [vmem:[%s264 + $0x10] sm:$0xff] %vm288, %v538
      %601 = vst.msk [vmem:[%s264 + $0x18] sm:$0xff] %vm288, %v543
      %602 = vst.msk [vmem:[%s264 + $0x20] sm:$0xff] %vm288, %v548
      %603 = vst.msk [vmem:[%s264 + $0x28] sm:$0xff] %vm288, %v553
      %604 = vst.msk [vmem:[%s264 + $0x30] sm:$0xff] %vm288, %v558
      %605 = vst.msk [vmem:[%s264 + $0x38] sm:$0xff] %vm288, %v563
      %606 = vst.msk [vmem:[%s264 + $0x40] sm:$0xff] %vm288, %v568
      %607 = vst.msk [vmem:[%s264 + $0x48] sm:$0xff] %vm288, %v573
      %608 = vst.msk [vmem:[%s264 + $0x50] sm:$0xff] %vm288, %v578
      %609 = vst.msk [vmem:[%s264 + $0x58] sm:$0xff] %vm288, %v583
      %p610 = scmp.lt.s32.totalorder %s18, 1
      %s611 = scalar_select %p610, %s18, 1
      %s612 = smul.addr %s611, 12
      %s613 = smul.addr %s612, 8
      %s614 = scalar_lea.vmem %s5, %s613
      %p615 = scmp.lt.s32.totalorder %s18, 1
      %s616 = scalar_select %p615, %s18, 1
      %s617 = smul.addr %s616, 12
      %s618 = smul.addr %s617, 8
      %s619 = scalar_lea.vmem %s6, %s618
      // Predicated region
      $region41: #{attentional_propagation.3} parent=39 // pred_check
        %p620 = pneg %p146
      $region42: #{attentional_propagation.3} parent=39 // pred_check_branch
        %622 = sbr.rel (%p620) target = $region44
      $region43: #{attentional_propagation.3} parent=39 // pred_region
        _
      $region44: #{attentional_propagation.3} parent=39 // pred_fallthru
        _
      // Predicated region
      $region45: #{attentional_propagation.3} parent=39 // pred_check
        %p623 = pneg %p172
      $region46: #{attentional_propagation.3} parent=39 // pred_check_branch
        %625 = sbr.rel (%p623) target = $region48
      $region47: #{attentional_propagation.3} parent=39 // pred_region
        _
      $region48: #{attentional_propagation.3} parent=39 // pred_fallthru
        _
    $region40: #{attentional_propagation.3} parent=5 // pred_fallthru
      _
    %p626 = scmp.le.s32.totalorder 2, %s13
    // Predicated region
    $region49: #{attentional_propagation.3} parent=5 // pred_check
      %p627 = pneg %p626
    $region50: #{attentional_propagation.3} parent=5 // pred_check_branch
      %629 = sbr.rel (%p627) target = $region52
    $region51: #{attentional_propagation.3} parent=5 // pred_region
      %s630 = ssub.s32 %s13, 2
      // Predicated region
      $region53: #{attentional_propagation.3} parent=51 // pred_check
        %p631 = pneg %p152
      $region54: #{attentional_propagation.3} parent=51 // pred_check_branch
        %633 = sbr.rel (%p631) target = $region56
      $region55: #{attentional_propagation.3} parent=51 // pred_region
        %p634 = scmp.lt.s32.totalorder %s19, 1
        %s635 = scalar_select %p634, %s19, 1
        %s636 = smul.addr %s635, 12
        %s637 = smul.addr %s636, 8
        %s638 = scalar_lea.vmem %s5, %s637
      $region56: #{attentional_propagation.3} parent=51 // pred_fallthru
        _
      // Predicated region
      $region57: #{attentional_propagation.3} parent=51 // pred_check
        %p639 = pneg %p178
      $region58: #{attentional_propagation.3} parent=51 // pred_check_branch
        %641 = sbr.rel (%p639) target = $region60
      $region59: #{attentional_propagation.3} parent=51 // pred_region
        %p642 = scmp.lt.s32.totalorder %s19, 1
        %s643 = scalar_select %p642, %s19, 1
        %s644 = smul.addr %s643, 12
        %s645 = smul.addr %s644, 8
        %s646 = scalar_lea.vmem %s6, %s645
      $region60: #{attentional_propagation.3} parent=51 // pred_fallthru
        _
    $region52: #{attentional_propagation.3} parent=5 // pred_fallthru
      _
  $region6: #{attentional_propagation.3} parent=0 // loop_footer
    %s17 = sadd.s32 1, %s13
  $region7: #{attentional_propagation.3} parent=0 // loop_footer_branch
    %12 = sbr.rel target = $region3
  $region8: #{attentional_propagation.3} parent=0 // loop_exit
    _

// kernel: attentional_propagation.5
$region0: #{attentional_propagation.5}
  #allocation0 [shape = 'u32[]', space=smem, size = 0x4, offset = 0x4, fixed_abs, tag = 'smem constant byte address 0x4 - core index']
  #allocation1 [shape = 'u32[144,128]{1,0:T(1,128)}', space=vmem, size = 0x12000, scoped, tag = 'internal scratch']
  %s0 = inlined_call_operand.vmem [shape: f32[2,128,64], index: 0, kind: input, shape index: {}]
  %s1 = inlined_call_operand.vmem [shape: f32[1,64], index: 1, kind: input, shape index: {}]
  %s2 = inlined_call_operand.vmem [shape: f32[1,64], index: 2, kind: input, shape index: {}]
  %s3 = inlined_call_operand.vmem [shape: f32[64,32], index: 3, kind: input, shape index: {}]
  %s4 = inlined_call_operand.vmem [shape: f32[1,32], index: 4, kind: input, shape index: {}]
  %s5 = inlined_call_operand.vmem [shape: f32[2,128,32], index: 5, kind: output, shape index: {}]
  %s6 = sld [smem:[#allocation0]]
  $region53: #{attentional_propagation.5} parent=0
    _
  %s8 = ssub.s32 1, %s6
  %s9 = scalar_select 0, %s8, %s6
  loop: start=0, step=1, limit=6
  $region2: #{attentional_propagation.5} parent=0 // loop_pre_header
    _
  $region3: #{attentional_propagation.5} parent=0 // loop_header
    %s11 = sphi 0, %s15
    %p12 = scmp.ge.s32.totalorder %s11, 6
    %s18 = sphi 0, %s30
    %s19 = sphi 0, %s26
    %s20 = sphi 0, %s18
    %s21 = sphi 0, %s19
    %s22 = sphi 0, %s20
    %s23 = sphi 0, %s21
    %s35 = sphi 0, %s37
    %s38 = sphi 0, %s35
    %s39 = sphi 0, %s38
    %s55 = sphi 0, %s39
    %s59 = sphi 0, %s59
    %s61 = sphi 0, %s59
    %s62 = sphi 0, %s61
    %s76 = sphi 0, %s62
    %s80 = sphi 0, %s80
    %s82 = sphi 0, %s80
    %s83 = sphi 0, %s82
    %s97 = sphi 0, %s83
    %s101 = sphi 0, %s101
    %s103 = sphi 0, %s101
    %s104 = sphi 0, %s103
    %s118 = sphi 0, %s104
    %s122 = sphi 0, %s122
    %s124 = sphi 0, %s122
    %s125 = sphi 0, %s124
    %s139 = sphi 0, %s125
    %s147 = sphi 0, %s149
    %s150 = sphi 0, %s147
    %s151 = sphi 0, %s150
    %s167 = sphi 0, %s151
  $region4: #{attentional_propagation.5} parent=0 // loop_header_branch
    %14 = sbr.rel (%p12) target = $region8
  $region5: #{attentional_propagation.5} parent=0 // loop_body
    %s16 = ssub.s32 %s11, 1
    %s17 = ssub.s32 %s11, 2
    %s24 = sadd.s32 1, %s19
    %p25 = scmp.ge.s32.totalorder %s24, 2
    %s26 = scalar_select %p25, 0, %s24
    %s27 = sadd.s32 1, %s18
    %s28 = scalar_select %p25, %s27, %s18
    %p29 = scmp.ge.s32.totalorder %s28, 2
    %s30 = scalar_select %p29, 0, %s28
    %s31 = ssub.s32 %s18, %s30
    %s32 = ssub.s32 %s19, %s26
    %s33 = sor.u32 %s31, %s32
    %p34 = scmp.eq.s32.totalorder %s33, 0
    %s36 = sadd.s32 %s35, 1
    %s37 = scalar_select %p34, %s35, %s36
    %p40 = pneg %p34
    %p41 = scmp.eq.s32.totalorder %s11, 3
    %p42 = por %p40, %p41
    %p43 = scmp.ne.s32.totalorder %s35, %s38
    %p44 = scmp.eq.s32.totalorder %s11, 0
    %p45 = por %p43, %p44
    %p46 = scmp.ne.s32.totalorder %s35, %s38
    %p47 = scmp.eq.s32.totalorder %s16, 3
    %p48 = por %p46, %p47
    %p49 = scmp.ne.s32.totalorder %s38, %s39
    %p50 = scmp.eq.s32.totalorder %s16, 0
    %p51 = por %p49, %p50
    %p52 = scmp.ne.s32.totalorder %s38, %s39
    %p53 = scmp.eq.s32.totalorder %s17, 3
    %p54 = por %p52, %p53
    %p56 = scmp.ne.s32.totalorder %s39, %s55
    %p57 = scmp.eq.s32.totalorder %s17, 0
    %p58 = por %p56, %p57
    %s60 = sadd.s32 %s59, 1
    %p63 = scmp.eq.s32.totalorder %s11, 3
    %p64 = scmp.ne.s32.totalorder %s59, %s61
    %p65 = scmp.eq.s32.totalorder %s11, 0
    %p66 = por %p64, %p65
    %p67 = scmp.ne.s32.totalorder %s59, %s61
    %p68 = scmp.eq.s32.totalorder %s16, 3
    %p69 = por %p67, %p68
    %p70 = scmp.ne.s32.totalorder %s61, %s62
    %p71 = scmp.eq.s32.totalorder %s16, 0
    %p72 = por %p70, %p71
    %p73 = scmp.ne.s32.totalorder %s61, %s62
    %p74 = scmp.eq.s32.totalorder %s17, 3
    %p75 = por %p73, %p74
    %p77 = scmp.ne.s32.totalorder %s62, %s76
    %p78 = scmp.eq.s32.totalorder %s17, 0
    %p79 = por %p77, %p78
    %s81 = sadd.s32 %s80, 1
    %p84 = scmp.eq.s32.totalorder %s11, 3
    %p85 = scmp.ne.s32.totalorder %s80, %s82
    %p86 = scmp.eq.s32.totalorder %s11, 0
    %p87 = por %p85, %p86
    %p88 = scmp.ne.s32.totalorder %s80, %s82
    %p89 = scmp.eq.s32.totalorder %s16, 3
    %p90 = por %p88, %p89
    %p91 = scmp.ne.s32.totalorder %s82, %s83
    %p92 = scmp.eq.s32.totalorder %s16, 0
    %p93 = por %p91, %p92
    %p94 = scmp.ne.s32.totalorder %s82, %s83
    %p95 = scmp.eq.s32.totalorder %s17, 3
    %p96 = por %p94, %p95
    %p98 = scmp.ne.s32.totalorder %s83, %s97
    %p99 = scmp.eq.s32.totalorder %s17, 0
    %p100 = por %p98, %p99
    %s102 = sadd.s32 %s101, 1
    %p105 = scmp.eq.s32.totalorder %s11, 3
    %p106 = scmp.ne.s32.totalorder %s101, %s103
    %p107 = scmp.eq.s32.totalorder %s11, 0
    %p108 = por %p106, %p107
    %p109 = scmp.ne.s32.totalorder %s101, %s103
    %p110 = scmp.eq.s32.totalorder %s16, 3
    %p111 = por %p109, %p110
    %p112 = scmp.ne.s32.totalorder %s103, %s104
    %p113 = scmp.eq.s32.totalorder %s16, 0
    %p114 = por %p112, %p113
    %p115 = scmp.ne.s32.totalorder %s103, %s104
    %p116 = scmp.eq.s32.totalorder %s17, 3
    %p117 = por %p115, %p116
    %p119 = scmp.ne.s32.totalorder %s104, %s118
    %p120 = scmp.eq.s32.totalorder %s17, 0
    %p121 = por %p119, %p120
    %s123 = sadd.s32 %s122, 1
    %p126 = scmp.eq.s32.totalorder %s11, 3
    %p127 = scmp.ne.s32.totalorder %s122, %s124
    %p128 = scmp.eq.s32.totalorder %s11, 0
    %p129 = por %p127, %p128
    %p130 = scmp.ne.s32.totalorder %s122, %s124
    %p131 = scmp.eq.s32.totalorder %s16, 3
    %p132 = por %p130, %p131
    %p133 = scmp.ne.s32.totalorder %s124, %s125
    %p134 = scmp.eq.s32.totalorder %s16, 0
    %p135 = por %p133, %p134
    %p136 = scmp.ne.s32.totalorder %s124, %s125
    %p137 = scmp.eq.s32.totalorder %s17, 3
    %p138 = por %p136, %p137
    %p140 = scmp.ne.s32.totalorder %s125, %s139
    %p141 = scmp.eq.s32.totalorder %s17, 0
    %p142 = por %p140, %p141
    %s143 = ssub.s32 %s18, %s30
    %s144 = ssub.s32 %s19, %s26
    %s145 = sor.u32 %s143, %s144
    %p146 = scmp.eq.s32.totalorder %s145, 0
    %s148 = sadd.s32 %s147, 1
    %s149 = scalar_select %p146, %s147, %s148
    %p152 = pneg %p146
    %p153 = scmp.eq.s32.totalorder %s11, 3
    %p154 = por %p152, %p153
    %p155 = scmp.ne.s32.totalorder %s147, %s150
    %p156 = scmp.eq.s32.totalorder %s11, 0
    %p157 = por %p155, %p156
    %p158 = scmp.ne.s32.totalorder %s147, %s150
    %p159 = scmp.eq.s32.totalorder %s16, 3
    %p160 = por %p158, %p159
    %p161 = scmp.ne.s32.totalorder %s150, %s151
    %p162 = scmp.eq.s32.totalorder %s16, 0
    %p163 = por %p161, %p162
    %p164 = scmp.ne.s32.totalorder %s150, %s151
    %p165 = scmp.eq.s32.totalorder %s17, 3
    %p166 = por %p164, %p165
    %p168 = scmp.ne.s32.totalorder %s151, %s167
    %p169 = scmp.eq.s32.totalorder %s17, 0
    %p170 = por %p168, %p169
    %p171 = scmp.le.s32.totalorder 1, %s11
    %p172 = scmp.lt.s32.totalorder %s11, 5
    %p173 = pnand %p171, %p172
    %p174 = pneg %p173
    // Predicated region
    $region9: #{attentional_propagation.5} parent=5 // pred_check
      _
    $region10: #{attentional_propagation.5} parent=5 // pred_check_branch
      %176 = sbr.rel (%p173) target = $region12
    $region11: #{attentional_propagation.5} parent=5 // pred_region
      %s177 = ssub.s32 %s11, 1
      // Predicated region
      $region13: #{attentional_propagation.5} parent=11 // pred_check
        %p178 = pneg %p72
      $region14: #{attentional_propagation.5} parent=11 // pred_check_branch
        %180 = sbr.rel (%p178) target = $region16
      $region15: #{attentional_propagation.5} parent=11 // pred_region
        _
      $region16: #{attentional_propagation.5} parent=11 // pred_fallthru
        _
      // Predicated region
      $region17: #{attentional_propagation.5} parent=11 // pred_check
        %p181 = pneg %p93
      $region18: #{attentional_propagation.5} parent=11 // pred_check_branch
        %183 = sbr.rel (%p181) target = $region20
      $region19: #{attentional_propagation.5} parent=11 // pred_region
        _
      $region20: #{attentional_propagation.5} parent=11 // pred_fallthru
        _
      // Predicated region
      $region21: #{attentional_propagation.5} parent=11 // pred_check
        %p184 = pneg %p114
      $region22: #{attentional_propagation.5} parent=11 // pred_check_branch
        %186 = sbr.rel (%p184) target = $region24
      $region23: #{attentional_propagation.5} parent=11 // pred_region
        _
      $region24: #{attentional_propagation.5} parent=11 // pred_fallthru
        _
      // Predicated region
      $region25: #{attentional_propagation.5} parent=11 // pred_check
        %p187 = pneg %p135
      $region26: #{attentional_propagation.5} parent=11 // pred_check_branch
        %189 = sbr.rel (%p187) target = $region28
      $region27: #{attentional_propagation.5} parent=11 // pred_region
        _
      $region28: #{attentional_propagation.5} parent=11 // pred_fallthru
        _
    $region12: #{attentional_propagation.5} parent=5 // pred_fallthru
      _
    %p190 = scmp.lt.s32.totalorder %s11, 4
    // Predicated region
    $region29: #{attentional_propagation.5} parent=5 // pred_check
      %p191 = pneg %p190
    $region30: #{attentional_propagation.5} parent=5 // pred_check_branch
      %193 = sbr.rel (%p191) target = $region32
    $region31: #{attentional_propagation.5} parent=5 // pred_region
      // Predicated region
      $region33: #{attentional_propagation.5} parent=31 // pred_check
        %p194 = pneg %p45
      $region34: #{attentional_propagation.5} parent=31 // pred_check_branch
        %196 = sbr.rel (%p194) target = $region36
      $region35: #{attentional_propagation.5} parent=31 // pred_region
        %s197 = smul.u32 8, %s19
        %p198 = scmp.lt.s32.totalorder %s18, 1
        %s199 = scalar_select %p198, %s18, 1
        %p200 = scmp.lt.s32.totalorder %s197, 15
        %s201 = scalar_select %p200, %s197, 15
        %s202 = smul.addr %s199, 16
        %s203 = sadd.s32 %s201, %s202
        %s204 = smul.addr %s203, 8
        %s205 = scalar_lea.vmem %s0, %s204
        %s206 = smul.u32 8, %s19
      $region36: #{attentional_propagation.5} parent=31 // pred_fallthru
        _
    $region32: #{attentional_propagation.5} parent=5 // pred_fallthru
      _
    %p207 = scmp.le.s32.totalorder 1, %s11
    %p208 = scmp.lt.s32.totalorder %s11, 5
    %p209 = pnand %p207, %p208
    %p210 = pneg %p209
    // Predicated region
    $region37: #{attentional_propagation.5} parent=5 // pred_check
      _
    $region38: #{attentional_propagation.5} parent=5 // pred_check_branch
      %212 = sbr.rel (%p209) target = $region40
    $region39: #{attentional_propagation.5} parent=5 // pred_region
      %s213 = ssub.s32 %s11, 1
      %s214 = smul.u32 8, %s21
      %p215 = scmp.lt.s32.totalorder %s20, 1
      %s216 = scalar_select %p215, %s20, 1
      %p217 = scmp.lt.s32.totalorder %s214, 15
      %s218 = scalar_select %p217, %s214, 15
      %s219 = smul.addr %s216, 16
      %s220 = sadd.s32 %s218, %s219
      %s221 = smul.addr %s220, 8
      %s222 = scalar_lea.vmem %s0, %s221
      %p223 = pneg %p51
      %p224 = pneg %p48
      %p225 = pneg %p72
      %p226 = pneg %p69
      %p227 = pneg %p93
      %p228 = pneg %p90
      %p229 = pneg %p114
      %p230 = pneg %p111
      %p231 = pneg %p135
      %p232 = pneg %p132
      %p233 = pneg %p163
      %p234 = pneg %p160
      %s235 = smul.u32 8, %s21
      %p236 = scmp.lt.s32.totalorder %s20, 1
      %s237 = scalar_select %p236, %s20, 1
      %p238 = scmp.lt.s32.totalorder %s235, 15
      %s239 = scalar_select %p238, %s235, 15
      %s240 = smul.addr %s237, 16
      %s241 = sadd.s32 %s239, %s240
      %s242 = smul.addr %s241, 8
      %s243 = scalar_lea.vmem %s5, %s242
      %s244 = smul.u32 8, %s21
      %p245 = scmp.lt.s32.totalorder %s20, 1
      %s246 = scalar_select %p245, %s20, 1
      %p247 = scmp.lt.s32.totalorder %s244, 15
      %s248 = scalar_select %p247, %s244, 15
      %s249 = smul.addr %s246, 16
      %s250 = sadd.s32 %s248, %s249
      %s251 = smul.addr %s250, 8
      %s252 = scalar_lea.vmem %s0, %s251
      %s253 = smul.u32 8, %s21
      %s254 = smul.u32 8, %s21
      %p255 = scmp.lt.s32.totalorder %s20, 1
      %s256 = scalar_select %p255, %s20, 1
      %p257 = scmp.lt.s32.totalorder %s254, 15
      %s258 = scalar_select %p257, %s254, 15
      %s259 = smul.addr %s256, 16
      %s260 = sadd.s32 %s258, %s259
      %s261 = smul.addr %s260, 8
      %s262 = scalar_lea.vmem %s5, %s261
      %s263 = smul.u32 8, %s21
      %v264 = vld [vmem:[%s252] sm:$0xff]
      %v265 = vld [vmem:[%s252 + $0x8] sm:$0xff]
      %v266 = vld [vmem:[%s252 + $0x10] sm:$0xff]
      %v267 = vld [vmem:[%s252 + $0x18] sm:$0xff]
      %v268 = vld [vmem:[%s252 + $0x20] sm:$0xff]
      %v269 = vld [vmem:[%s252 + $0x28] sm:$0xff]
      %v270 = vld [vmem:[%s252 + $0x30] sm:$0xff]
      %v271 = vld [vmem:[%s252 + $0x38] sm:$0xff]
      %v272 = vld [vmem:[%s1] sm:$0x1]
      %v274 = vlaneseq
      %v275 = vshrl.u32 %v274, 7
      %v276 = vsub.s32 0, %v275
      %v277 = vrot.slane %v272, %v276
      %v279 = vmul.f32 %v264, %v277
      %v280 = vmul.f32 %v265, %v277
      %v281 = vmul.f32 %v266, %v277
      %v282 = vmul.f32 %v267, %v277
      %v283 = vmul.f32 %v268, %v277
      %v284 = vmul.f32 %v269, %v277
      %v285 = vmul.f32 %v270, %v277
      %v286 = vmul.f32 %v271, %v277
      %v287 = vld [vmem:[%s2] sm:$0x1]
      %v289 = vlaneseq
      %v290 = vshrl.u32 %v289, 7
      %v291 = vsub.s32 0, %v290
      %v292 = vrot.slane %v287, %v291
      %v294 = vadd.f32 %v279, %v292
      %v295 = vadd.f32 %v280, %v292
      %v296 = vadd.f32 %v281, %v292
      %v297 = vadd.f32 %v282, %v292
      %v298 = vadd.f32 %v283, %v292
      %v299 = vadd.f32 %v284, %v292
      %v300 = vadd.f32 %v285, %v292
      %v301 = vadd.f32 %v286, %v292
      %v302 = vmax.f32 %v294, 0.0
      %v303 = vmax.f32 %v295, 0.0
      %v304 = vmax.f32 %v296, 0.0
      %v305 = vmax.f32 %v297, 0.0
      %v306 = vmax.f32 %v298, 0.0
      %v307 = vmax.f32 %v299, 0.0
      %v308 = vmax.f32 %v300, 0.0
      %v309 = vmax.f32 %v301, 0.0
      %v310 = vld [vmem:[%s3] sm:$0xff]
      %v311 = vld [vmem:[%s3 + $0x8] sm:$0xff]
      %v312 = vld [vmem:[%s3 + $0x10] sm:$0xff]
      %v313 = vld [vmem:[%s3 + $0x18] sm:$0xff]
      %v314 = vld [vmem:[%s3 + $0x20] sm:$0xff]
      %v315 = vld [vmem:[%s3 + $0x28] sm:$0xff]
      %v316 = vld [vmem:[%s3 + $0x30] sm:$0xff]
      %v317 = vld [vmem:[%s3 + $0x38] sm:$0xff]
      %v318 = vld [vmem:[%s4] sm:$0x1]
      %v320 = vlaneseq
      %v321 = vshrl.u32 %v320, 7
      %v322 = vsub.s32 0, %v321
      %v323 = vrot.slane %v318, %v322
      %vm325 = vcmask 523264
      %v327 = vsel %vm325, %v302, 0
      %v330 = vsel %vm325, %v303, 0
      %v333 = vsel %vm325, %v304, 0
      %v336 = vsel %vm325, %v305, 0
      %v339 = vsel %vm325, %v306, 0
      %v342 = vsel %vm325, %v307, 0
      %v345 = vsel %vm325, %v308, 0
      %v348 = vsel %vm325, %v309, 0
      %350 = vmatprep.subr.mxu0 0.0
      %351 = vmatpush1.msra.mxu0 %v310
      %352 = vmatprep.subr.mxu0 0.0
      %353 = vmatpush1.msra.mxu0 %v311
      %354 = vmatprep.subr.mxu0 0.0
      %355 = vmatpush1.msra.mxu0 %v312
      %356 = vmatprep.subr.mxu0 0.0
      %357 = vmatpush1.msra.mxu0 %v313
      %358 = vmatprep.subr.mxu0 0.0
      %359 = vmatpush1.msra.mxu0 %v314
      %360 = vmatprep.subr.mxu0 0.0
      %361 = vmatpush1.msra.mxu0 %v315
      %362 = vmatprep.subr.mxu0 0.0
      %363 = vmatpush1.msra.mxu0 %v316
      %364 = vmatprep.subr.mxu0 0.0
      %365 = vmatpush1.msra.mxu0 %v317
      %366 = vmatprep.subr.mxu0 0.0
      %367 = vmatpush1.msra.mxu0 0.0
      %368 = vmatprep.subr.mxu0 0.0
      %369 = vmatpush1.msra.mxu0 0.0
      %370 = vmatprep.subr.mxu0 0.0
      %371 = vmatpush1.msra.mxu0 0.0
      %372 = vmatprep.subr.mxu0 0.0
      %373 = vmatpush1.msra.mxu0 0.0
      %374 = vmatprep.subr.mxu0 0.0
      %375 = vmatpush1.msra.mxu0 0.0
      %376 = vmatprep.subr.mxu0 0.0
      %377 = vmatpush1.msra.mxu0 0.0
      %378 = vmatprep.subr.mxu0 0.0
      %379 = vmatpush1.msra.mxu0 0.0
      %380 = vmatprep.subr.mxu0 0.0
      %381 = vmatpush1.msra.mxu0 0.0
      %382 = vmatprep.subr.mxu0 0.0
      %383 = vmatpush1.msra.mxu0 0.0
      %384 = vmatprep.subr.mxu0 0.0
      %385 = vmatpush1.msra.mxu0 0.0
      %386 = vmatprep.subr.mxu0 0.0
      %387 = vmatpush1.msra.mxu0 0.0
      %388 = vmatprep.subr.mxu0 0.0
      %389 = vmatpush1.msra.mxu0 0.0
      %390 = vmatprep.subr.mxu0 0.0
      %391 = vmatpush1.msra.mxu0 0.0
      %392 = vmatprep.subr.mxu0 0.0
      %393 = vmatpush1.msra.mxu0 0.0
      %394 = vmatprep.subr.mxu0 0.0
      %395 = vmatpush1.msra.mxu0 0.0
      %396 = vmatprep.subr.mxu0 0.0
      %397 = vmatpush1.msra.mxu0 0.0
      %398 = vmatprep.subr.mxu0 0.0
      %399 = vmatpush1.msra.mxu0 0.0
      %400 = vmatprep.subr.mxu0 0.0
      %401 = vmatpush1.msra.mxu0 0.0
      %402 = vmatprep.subr.mxu0 0.0
      %403 = vmatpush1.msra.mxu0 0.0
      %404 = vmatprep.subr.mxu0 0.0
      %405 = vmatpush1.msra.mxu0 0.0
      %406 = vmatprep.subr.mxu0 0.0
      %407 = vmatpush1.msra.mxu0 0.0
      %408 = vmatprep.subr.mxu0 0.0
      %409 = vmatpush1.msra.mxu0 0.0
      %410 = vmatprep.subr.mxu0 0.0
      %411 = vmatpush1.msra.mxu0 0.0
      %412 = vmatprep.subr.mxu0 0.0
      %413 = vmatpush1.msra.mxu0 0.0
      %414 = vmatprep.mubr.f32.mxu0 0.0
      %415 = vmatmul.mubr.f32.gmra.mrb[0].mxu0 %v327
      %v416 = vpop.f32.mrb[0].mxu0
      %v417 = vadd.f32 %v323, %v416
      %v418 = vpop.f32.mrb[0].mxu0
      %419 = vmatprep.mubr.f32.mxu0 0.0
      %420 = vmatmul.mubr.f32.gmra.mrb[0].mxu0 %v330
      %v421 = vpop.f32.mrb[0].mxu0
      %v422 = vadd.f32 %v323, %v421
      %v423 = vpop.f32.mrb[0].mxu0
      %424 = vmatprep.mubr.f32.mxu0 0.0
      %425 = vmatmul.mubr.f32.gmra.mrb[0].mxu0 %v333
      %v426 = vpop.f32.mrb[0].mxu0
      %v427 = vadd.f32 %v323, %v426
      %v428 = vpop.f32.mrb[0].mxu0
      %429 = vmatprep.mubr.f32.mxu0 0.0
      %430 = vmatmul.mubr.f32.gmra.mrb[0].mxu0 %v336
      %v431 = vpop.f32.mrb[0].mxu0
      %v432 = vadd.f32 %v323, %v431
      %v433 = vpop.f32.mrb[0].mxu0
      %434 = vmatprep.mubr.f32.mxu0 0.0
      %435 = vmatmul.mubr.f32.gmra.mrb[0].mxu0 %v339
      %v436 = vpop.f32.mrb[0].mxu0
      %v437 = vadd.f32 %v323, %v436
      %v438 = vpop.f32.mrb[0].mxu0
      %439 = vmatprep.mubr.f32.mxu0 0.0
      %440 = vmatmul.mubr.f32.gmra.mrb[0].mxu0 %v342
      %v441 = vpop.f32.mrb[0].mxu0
      %v442 = vadd.f32 %v323, %v441
      %v443 = vpop.f32.mrb[0].mxu0
      %444 = vmatprep.mubr.f32.mxu0 0.0
      %445 = vmatmul.mubr.f32.gmra.mrb[0].mxu0 %v345
      %v446 = vpop.f32.mrb[0].mxu0
      %v447 = vadd.f32 %v323, %v446
      %v448 = vpop.f32.mrb[0].mxu0
      %449 = vmatprep.mubr.f32.mxu0 0.0
      %450 = vmatmul.mubr.f32.gmra.mrb[0].mxu0 %v348
      %v451 = vpop.f32.mrb[0].mxu0
      %v452 = vadd.f32 %v323, %v451
      %v453 = vpop.f32.mrb[0].mxu0
      %454 = vdwg.mxu0
      %vm455 = vcmask 261120
      %456 = vst.msk [vmem:[%s262] sm:$0xff] %vm455, %v417
      %457 = vst.msk [vmem:[%s262 + $0x8] sm:$0xff] %vm455, %v422
      %458 = vst.msk [vmem:[%s262 + $0x10] sm:$0xff] %vm455, %v427
      %459 = vst.msk [vmem:[%s262 + $0x18] sm:$0xff] %vm455, %v432
      %460 = vst.msk [vmem:[%s262 + $0x20] sm:$0xff] %vm455, %v437
      %461 = vst.msk [vmem:[%s262 + $0x28] sm:$0xff] %vm455, %v442
      %462 = vst.msk [vmem:[%s262 + $0x30] sm:$0xff] %vm455, %v447
      %463 = vst.msk [vmem:[%s262 + $0x38] sm:$0xff] %vm455, %v452
      %s464 = smul.u32 8, %s21
      %p465 = scmp.lt.s32.totalorder %s20, 1
      %s466 = scalar_select %p465, %s20, 1
      %p467 = scmp.lt.s32.totalorder %s464, 15
      %s468 = scalar_select %p467, %s464, 15
      %s469 = smul.addr %s466, 16
      %s470 = sadd.s32 %s468, %s469
      %s471 = smul.addr %s470, 8
      %s472 = scalar_lea.vmem %s5, %s471
      // Predicated region
      $region41: #{attentional_propagation.5} parent=39 // pred_check
        %p473 = pneg %p160
      $region42: #{attentional_propagation.5} parent=39 // pred_check_branch
        %475 = sbr.rel (%p473) target = $region44
      $region43: #{attentional_propagation.5} parent=39 // pred_region
        %s476 = smul.u32 8, %s21
      $region44: #{attentional_propagation.5} parent=39 // pred_fallthru
        _
    $region40: #{attentional_propagation.5} parent=5 // pred_fallthru
      _
    %p477 = scmp.le.s32.totalorder 2, %s11
    // Predicated region
    $region45: #{attentional_propagation.5} parent=5 // pred_check
      %p478 = pneg %p477
    $region46: #{attentional_propagation.5} parent=5 // pred_check_branch
      %480 = sbr.rel (%p478) target = $region48
    $region47: #{attentional_propagation.5} parent=5 // pred_region
      %s481 = ssub.s32 %s11, 2
      // Predicated region
      $region49: #{attentional_propagation.5} parent=47 // pred_check
        %p482 = pneg %p166
      $region50: #{attentional_propagation.5} parent=47 // pred_check_branch
        %484 = sbr.rel (%p482) target = $region52
      $region51: #{attentional_propagation.5} parent=47 // pred_region
        %s485 = smul.u32 8, %s23
        %p486 = scmp.lt.s32.totalorder %s22, 1
        %s487 = scalar_select %p486, %s22, 1
        %p488 = scmp.lt.s32.totalorder %s485, 15
        %s489 = scalar_select %p488, %s485, 15
        %s490 = smul.addr %s487, 16
        %s491 = sadd.s32 %s489, %s490
        %s492 = smul.addr %s491, 8
        %s493 = scalar_lea.vmem %s5, %s492
      $region52: #{attentional_propagation.5} parent=47 // pred_fallthru
        _
    $region48: #{attentional_propagation.5} parent=5 // pred_fallthru
      _
  $region6: #{attentional_propagation.5} parent=0 // loop_footer
    %s15 = sadd.s32 1, %s11
  $region7: #{attentional_propagation.5} parent=0 // loop_footer_branch
    %10 = sbr.rel target = $region3
  $region8: #{attentional_propagation.5} parent=0 // loop_exit
    _

// kernel: attentional_propagation.4
$region0: #{attentional_propagation.4}
  #allocation0 [shape = 'u32[]', space=smem, size = 0x4, offset = 0x4, fixed_abs, tag = 'smem constant byte address 0x4 - core index']
  #allocation1 [shape = 'u32[144,128]{1,0:T(1,128)}', space=vmem, size = 0x12000, scoped, tag = 'internal scratch']
  #allocation2 [shape = 'f32[64,32]{1,0:T(8,128)}', space=vmem, size = 0x8000, scoped, tag = 'scratch operand']
  %s0 = inlined_call_operand.vmem [shape: f32[2,128,32], index: 0, kind: input, shape index: {}]
  %s1 = inlined_call_operand.vmem [shape: f32[2,96,32], index: 1, kind: input, shape index: {}]
  %s2 = inlined_call_operand.vmem [shape: f32[2,96,32], index: 2, kind: input, shape index: {}]
  %s3 = inlined_call_operand.vmem [shape: f32[32,32], index: 3, kind: input, shape index: {}]
  %s4 = inlined_call_operand.vmem [shape: f32[1,32], index: 4, kind: input, shape index: {}]
  %s5 = inlined_call_operand.vmem [shape: f32[32,32], index: 5, kind: input, shape index: {}]
  %s6 = inlined_call_operand.vmem [shape: f32[1,32], index: 6, kind: input, shape index: {}]
  %s7 = inlined_call_operand.vmem [shape: f32[32,64], index: 7, kind: input, shape index: {}]
  %s8 = inlined_call_operand.vmem [shape: f32[32,64], index: 8, kind: input, shape index: {}]
  %s9 = inlined_call_operand.vmem [shape: f32[1,64], index: 9, kind: input, shape index: {}]
  %s10 = inlined_call_operand.vmem [shape: f32[2,128,64], index: 10, kind: output, shape index: {0}]
  %s11 = inlined_call_operand.vmem [shape: f32[2,2,2,64], index: 11, kind: output, shape index: {1}]
  %12 = xla_tuple %s10, %s11
  %s13 = sld [smem:[#allocation0]]
  $region81: #{attentional_propagation.4} parent=0
    _
  %s15 = ssub.s32 1, %s13
  %s16 = scalar_select 0, %s15, %s13
  loop: start=0, step=1, limit=6
  $region2: #{attentional_propagation.4} parent=0 // loop_pre_header
    _
  $region3: #{attentional_propagation.4} parent=0 // loop_header
    %s18 = sphi 0, %s22
    %p19 = scmp.ge.s32.totalorder %s18, 6
    %s25 = sphi 0, %s37
    %s26 = sphi 0, %s33
    %s27 = sphi 0, %s25
    %s28 = sphi 0, %s26
    %s29 = sphi 0, %s27
    %s30 = sphi 0, %s28
    %s42 = sphi 0, %s44
    %s45 = sphi 0, %s42
    %s46 = sphi 0, %s45
    %s62 = sphi 0, %s46
    %s68 = sphi 0, %s70
    %s71 = sphi 0, %s68
    %s72 = sphi 0, %s71
    %s88 = sphi 0, %s72
    %s94 = sphi 0, %s96
    %s97 = sphi 0, %s94
    %s98 = sphi 0, %s97
    %s114 = sphi 0, %s98
    %s118 = sphi 0, %s118
    %s120 = sphi 0, %s118
    %s121 = sphi 0, %s120
    %s135 = sphi 0, %s121
    %s139 = sphi 0, %s139
    %s141 = sphi 0, %s139
    %s142 = sphi 0, %s141
    %s156 = sphi 0, %s142
    %s160 = sphi 0, %s160
    %s162 = sphi 0, %s160
    %s163 = sphi 0, %s162
    %s177 = sphi 0, %s163
    %s181 = sphi 0, %s181
    %s183 = sphi 0, %s181
    %s184 = sphi 0, %s183
    %s198 = sphi 0, %s184
    %s202 = sphi 0, %s202
    %s204 = sphi 0, %s202
    %s205 = sphi 0, %s204
    %s219 = sphi 0, %s205
    %s223 = sphi 0, %s223
    %s225 = sphi 0, %s223
    %s226 = sphi 0, %s225
    %s240 = sphi 0, %s226
    %s244 = sphi 0, %s244
    %s246 = sphi 0, %s244
    %s247 = sphi 0, %s246
    %s261 = sphi 0, %s247
    %s269 = sphi 0, %s271
    %s272 = sphi 0, %s269
    %s273 = sphi 0, %s272
    %s289 = sphi 0, %s273
    %s297 = sphi 0, %s299
    %s300 = sphi 0, %s297
    %s301 = sphi 0, %s300
    %s317 = sphi 0, %s301
  $region4: #{attentional_propagation.4} parent=0 // loop_header_branch
    %21 = sbr.rel (%p19) target = $region8
  $region5: #{attentional_propagation.4} parent=0 // loop_body
    %s23 = ssub.s32 %s18, 1
    %s24 = ssub.s32 %s18, 2
    %s31 = sadd.s32 1, %s26
    %p32 = scmp.ge.s32.totalorder %s31, 2
    %s33 = scalar_select %p32, 0, %s31
    %s34 = sadd.s32 1, %s25
    %s35 = scalar_select %p32, %s34, %s25
    %p36 = scmp.ge.s32.totalorder %s35, 2
    %s37 = scalar_select %p36, 0, %s35
    %s38 = ssub.s32 %s25, %s37
    %s39 = ssub.s32 %s26, %s33
    %s40 = sor.u32 %s38, %s39
    %p41 = scmp.eq.s32.totalorder %s40, 0
    %s43 = sadd.s32 %s42, 1
    %s44 = scalar_select %p41, %s42, %s43
    %p47 = pneg %p41
    %p48 = scmp.eq.s32.totalorder %s18, 3
    %p49 = por %p47, %p48
    %p50 = scmp.ne.s32.totalorder %s42, %s45
    %p51 = scmp.eq.s32.totalorder %s18, 0
    %p52 = por %p50, %p51
    %p53 = scmp.ne.s32.totalorder %s42, %s45
    %p54 = scmp.eq.s32.totalorder %s23, 3
    %p55 = por %p53, %p54
    %p56 = scmp.ne.s32.totalorder %s45, %s46
    %p57 = scmp.eq.s32.totalorder %s23, 0
    %p58 = por %p56, %p57
    %p59 = scmp.ne.s32.totalorder %s45, %s46
    %p60 = scmp.eq.s32.totalorder %s24, 3
    %p61 = por %p59, %p60
    %p63 = scmp.ne.s32.totalorder %s46, %s62
    %p64 = scmp.eq.s32.totalorder %s24, 0
    %p65 = por %p63, %p64
    %s66 = ssub.s32 %s25, %s37
    %p67 = scmp.eq.s32.totalorder %s66, 0
    %s69 = sadd.s32 %s68, 1
    %s70 = scalar_select %p67, %s68, %s69
    %p73 = pneg %p67
    %p74 = scmp.eq.s32.totalorder %s18, 3
    %p75 = por %p73, %p74
    %p76 = scmp.ne.s32.totalorder %s68, %s71
    %p77 = scmp.eq.s32.totalorder %s18, 0
    %p78 = por %p76, %p77
    %p79 = scmp.ne.s32.totalorder %s68, %s71
    %p80 = scmp.eq.s32.totalorder %s23, 3
    %p81 = por %p79, %p80
    %p82 = scmp.ne.s32.totalorder %s71, %s72
    %p83 = scmp.eq.s32.totalorder %s23, 0
    %p84 = por %p82, %p83
    %p85 = scmp.ne.s32.totalorder %s71, %s72
    %p86 = scmp.eq.s32.totalorder %s24, 3
    %p87 = por %p85, %p86
    %p89 = scmp.ne.s32.totalorder %s72, %s88
    %p90 = scmp.eq.s32.totalorder %s24, 0
    %p91 = por %p89, %p90
    %s92 = ssub.s32 %s25, %s37
    %p93 = scmp.eq.s32.totalorder %s92, 0
    %s95 = sadd.s32 %s94, 1
    %s96 = scalar_select %p93, %s94, %s95
    %p99 = pneg %p93
    %p100 = scmp.eq.s32.totalorder %s18, 3
    %p101 = por %p99, %p100
    %p102 = scmp.ne.s32.totalorder %s94, %s97
    %p103 = scmp.eq.s32.totalorder %s18, 0
    %p104 = por %p102, %p103
    %p105 = scmp.ne.s32.totalorder %s94, %s97
    %p106 = scmp.eq.s32.totalorder %s23, 3
    %p107 = por %p105, %p106
    %p108 = scmp.ne.s32.totalorder %s97, %s98
    %p109 = scmp.eq.s32.totalorder %s23, 0
    %p110 = por %p108, %p109
    %p111 = scmp.ne.s32.totalorder %s97, %s98
    %p112 = scmp.eq.s32.totalorder %s24, 3
    %p113 = por %p111, %p112
    %p115 = scmp.ne.s32.totalorder %s98, %s114
    %p116 = scmp.eq.s32.totalorder %s24, 0
    %p117 = por %p115, %p116
    %s119 = sadd.s32 %s118, 1
    %p122 = scmp.eq.s32.totalorder %s18, 3
    %p123 = scmp.ne.s32.totalorder %s118, %s120
    %p124 = scmp.eq.s32.totalorder %s18, 0
    %p125 = por %p123, %p124
    %p126 = scmp.ne.s32.totalorder %s118, %s120
    %p127 = scmp.eq.s32.totalorder %s23, 3
    %p128 = por %p126, %p127
    %p129 = scmp.ne.s32.totalorder %s120, %s121
    %p130 = scmp.eq.s32.totalorder %s23, 0
    %p131 = por %p129, %p130
    %p132 = scmp.ne.s32.totalorder %s120, %s121
    %p133 = scmp.eq.s32.totalorder %s24, 3
    %p134 = por %p132, %p133
    %p136 = scmp.ne.s32.totalorder %s121, %s135
    %p137 = scmp.eq.s32.totalorder %s24, 0
    %p138 = por %p136, %p137
    %s140 = sadd.s32 %s139, 1
    %p143 = scmp.eq.s32.totalorder %s18, 3
    %p144 = scmp.ne.s32.totalorder %s139, %s141
    %p145 = scmp.eq.s32.totalorder %s18, 0
    %p146 = por %p144, %p145
    %p147 = scmp.ne.s32.totalorder %s139, %s141
    %p148 = scmp.eq.s32.totalorder %s23, 3
    %p149 = por %p147, %p148
    %p150 = scmp.ne.s32.totalorder %s141, %s142
    %p151 = scmp.eq.s32.totalorder %s23, 0
    %p152 = por %p150, %p151
    %p153 = scmp.ne.s32.totalorder %s141, %s142
    %p154 = scmp.eq.s32.totalorder %s24, 3
    %p155 = por %p153, %p154
    %p157 = scmp.ne.s32.totalorder %s142, %s156
    %p158 = scmp.eq.s32.totalorder %s24, 0
    %p159 = por %p157, %p158
    %s161 = sadd.s32 %s160, 1
    %p164 = scmp.eq.s32.totalorder %s18, 3
    %p165 = scmp.ne.s32.totalorder %s160, %s162
    %p166 = scmp.eq.s32.totalorder %s18, 0
    %p167 = por %p165, %p166
    %p168 = scmp.ne.s32.totalorder %s160, %s162
    %p169 = scmp.eq.s32.totalorder %s23, 3
    %p170 = por %p168, %p169
    %p171 = scmp.ne.s32.totalorder %s162, %s163
    %p172 = scmp.eq.s32.totalorder %s23, 0
    %p173 = por %p171, %p172
    %p174 = scmp.ne.s32.totalorder %s162, %s163
    %p175 = scmp.eq.s32.totalorder %s24, 3
    %p176 = por %p174, %p175
    %p178 = scmp.ne.s32.totalorder %s163, %s177
    %p179 = scmp.eq.s32.totalorder %s24, 0
    %p180 = por %p178, %p179
    %s182 = sadd.s32 %s181, 1
    %p185 = scmp.eq.s32.totalorder %s18, 3
    %p186 = scmp.ne.s32.totalorder %s181, %s183
    %p187 = scmp.eq.s32.totalorder %s18, 0
    %p188 = por %p186, %p187
    %p189 = scmp.ne.s32.totalorder %s181, %s183
    %p190 = scmp.eq.s32.totalorder %s23, 3
    %p191 = por %p189, %p190
    %p192 = scmp.ne.s32.totalorder %s183, %s184
    %p193 = scmp.eq.s32.totalorder %s23, 0
    %p194 = por %p192, %p193
    %p195 = scmp.ne.s32.totalorder %s183, %s184
    %p196 = scmp.eq.s32.totalorder %s24, 3
    %p197 = por %p195, %p196
    %p199 = scmp.ne.s32.totalorder %s184, %s198
    %p200 = scmp.eq.s32.totalorder %s24, 0
    %p201 = por %p199, %p200
    %s203 = sadd.s32 %s202, 1
    %p206 = scmp.eq.s32.totalorder %s18, 3
    %p207 = scmp.ne.s32.totalorder %s202, %s204
    %p208 = scmp.eq.s32.totalorder %s18, 0
    %p209 = por %p207, %p208
    %p210 = scmp.ne.s32.totalorder %s202, %s204
    %p211 = scmp.eq.s32.totalorder %s23, 3
    %p212 = por %p210, %p211
    %p213 = scmp.ne.s32.totalorder %s204, %s205
    %p214 = scmp.eq.s32.totalorder %s23, 0
    %p215 = por %p213, %p214
    %p216 = scmp.ne.s32.totalorder %s204, %s205
    %p217 = scmp.eq.s32.totalorder %s24, 3
    %p218 = por %p216, %p217
    %p220 = scmp.ne.s32.totalorder %s205, %s219
    %p221 = scmp.eq.s32.totalorder %s24, 0
    %p222 = por %p220, %p221
    %s224 = sadd.s32 %s223, 1
    %p227 = scmp.eq.s32.totalorder %s18, 3
    %p228 = scmp.ne.s32.totalorder %s223, %s225
    %p229 = scmp.eq.s32.totalorder %s18, 0
    %p230 = por %p228, %p229
    %p231 = scmp.ne.s32.totalorder %s223, %s225
    %p232 = scmp.eq.s32.totalorder %s23, 3
    %p233 = por %p231, %p232
    %p234 = scmp.ne.s32.totalorder %s225, %s226
    %p235 = scmp.eq.s32.totalorder %s23, 0
    %p236 = por %p234, %p235
    %p237 = scmp.ne.s32.totalorder %s225, %s226
    %p238 = scmp.eq.s32.totalorder %s24, 3
    %p239 = por %p237, %p238
    %p241 = scmp.ne.s32.totalorder %s226, %s240
    %p242 = scmp.eq.s32.totalorder %s24, 0
    %p243 = por %p241, %p242
    %s245 = sadd.s32 %s244, 1
    %p248 = scmp.eq.s32.totalorder %s18, 3
    %p249 = scmp.ne.s32.totalorder %s244, %s246
    %p250 = scmp.eq.s32.totalorder %s18, 0
    %p251 = por %p249, %p250
    %p252 = scmp.ne.s32.totalorder %s244, %s246
    %p253 = scmp.eq.s32.totalorder %s23, 3
    %p254 = por %p252, %p253
    %p255 = scmp.ne.s32.totalorder %s246, %s247
    %p256 = scmp.eq.s32.totalorder %s23, 0
    %p257 = por %p255, %p256
    %p258 = scmp.ne.s32.totalorder %s246, %s247
    %p259 = scmp.eq.s32.totalorder %s24, 3
    %p260 = por %p258, %p259
    %p262 = scmp.ne.s32.totalorder %s247, %s261
    %p263 = scmp.eq.s32.totalorder %s24, 0
    %p264 = por %p262, %p263
    %s265 = ssub.s32 %s25, %s37
    %s266 = ssub.s32 %s26, %s33
    %s267 = sor.u32 %s265, %s266
    %p268 = scmp.eq.s32.totalorder %s267, 0
    %s270 = sadd.s32 %s269, 1
    %s271 = scalar_select %p268, %s269, %s270
    %p274 = pneg %p268
    %p275 = scmp.eq.s32.totalorder %s18, 3
    %p276 = por %p274, %p275
    %p277 = scmp.ne.s32.totalorder %s269, %s272
    %p278 = scmp.eq.s32.totalorder %s18, 0
    %p279 = por %p277, %p278
    %p280 = scmp.ne.s32.totalorder %s269, %s272
    %p281 = scmp.eq.s32.totalorder %s23, 3
    %p282 = por %p280, %p281
    %p283 = scmp.ne.s32.totalorder %s272, %s273
    %p284 = scmp.eq.s32.totalorder %s23, 0
    %p285 = por %p283, %p284
    %p286 = scmp.ne.s32.totalorder %s272, %s273
    %p287 = scmp.eq.s32.totalorder %s24, 3
    %p288 = por %p286, %p287
    %p290 = scmp.ne.s32.totalorder %s273, %s289
    %p291 = scmp.eq.s32.totalorder %s24, 0
    %p292 = por %p290, %p291
    %s293 = ssub.s32 %s25, %s37
    %s294 = ssub.s32 %s26, %s33
    %s295 = sor.u32 %s293, %s294
    %p296 = scmp.eq.s32.totalorder %s295, 0
    %s298 = sadd.s32 %s297, 1
    %s299 = scalar_select %p296, %s297, %s298
    %p302 = pneg %p296
    %p303 = scmp.eq.s32.totalorder %s18, 3
    %p304 = por %p302, %p303
    %p305 = scmp.ne.s32.totalorder %s297, %s300
    %p306 = scmp.eq.s32.totalorder %s18, 0
    %p307 = por %p305, %p306
    %p308 = scmp.ne.s32.totalorder %s297, %s300
    %p309 = scmp.eq.s32.totalorder %s23, 3
    %p310 = por %p308, %p309
    %p311 = scmp.ne.s32.totalorder %s300, %s301
    %p312 = scmp.eq.s32.totalorder %s23, 0
    %p313 = por %p311, %p312
    %p314 = scmp.ne.s32.totalorder %s300, %s301
    %p315 = scmp.eq.s32.totalorder %s24, 3
    %p316 = por %p314, %p315
    %p318 = scmp.ne.s32.totalorder %s301, %s317
    %p319 = scmp.eq.s32.totalorder %s24, 0
    %p320 = por %p318, %p319
    %p321 = scmp.le.s32.totalorder 1, %s18
    %p322 = scmp.lt.s32.totalorder %s18, 5
    %p323 = pnand %p321, %p322
    %p324 = pneg %p323
    // Predicated region
    $region9: #{attentional_propagation.4} parent=5 // pred_check
      _
    $region10: #{attentional_propagation.4} parent=5 // pred_check_branch
      %326 = sbr.rel (%p323) target = $region12
    $region11: #{attentional_propagation.4} parent=5 // pred_region
      %s327 = ssub.s32 %s18, 1
      // Predicated region
      $region13: #{attentional_propagation.4} parent=11 // pred_check
        %p328 = pneg %p131
      $region14: #{attentional_propagation.4} parent=11 // pred_check_branch
        %330 = sbr.rel (%p328) target = $region16
      $region15: #{attentional_propagation.4} parent=11 // pred_region
        _
      $region16: #{attentional_propagation.4} parent=11 // pred_fallthru
        _
      // Predicated region
      $region17: #{attentional_propagation.4} parent=11 // pred_check
        %p331 = pneg %p152
      $region18: #{attentional_propagation.4} parent=11 // pred_check_branch
        %333 = sbr.rel (%p331) target = $region20
      $region19: #{attentional_propagation.4} parent=11 // pred_region
        _
      $region20: #{attentional_propagation.4} parent=11 // pred_fallthru
        _
      // Predicated region
      $region21: #{attentional_propagation.4} parent=11 // pred_check
        %p334 = pneg %p173
      $region22: #{attentional_propagation.4} parent=11 // pred_check_branch
        %336 = sbr.rel (%p334) target = $region24
      $region23: #{attentional_propagation.4} parent=11 // pred_region
        _
      $region24: #{attentional_propagation.4} parent=11 // pred_fallthru
        _
      // Predicated region
      $region25: #{attentional_propagation.4} parent=11 // pred_check
        %p337 = pneg %p194
      $region26: #{attentional_propagation.4} parent=11 // pred_check_branch
        %339 = sbr.rel (%p337) target = $region28
      $region27: #{attentional_propagation.4} parent=11 // pred_region
        _
      $region28: #{attentional_propagation.4} parent=11 // pred_fallthru
        _
      // Predicated region
      $region29: #{attentional_propagation.4} parent=11 // pred_check
        %p340 = pneg %p215
      $region30: #{attentional_propagation.4} parent=11 // pred_check_branch
        %342 = sbr.rel (%p340) target = $region32
      $region31: #{attentional_propagation.4} parent=11 // pred_region
        _
      $region32: #{attentional_propagation.4} parent=11 // pred_fallthru
        _
      // Predicated region
      $region33: #{attentional_propagation.4} parent=11 // pred_check
        %p343 = pneg %p236
      $region34: #{attentional_propagation.4} parent=11 // pred_check_branch
        %345 = sbr.rel (%p343) target = $region36
      $region35: #{attentional_propagation.4} parent=11 // pred_region
        _
      $region36: #{attentional_propagation.4} parent=11 // pred_fallthru
        _
      // Predicated region
      $region37: #{attentional_propagation.4} parent=11 // pred_check
        %p346 = pneg %p257
      $region38: #{attentional_propagation.4} parent=11 // pred_check_branch
        %348 = sbr.rel (%p346) target = $region40
      $region39: #{attentional_propagation.4} parent=11 // pred_region
        _
      $region40: #{attentional_propagation.4} parent=11 // pred_fallthru
        _
    $region12: #{attentional_propagation.4} parent=5 // pred_fallthru
      _
    %p349 = scmp.lt.s32.totalorder %s18, 4
    // Predicated region
    $region41: #{attentional_propagation.4} parent=5 // pred_check
      %p350 = pneg %p349
    $region42: #{attentional_propagation.4} parent=5 // pred_check_branch
      %352 = sbr.rel (%p350) target = $region44
    $region43: #{attentional_propagation.4} parent=5 // pred_region
      // Predicated region
      $region45: #{attentional_propagation.4} parent=43 // pred_check
        %p353 = pneg %p52
      $region46: #{attentional_propagation.4} parent=43 // pred_check_branch
        %355 = sbr.rel (%p353) target = $region48
      $region47: #{attentional_propagation.4} parent=43 // pred_region
        %s356 = smul.u32 8, %s26
        %p357 = scmp.lt.s32.totalorder %s25, 1
        %s358 = scalar_select %p357, %s25, 1
        %p359 = scmp.lt.s32.totalorder %s356, 15
        %s360 = scalar_select %p359, %s356, 15
        %s361 = smul.addr %s358, 16
        %s362 = sadd.s32 %s360, %s361
        %s363 = smul.addr %s362, 8
        %s364 = scalar_lea.vmem %s0, %s363
        %s365 = smul.u32 8, %s26
      $region48: #{attentional_propagation.4} parent=43 // pred_fallthru
        _
      // Predicated region
      $region49: #{attentional_propagation.4} parent=43 // pred_check
        %p366 = pneg %p78
      $region50: #{attentional_propagation.4} parent=43 // pred_check_branch
        %368 = sbr.rel (%p366) target = $region52
      $region51: #{attentional_propagation.4} parent=43 // pred_region
        %p369 = scmp.lt.s32.totalorder %s25, 1
        %s370 = scalar_select %p369, %s25, 1
        %s371 = smul.addr %s370, 12
        %s372 = smul.addr %s371, 8
        %s373 = scalar_lea.vmem %s1, %s372
      $region52: #{attentional_propagation.4} parent=43 // pred_fallthru
        _
      // Predicated region
      $region53: #{attentional_propagation.4} parent=43 // pred_check
        %p374 = pneg %p104
      $region54: #{attentional_propagation.4} parent=43 // pred_check_branch
        %376 = sbr.rel (%p374) target = $region56
      $region55: #{attentional_propagation.4} parent=43 // pred_region
        %p377 = scmp.lt.s32.totalorder %s25, 1
        %s378 = scalar_select %p377, %s25, 1
        %s379 = smul.addr %s378, 12
        %s380 = smul.addr %s379, 8
        %s381 = scalar_lea.vmem %s2, %s380
      $region56: #{attentional_propagation.4} parent=43 // pred_fallthru
        _
    $region44: #{attentional_propagation.4} parent=5 // pred_fallthru
      _
    %p382 = scmp.le.s32.totalorder 1, %s18
    %p383 = scmp.lt.s32.totalorder %s18, 5
    %p384 = pnand %p382, %p383
    %p385 = pneg %p384
    // Predicated region
    $region57: #{attentional_propagation.4} parent=5 // pred_check
      _
    $region58: #{attentional_propagation.4} parent=5 // pred_check_branch
      %387 = sbr.rel (%p384) target = $region60
    $region59: #{attentional_propagation.4} parent=5 // pred_region
      %s388 = ssub.s32 %s18, 1
      %s389 = smul.u32 8, %s28
      %p390 = scmp.lt.s32.totalorder %s27, 1
      %s391 = scalar_select %p390, %s27, 1
      %p392 = scmp.lt.s32.totalorder %s389, 15
      %s393 = scalar_select %p392, %s389, 15
      %s394 = smul.addr %s391, 16
      %s395 = sadd.s32 %s393, %s394
      %s396 = smul.addr %s395, 8
      %s397 = scalar_lea.vmem %s0, %s396
      %p398 = pneg %p58
      %p399 = pneg %p55
      %p400 = scmp.lt.s32.totalorder %s27, 1
      %s401 = scalar_select %p400, %s27, 1
      %s402 = smul.addr %s401, 12
      %s403 = smul.addr %s402, 8
      %s404 = scalar_lea.vmem %s1, %s403
      %p405 = pneg %p84
      %p406 = pneg %p81
      %p407 = scmp.lt.s32.totalorder %s27, 1
      %s408 = scalar_select %p407, %s27, 1
      %s409 = smul.addr %s408, 12
      %s410 = smul.addr %s409, 8
      %s411 = scalar_lea.vmem %s2, %s410
      %p412 = pneg %p110
      %p413 = pneg %p107
      %p414 = pneg %p131
      %p415 = pneg %p128
      %p416 = pneg %p152
      %p417 = pneg %p149
      %p418 = pneg %p173
      %p419 = pneg %p170
      %p420 = pneg %p194
      %p421 = pneg %p191
      %p422 = pneg %p215
      %p423 = pneg %p212
      %p424 = pneg %p236
      %p425 = pneg %p233
      %p426 = pneg %p257
      %p427 = pneg %p254
      %p428 = pneg %p285
      %p429 = pneg %p282
      %s430 = smul.u32 8, %s28
      %p431 = scmp.lt.s32.totalorder %s27, 1
      %s432 = scalar_select %p431, %s27, 1
      %p433 = scmp.lt.s32.totalorder %s430, 15
      %s434 = scalar_select %p433, %s430, 15
      %s435 = smul.addr %s432, 16
      %s436 = sadd.s32 %s434, %s435
      %s437 = smul.addr %s436, 8
      %s438 = scalar_lea.vmem %s10, %s437
      %p439 = pneg %p313
      %p440 = pneg %p310
      %p441 = scmp.lt.s32.totalorder %s27, 1
      %s442 = scalar_select %p441, %s27, 1
      %p443 = scmp.lt.s32.totalorder %s28, 1
      %s444 = scalar_select %p443, %s28, 1
      %s445 = smul.addr %s442, 2
      %s446 = sadd.s32 %s444, %s445
      %s447 = smul.addr %s446, 2
      %s448 = scalar_lea.vmem %s11, %s447
      %s449 = smul.u32 8, %s28
      %p450 = scmp.lt.s32.totalorder %s27, 1
      %s451 = scalar_select %p450, %s27, 1
      %p452 = scmp.lt.s32.totalorder %s449, 15
      %s453 = scalar_select %p452, %s449, 15
      %s454 = smul.addr %s451, 16
      %s455 = sadd.s32 %s453, %s454
      %s456 = smul.addr %s455, 8
      %s457 = scalar_lea.vmem %s0, %s456
      %s458 = smul.u32 8, %s28
      %p459 = scmp.lt.s32.totalorder %s27, 1
      %s460 = scalar_select %p459, %s27, 1
      %s461 = smul.addr %s460, 12
      %s462 = smul.addr %s461, 8
      %s463 = scalar_lea.vmem %s1, %s462
      %p464 = scmp.lt.s32.totalorder %s27, 1
      %s465 = scalar_select %p464, %s27, 1
      %s466 = smul.addr %s465, 12
      %s467 = smul.addr %s466, 8
      %s468 = scalar_lea.vmem %s2, %s467
      %s469 = smul.u32 8, %s28
      %p470 = scmp.lt.s32.totalorder %s27, 1
      %s471 = scalar_select %p470, %s27, 1
      %p472 = scmp.lt.s32.totalorder %s469, 15
      %s473 = scalar_select %p472, %s469, 15
      %s474 = smul.addr %s471, 16
      %s475 = sadd.s32 %s473, %s474
      %s476 = smul.addr %s475, 8
      %s477 = scalar_lea.vmem %s10, %s476
      %s478 = smul.u32 8, %s28
      %p479 = scmp.lt.s32.totalorder %s27, 1
      %s480 = scalar_select %p479, %s27, 1
      %p481 = scmp.lt.s32.totalorder %s28, 1
      %s482 = scalar_select %p481, %s28, 1
      %s483 = smul.addr %s480, 2
      %s484 = sadd.s32 %s482, %s483
      %s485 = smul.addr %s484, 2
      %s486 = scalar_lea.vmem %s11, %s485
      %v487 = vld [vmem:[%s457] sm:$0xff]
      %v488 = vld [vmem:[%s457 + $0x8] sm:$0xff]
      %v489 = vld [vmem:[%s457 + $0x10] sm:$0xff]
      %v490 = vld [vmem:[%s457 + $0x18] sm:$0xff]
      %v491 = vld [vmem:[%s457 + $0x20] sm:$0xff]
      %v492 = vld [vmem:[%s457 + $0x28] sm:$0xff]
      %v493 = vld [vmem:[%s457 + $0x30] sm:$0xff]
      %v494 = vld [vmem:[%s457 + $0x38] sm:$0xff]
      %v495 = vld [vmem:[%s3] sm:$0xff]
      %v496 = vld [vmem:[%s3 + $0x8] sm:$0xff]
      %v497 = vld [vmem:[%s3 + $0x10] sm:$0xff]
      %v498 = vld [vmem:[%s3 + $0x18] sm:$0xff]
      %v499 = vld [vmem:[%s4] sm:$0x1]
      %v501 = vlaneseq
      %v502 = vshrl.u32 %v501, 7
      %v503 = vsub.s32 0, %v502
      %v504 = vrot.slane %v499, %v503
      %vm506 = vcmask 261120
      %v508 = vsel %vm506, %v487, 0
      %v511 = vsel %vm506, %v488, 0
      %v514 = vsel %vm506, %v489, 0
      %v517 = vsel %vm506, %v490, 0
      %v520 = vsel %vm506, %v491, 0
      %v523 = vsel %vm506, %v492, 0
      %v526 = vsel %vm506, %v493, 0
      %v529 = vsel %vm506, %v494, 0
      %531 = vmatprep.subr.mxu0 0.0
      %532 = vmatpush1.msra.mxu0 %v495
      %533 = vmatprep.subr.mxu0 0.0
      %534 = vmatpush1.msra.mxu0 %v496
      %535 = vmatprep.subr.mxu0 0.0
      %536 = vmatpush1.msra.mxu0 %v497
      %537 = vmatprep.subr.mxu0 0.0
      %538 = vmatpush1.msra.mxu0 %v498
      %539 = vmatprep.subr.mxu0 0.0
      %540 = vmatpush1.msra.mxu0 0.0
      %541 = vmatprep.subr.mxu0 0.0
      %542 = vmatpush1.msra.mxu0 0.0
      %543 = vmatprep.subr.mxu0 0.0
      %544 = vmatpush1.msra.mxu0 0.0
      %545 = vmatprep.subr.mxu0 0.0
      %546 = vmatpush1.msra.mxu0 0.0
      %547 = vmatprep.subr.mxu0 0.0
      %548 = vmatpush1.msra.mxu0 0.0
      %549 = vmatprep.subr.mxu0 0.0
      %550 = vmatpush1.msra.mxu0 0.0
      %551 = vmatprep.subr.mxu0 0.0
      %552 = vmatpush1.msra.mxu0 0.0
      %553 = vmatprep.subr.mxu0 0.0
      %554 = vmatpush1.msra.mxu0 0.0
      %555 = vmatprep.subr.mxu0 0.0
      %556 = vmatpush1.msra.mxu0 0.0
      %557 = vmatprep.subr.mxu0 0.0
      %558 = vmatpush1.msra.mxu0 0.0
      %559 = vmatprep.subr.mxu0 0.0
      %560 = vmatpush1.msra.mxu0 0.0
      %561 = vmatprep.subr.mxu0 0.0
      %562 = vmatpush1.msra.mxu0 0.0
      %563 = vmatprep.subr.mxu0 0.0
      %564 = vmatpush1.msra.mxu0 0.0
      %565 = vmatprep.subr.mxu0 0.0
      %566 = vmatpush1.msra.mxu0 0.0
      %567 = vmatprep.subr.mxu0 0.0
      %568 = vmatpush1.msra.mxu0 0.0
      %569 = vmatprep.subr.mxu0 0.0
      %570 = vmatpush1.msra.mxu0 0.0
      %571 = vmatprep.subr.mxu0 0.0
      %572 = vmatpush1.msra.mxu0 0.0
      %573 = vmatprep.subr.mxu0 0.0
      %574 = vmatpush1.msra.mxu0 0.0
      %575 = vmatprep.subr.mxu0 0.0
      %576 = vmatpush1.msra.mxu0 0.0
      %577 = vmatprep.subr.mxu0 0.0
      %578 = vmatpush1.msra.mxu0 0.0
      %579 = vmatprep.subr.mxu0 0.0
      %580 = vmatpush1.msra.mxu0 0.0
      %581 = vmatprep.subr.mxu0 0.0
      %582 = vmatpush1.msra.mxu0 0.0
      %583 = vmatprep.subr.mxu0 0.0
      %584 = vmatpush1.msra.mxu0 0.0
      %585 = vmatprep.subr.mxu0 0.0
      %586 = vmatpush1.msra.mxu0 0.0
      %587 = vmatprep.subr.mxu0 0.0
      %588 = vmatpush1.msra.mxu0 0.0
      %589 = vmatprep.subr.mxu0 0.0
      %590 = vmatpush1.msra.mxu0 0.0
      %591 = vmatprep.subr.mxu0 0.0
      %592 = vmatpush1.msra.mxu0 0.0
      %593 = vmatprep.subr.mxu0 0.0
      %594 = vmatpush1.msra.mxu0 0.0
      %595 = vmatprep.mubr.f32.mxu0 0.0
      %596 = vmatmul.mubr.f32.gmra.mrb[0].mxu0 %v508
      %v597 = vpop.f32.mrb[0].mxu0
      %v598 = vadd.f32 %v504, %v597
      %v599 = vpop.f32.mrb[0].mxu0
      %600 = vmatprep.mubr.f32.mxu0 0.0
      %601 = vmatmul.mubr.f32.gmra.mrb[0].mxu0 %v511
      %v602 = vpop.f32.mrb[0].mxu0
      %v603 = vadd.f32 %v504, %v602
      %v604 = vpop.f32.mrb[0].mxu0
      %605 = vmatprep.mubr.f32.mxu0 0.0
      %606 = vmatmul.mubr.f32.gmra.mrb[0].mxu0 %v514
      %v607 = vpop.f32.mrb[0].mxu0
      %v608 = vadd.f32 %v504, %v607
      %v609 = vpop.f32.mrb[0].mxu0
      %610 = vmatprep.mubr.f32.mxu0 0.0
      %611 = vmatmul.mubr.f32.gmra.mrb[0].mxu0 %v517
      %v612 = vpop.f32.mrb[0].mxu0
      %v613 = vadd.f32 %v504, %v612
      %v614 = vpop.f32.mrb[0].mxu0
      %615 = vmatprep.mubr.f32.mxu0 0.0
      %616 = vmatmul.mubr.f32.gmra.mrb[0].mxu0 %v520
      %v617 = vpop.f32.mrb[0].mxu0
      %v618 = vadd.f32 %v504, %v617
      %v619 = vpop.f32.mrb[0].mxu0
      %620 = vmatprep.mubr.f32.mxu0 0.0
      %621 = vmatmul.mubr.f32.gmra.mrb[0].mxu0 %v523
      %v622 = vpop.f32.mrb[0].mxu0
      %v623 = vadd.f32 %v504, %v622
      %v624 = vpop.f32.mrb[0].mxu0
      %625 = vmatprep.mubr.f32.mxu0 0.0
      %626 = vmatmul.mubr.f32.gmra.mrb[0].mxu0 %v526
      %v627 = vpop.f32.mrb[0].mxu0
      %v628 = vadd.f32 %v504, %v627
      %v629 = vpop.f32.mrb[0].mxu0
      %630 = vmatprep.mubr.f32.mxu0 0.0
      %631 = vmatmul.mubr.f32.gmra.mrb[0].mxu0 %v529
      %v632 = vpop.f32.mrb[0].mxu0
      %v633 = vadd.f32 %v504, %v632
      %v634 = vpop.f32.mrb[0].mxu0
      %635 = vdwg.mxu0
      %v636 = vld [vmem:[%s463] sm:$0xff]
      %v637 = vld [vmem:[%s463 + $0x8] sm:$0xff]
      %v638 = vld [vmem:[%s463 + $0x10] sm:$0xff]
      %v639 = vld [vmem:[%s463 + $0x18] sm:$0xff]
      %v640 = vld [vmem:[%s463 + $0x20] sm:$0xff]
      %v641 = vld [vmem:[%s463 + $0x28] sm:$0xff]
      %v642 = vld [vmem:[%s463 + $0x30] sm:$0xff]
      %v643 = vld [vmem:[%s463 + $0x38] sm:$0xff]
      %v644 = vld [vmem:[%s463 + $0x40] sm:$0xff]
      %v645 = vld [vmem:[%s463 + $0x48] sm:$0xff]
      %v646 = vld [vmem:[%s463 + $0x50] sm:$0xff]
      %v647 = vld [vmem:[%s463 + $0x58] sm:$0xff]
      %v648 = vld [vmem:[%s468] sm:$0xff]
      %v649 = vld [vmem:[%s468 + $0x8] sm:$0xff]
      %v650 = vld [vmem:[%s468 + $0x10] sm:$0xff]
      %v651 = vld [vmem:[%s468 + $0x18] sm:$0xff]
      %v652 = vld [vmem:[%s468 + $0x20] sm:$0xff]
      %v653 = vld [vmem:[%s468 + $0x28] sm:$0xff]
      %v654 = vld [vmem:[%s468 + $0x30] sm:$0xff]
      %v655 = vld [vmem:[%s468 + $0x38] sm:$0xff]
      %v656 = vld [vmem:[%s468 + $0x40] sm:$0xff]
      %v657 = vld [vmem:[%s468 + $0x48] sm:$0xff]
      %v658 = vld [vmem:[%s468 + $0x50] sm:$0xff]
      %v659 = vld [vmem:[%s468 + $0x58] sm:$0xff]
      %vm660 = vcmask 64512
      %v662 = vsel %vm660, %v598, 0
      %v665 = vsel %vm660, %v603, 0
      %v668 = vsel %vm660, %v608, 0
      %v671 = vsel %vm660, %v613, 0
      %v674 = vsel %vm660, %v618, 0
      %v677 = vsel %vm660, %v623, 0
      %v680 = vsel %vm660, %v628, 0
      %v683 = vsel %vm660, %v633, 0
      %v686 = vsel %vm660, %v636, 0
      %v689 = vsel %vm660, %v637, 0
      %v692 = vsel %vm660, %v638, 0
      %v695 = vsel %vm660, %v639, 0
      %v698 = vsel %vm660, %v640, 0
      %v701 = vsel %vm660, %v641, 0
      %v704 = vsel %vm660, %v642, 0
      %v707 = vsel %vm660, %v643, 0
      %v710 = vsel %vm660, %v644, 0
      %v713 = vsel %vm660, %v645, 0
      %v716 = vsel %vm660, %v646, 0
      %v719 = vsel %vm660, %v647, 0
      %721 = vmatprep.subr.mxu0 0.0
      %722 = vmatpush1.xpose.msra.mxu0 %v686
      %723 = vmatprep.subr.mxu0 0.0
      %724 = vmatpush1.xpose.msra.mxu0 %v689
      %725 = vmatprep.subr.mxu0 0.0
      %726 = vmatpush1.xpose.msra.mxu0 %v692
      %727 = vmatprep.subr.mxu0 0.0
      %728 = vmatpush1.xpose.msra.mxu0 %v695
      %729 = vmatprep.subr.mxu0 0.0
      %730 = vmatpush1.xpose.msra.mxu0 %v698
      %731 = vmatprep.subr.mxu0 0.0
      %732 = vmatpush1.xpose.msra.mxu0 %v701
      %733 = vmatprep.subr.mxu0 0.0
      %734 = vmatpush1.xpose.msra.mxu0 %v704
      %735 = vmatprep.subr.mxu0 0.0
      %736 = vmatpush1.xpose.msra.mxu0 %v707
      %737 = vmatprep.subr.mxu0 0.0
      %738 = vmatpush1.xpose.msra.mxu0 %v710
      %739 = vmatprep.subr.mxu0 0.0
      %740 = vmatpush1.xpose.msra.mxu0 %v713
      %741 = vmatprep.subr.mxu0 0.0
      %742 = vmatpush1.xpose.msra.mxu0 %v716
      %743 = vmatprep.subr.mxu0 0.0
      %744 = vmatpush1.xpose.msra.mxu0 %v719
      %745 = vmatprep.subr.mxu0 0.0
      %746 = vmatpush1.xpose.msra.mxu0 0.0
      %747 = vmatprep.subr.mxu0 0.0
      %748 = vmatpush1.xpose.msra.mxu0 0.0
      %749 = vmatprep.subr.mxu0 0.0
      %750 = vmatpush1.xpose.msra.mxu0 0.0
      %751 = vmatprep.subr.mxu0 0.0
      %752 = vmatpush1.xpose.msra.mxu0 0.0
      %753 = vmatprep.subr.mxu0 0.0
      %754 = vmatpush1.xpose.msra.mxu0 0.0
      %755 = vmatprep.subr.mxu0 0.0
      %756 = vmatpush1.xpose.msra.mxu0 0.0
      %757 = vmatprep.subr.mxu0 0.0
      %758 = vmatpush1.xpose.msra.mxu0 0.0
      %759 = vmatprep.subr.mxu0 0.0
      %760 = vmatpush1.xpose.msra.mxu0 0.0
      %761 = vmatprep.subr.mxu0 0.0
      %762 = vmatpush1.xpose.msra.mxu0 0.0
      %763 = vmatprep.subr.mxu0 0.0
      %764 = vmatpush1.xpose.msra.mxu0 0.0
      %765 = vmatprep.subr.mxu0 0.0
      %766 = vmatpush1.xpose.msra.mxu0 0.0
      %767 = vmatprep.subr.mxu0 0.0
      %768 = vmatpush1.xpose.msra.mxu0 0.0
      %769 = vmatprep.subr.mxu0 0.0
      %770 = vmatpush1.xpose.msra.mxu0 0.0
      %771 = vmatprep.subr.mxu0 0.0
      %772 = vmatpush1.xpose.msra.mxu0 0.0
      %773 = vmatprep.subr.mxu0 0.0
      %774 = vmatpush1.xpose.msra.mxu0 0.0
      %775 = vmatprep.subr.mxu0 0.0
      %776 = vmatpush1.xpose.msra.mxu0 0.0
      %777 = vmatprep.subr.mxu0 0.0
      %778 = vmatpush1.xpose.msra.mxu0 0.0
      %779 = vmatprep.subr.mxu0 0.0
      %780 = vmatpush1.xpose.msra.mxu0 0.0
      %781 = vmatprep.subr.mxu0 0.0
      %782 = vmatpush1.xpose.msra.mxu0 0.0
      %783 = vmatprep.subr.mxu0 0.0
      %784 = vmatpush1.xpose.msra.mxu0 0.0
      %785 = vmatprep.mubr.f32.mxu0 0.0
      %786 = vmatmul.mubr.f32.gmra.mrb[0].mxu0 %v662
      %v787 = vpop.f32.mrb[0].mxu0
      %v788 = vadd.f32 0.0, %v787
      %v789 = vpop.f32.mrb[0].mxu0
      %790 = vmatprep.mubr.f32.mxu0 0.0
      %791 = vmatmul.mubr.f32.gmra.mrb[0].mxu0 %v665
      %v792 = vpop.f32.mrb[0].mxu0
      %v793 = vadd.f32 0.0, %v792
      %v794 = vpop.f32.mrb[0].mxu0
      %795 = vmatprep.mubr.f32.mxu0 0.0
      %796 = vmatmul.mubr.f32.gmra.mrb[0].mxu0 %v668
      %v797 = vpop.f32.mrb[0].mxu0
      %v798 = vadd.f32 0.0, %v797
      %v799 = vpop.f32.mrb[0].mxu0
      %800 = vmatprep.mubr.f32.mxu0 0.0
      %801 = vmatmul.mubr.f32.gmra.mrb[0].mxu0 %v671
      %v802 = vpop.f32.mrb[0].mxu0
      %v803 = vadd.f32 0.0, %v802
      %v804 = vpop.f32.mrb[0].mxu0
      %805 = vmatprep.mubr.f32.mxu0 0.0
      %806 = vmatmul.mubr.f32.gmra.mrb[0].mxu0 %v674
      %v807 = vpop.f32.mrb[0].mxu0
      %v808 = vadd.f32 0.0, %v807
      %v809 = vpop.f32.mrb[0].mxu0
      %810 = vmatprep.mubr.f32.mxu0 0.0
      %811 = vmatmul.mubr.f32.gmra.mrb[0].mxu0 %v677
      %v812 = vpop.f32.mrb[0].mxu0
      %v813 = vadd.f32 0.0, %v812
      %v814 = vpop.f32.mrb[0].mxu0
      %815 = vmatprep.mubr.f32.mxu0 0.0
      %816 = vmatmul.mubr.f32.gmra.mrb[0].mxu0 %v680
      %v817 = vpop.f32.mrb[0].mxu0
      %v818 = vadd.f32 0.0, %v817
      %v819 = vpop.f32.mrb[0].mxu0
      %820 = vmatprep.mubr.f32.mxu0 0.0
      %821 = vmatmul.mubr.f32.gmra.mrb[0].mxu0 %v683
      %v822 = vpop.f32.mrb[0].mxu0
      %v823 = vadd.f32 0.0, %v822
      %v824 = vpop.f32.mrb[0].mxu0
      %825 = vdwg.mxu0
      %vm826 = vcmask 785408
      %v827 = vsel %vm826, %v788, -inf
      %828 = vmax.xlane.f32.xlu0 %v827
      %v829 = vpop.xlane.xlu0 %828
      %v830 = vsel %vm826, %v793, -inf
      %831 = vmax.xlane.f32.xlu0 %v830
      %v832 = vpop.xlane.xlu0 %831
      %v833 = vsel %vm826, %v798, -inf
      %834 = vmax.xlane.f32.xlu0 %v833
      %v835 = vpop.xlane.xlu0 %834
      %v836 = vsel %vm826, %v803, -inf
      %837 = vmax.xlane.f32.xlu0 %v836
      %v838 = vpop.xlane.xlu0 %837
      %v839 = vsel %vm826, %v808, -inf
      %840 = vmax.xlane.f32.xlu0 %v839
      %v841 = vpop.xlane.xlu0 %840
      %v842 = vsel %vm826, %v813, -inf
      %843 = vmax.xlane.f32.xlu0 %v842
      %v844 = vpop.xlane.xlu0 %843
      %v845 = vsel %vm826, %v818, -inf
      %846 = vmax.xlane.f32.xlu0 %v845
      %v847 = vpop.xlane.xlu0 %846
      %v848 = vsel %vm826, %v823, -inf
      %849 = vmax.xlane.f32.xlu0 %v848
      %v850 = vpop.xlane.xlu0 %849
      %v851 = vsub.f32 %v788, %v829
      %v852 = vsub.f32 %v793, %v832
      %v853 = vsub.f32 %v798, %v835
      %v854 = vsub.f32 %v803, %v838
      %v855 = vsub.f32 %v808, %v841
      %v856 = vsub.f32 %v813, %v844
      %v857 = vsub.f32 %v818, %v847
      %v858 = vsub.f32 %v823, %v850
      %v859 = vmul.f32 %v851, 1.442695
      %v860 = vpow.pop %v859
      %v861 = vmul.f32 %v852, 1.442695
      %v862 = vpow.pop %v861
      %v863 = vmul.f32 %v853, 1.442695
      %v864 = vpow.pop %v863
      %v865 = vmul.f32 %v854, 1.442695
      %v866 = vpow.pop %v865
      %v867 = vmul.f32 %v855, 1.442695
      %v868 = vpow.pop %v867
      %v869 = vmul.f32 %v856, 1.442695
      %v870 = vpow.pop %v869
      %v871 = vmul.f32 %v857, 1.442695
      %v872 = vpow.pop %v871
      %v873 = vmul.f32 %v858, 1.442695
      %v874 = vpow.pop %v873
      %v875 = vsel %vm826, %v860, 0.0
      %876 = vadd.xlane.f32.xlu0 %v875
      %v877 = vpop.xlane.xlu0 %876
      %v878 = vsel %vm826, %v862, 0.0
      %879 = vadd.xlane.f32.xlu0 %v878
      %v880 = vpop.xlane.xlu0 %879
      %v881 = vsel %vm826, %v864, 0.0
      %882 = vadd.xlane.f32.xlu0 %v881
      %v883 = vpop.xlane.xlu0 %882
      %v884 = vsel %vm826, %v866, 0.0
      %885 = vadd.xlane.f32.xlu0 %v884
      %v886 = vpop.xlane.xlu0 %885
      %v887 = vsel %vm826, %v868, 0.0
      %888 = vadd.xlane.f32.xlu0 %v887
      %v889 = vpop.xlane.xlu0 %888
      %v890 = vsel %vm826, %v870, 0.0
      %891 = vadd.xlane.f32.xlu0 %v890
      %v892 = vpop.xlane.xlu0 %891
      %v893 = vsel %vm826, %v872, 0.0
      %894 = vadd.xlane.f32.xlu0 %v893
      %v895 = vpop.xlane.xlu0 %894
      %v896 = vsel %vm826, %v874, 0.0
      %897 = vadd.xlane.f32.xlu0 %v896
      %v898 = vpop.xlane.xlu0 %897
      %v900 = vsel %vm826, %v860, 0
      %v903 = vsel %vm826, %v862, 0
      %v906 = vsel %vm826, %v864, 0
      %v909 = vsel %vm826, %v866, 0
      %v912 = vsel %vm826, %v868, 0
      %v915 = vsel %vm826, %v870, 0
      %v918 = vsel %vm826, %v872, 0
      %v921 = vsel %vm826, %v874, 0
      %923 = vmatprep.subr.mxu0 0.0
      %924 = vmatpush1.msra.mxu0 %v648
      %925 = vmatprep.subr.mxu0 0.0
      %926 = vmatpush1.msra.mxu0 %v649
      %927 = vmatprep.subr.mxu0 0.0
      %928 = vmatpush1.msra.mxu0 %v650
      %929 = vmatprep.subr.mxu0 0.0
      %930 = vmatpush1.msra.mxu0 %v651
      %931 = vmatprep.subr.mxu0 0.0
      %932 = vmatpush1.msra.mxu0 %v652
      %933 = vmatprep.subr.mxu0 0.0
      %934 = vmatpush1.msra.mxu0 %v653
      %935 = vmatprep.subr.mxu0 0.0
      %936 = vmatpush1.msra.mxu0 %v654
      %937 = vmatprep.subr.mxu0 0.0
      %938 = vmatpush1.msra.mxu0 %v655
      %939 = vmatprep.subr.mxu0 0.0
      %940 = vmatpush1.msra.mxu0 %v656
      %941 = vmatprep.subr.mxu0 0.0
      %942 = vmatpush1.msra.mxu0 %v657
      %943 = vmatprep.subr.mxu0 0.0
      %944 = vmatpush1.msra.mxu0 %v658
      %945 = vmatprep.subr.mxu0 0.0
      %946 = vmatpush1.msra.mxu0 %v659
      %947 = vmatprep.subr.mxu0 0.0
      %948 = vmatpush1.msra.mxu0 0.0
      %949 = vmatprep.subr.mxu0 0.0
      %950 = vmatpush1.msra.mxu0 0.0
      %951 = vmatprep.subr.mxu0 0.0
      %952 = vmatpush1.msra.mxu0 0.0
      %953 = vmatprep.subr.mxu0 0.0
      %954 = vmatpush1.msra.mxu0 0.0
      %955 = vmatprep.subr.mxu0 0.0
      %956 = vmatpush1.msra.mxu0 0.0
      %957 = vmatprep.subr.mxu0 0.0
      %958 = vmatpush1.msra.mxu0 0.0
      %959 = vmatprep.subr.mxu0 0.0
      %960 = vmatpush1.msra.mxu0 0.0
      %961 = vmatprep.subr.mxu0 0.0
      %962 = vmatpush1.msra.mxu0 0.0
      %963 = vmatprep.subr.mxu0 0.0
      %964 = vmatpush1.msra.mxu0 0.0
      %965 = vmatprep.subr.mxu0 0.0
      %966 = vmatpush1.msra.mxu0 0.0
      %967 = vmatprep.subr.mxu0 0.0
      %968 = vmatpush1.msra.mxu0 0.0
      %969 = vmatprep.subr.mxu0 0.0
      %970 = vmatpush1.msra.mxu0 0.0
      %971 = vmatprep.subr.mxu0 0.0
      %972 = vmatpush1.msra.mxu0 0.0
      %973 = vmatprep.subr.mxu0 0.0
      %974 = vmatpush1.msra.mxu0 0.0
      %975 = vmatprep.subr.mxu0 0.0
      %976 = vmatpush1.msra.mxu0 0.0
      %977 = vmatprep.subr.mxu0 0.0
      %978 = vmatpush1.msra.mxu0 0.0
      %979 = vmatprep.subr.mxu0 0.0
      %980 = vmatpush1.msra.mxu0 0.0
      %981 = vmatprep.subr.mxu0 0.0
      %982 = vmatpush1.msra.mxu0 0.0
      %983 = vmatprep.subr.mxu0 0.0
      %984 = vmatpush1.msra.mxu0 0.0
      %985 = vmatprep.subr.mxu0 0.0
      %986 = vmatpush1.msra.mxu0 0.0
      %987 = vmatprep.mubr.f32.mxu0 0.0
      %988 = vmatmul.mubr.f32.gmra.mrb[0].mxu0 %v900
      %v989 = vpop.f32.mrb[0].mxu0
      %v990 = vadd.f32 0.0, %v989
      %v991 = vpop.f32.mrb[0].mxu0
      %992 = vmatprep.mubr.f32.mxu0 0.0
      %993 = vmatmul.mubr.f32.gmra.mrb[0].mxu0 %v903
      %v994 = vpop.f32.mrb[0].mxu0
      %v995 = vadd.f32 0.0, %v994
      %v996 = vpop.f32.mrb[0].mxu0
      %997 = vmatprep.mubr.f32.mxu0 0.0
      %998 = vmatmul.mubr.f32.gmra.mrb[0].mxu0 %v906
      %v999 = vpop.f32.mrb[0].mxu0
      %v1000 = vadd.f32 0.0, %v999
      %v1001 = vpop.f32.mrb[0].mxu0
      %1002 = vmatprep.mubr.f32.mxu0 0.0
      %1003 = vmatmul.mubr.f32.gmra.mrb[0].mxu0 %v909
      %v1004 = vpop.f32.mrb[0].mxu0
      %v1005 = vadd.f32 0.0, %v1004
      %v1006 = vpop.f32.mrb[0].mxu0
      %1007 = vmatprep.mubr.f32.mxu0 0.0
      %1008 = vmatmul.mubr.f32.gmra.mrb[0].mxu0 %v912
      %v1009 = vpop.f32.mrb[0].mxu0
      %v1010 = vadd.f32 0.0, %v1009
      %v1011 = vpop.f32.mrb[0].mxu0
      %1012 = vmatprep.mubr.f32.mxu0 0.0
      %1013 = vmatmul.mubr.f32.gmra.mrb[0].mxu0 %v915
      %v1014 = vpop.f32.mrb[0].mxu0
      %v1015 = vadd.f32 0.0, %v1014
      %v1016 = vpop.f32.mrb[0].mxu0
      %1017 = vmatprep.mubr.f32.mxu0 0.0
      %1018 = vmatmul.mubr.f32.gmra.mrb[0].mxu0 %v918
      %v1019 = vpop.f32.mrb[0].mxu0
      %v1020 = vadd.f32 0.0, %v1019
      %v1021 = vpop.f32.mrb[0].mxu0
      %1022 = vmatprep.mubr.f32.mxu0 0.0
      %1023 = vmatmul.mubr.f32.gmra.mrb[0].mxu0 %v921
      %v1024 = vpop.f32.mrb[0].mxu0
      %v1025 = vadd.f32 0.0, %v1024
      %v1026 = vpop.f32.mrb[0].mxu0
      %1027 = vdwg.mxu0
      %v1028 = vrcp.pop %v877
      %v1029 = vrcp.pop %v880
      %v1030 = vrcp.pop %v883
      %v1031 = vrcp.pop %v886
      %v1032 = vrcp.pop %v889
      %v1033 = vrcp.pop %v892
      %v1034 = vrcp.pop %v895
      %v1035 = vrcp.pop %v898
      %v1036 = vmul.f32 %v990, %v1028
      %v1037 = vmul.f32 %v995, %v1029
      %v1038 = vmul.f32 %v1000, %v1030
      %v1039 = vmul.f32 %v1005, %v1031
      %v1040 = vmul.f32 %v1010, %v1032
      %v1041 = vmul.f32 %v1015, %v1033
      %v1042 = vmul.f32 %v1020, %v1034
      %v1043 = vmul.f32 %v1025, %v1035
      %1044 = vst.msk [vmem:[#allocation2] sm:$0xff] %vm660, %v1036
      %1045 = vst.msk [vmem:[#allocation2 + $0x8] sm:$0xff] %vm660, %v1037
      %1046 = vst.msk [vmem:[#allocation2 + $0x10] sm:$0xff] %vm660, %v1038
      %1047 = vst.msk [vmem:[#allocation2 + $0x18] sm:$0xff] %vm660, %v1039
      %1048 = vst.msk [vmem:[#allocation2 + $0x20] sm:$0xff] %vm660, %v1040
      %1049 = vst.msk [vmem:[#allocation2 + $0x28] sm:$0xff] %vm660, %v1041
      %1050 = vst.msk [vmem:[#allocation2 + $0x30] sm:$0xff] %vm660, %v1042
      %1051 = vst.msk [vmem:[#allocation2 + $0x38] sm:$0xff] %vm660, %v1043
      %1052 = vrot.lane.b32.xlu0 %v598, 120
      %v1053 = vpop.permute.xlu0 %1052
      %1054 = vrot.lane.b32.xlu0 %v603, 120
      %v1055 = vpop.permute.xlu0 %1054
      %1056 = vrot.lane.b32.xlu0 %v608, 120
      %v1057 = vpop.permute.xlu0 %1056
      %1058 = vrot.lane.b32.xlu0 %v613, 120
      %v1059 = vpop.permute.xlu0 %1058
      %1060 = vrot.lane.b32.xlu0 %v618, 120
      %v1061 = vpop.permute.xlu0 %1060
      %1062 = vrot.lane.b32.xlu0 %v623, 120
      %v1063 = vpop.permute.xlu0 %1062
      %1064 = vrot.lane.b32.xlu0 %v628, 120
      %v1065 = vpop.permute.xlu0 %1064
      %1066 = vrot.lane.b32.xlu0 %v633, 120
      %v1067 = vpop.permute.xlu0 %1066
      %1068 = vrot.lane.b32.xlu0 %v636, 120
      %v1069 = vpop.permute.xlu0 %1068
      %1070 = vrot.lane.b32.xlu0 %v637, 120
      %v1071 = vpop.permute.xlu0 %1070
      %1072 = vrot.lane.b32.xlu0 %v638, 120
      %v1073 = vpop.permute.xlu0 %1072
      %1074 = vrot.lane.b32.xlu0 %v639, 120
      %v1075 = vpop.permute.xlu0 %1074
      %1076 = vrot.lane.b32.xlu0 %v640, 120
      %v1077 = vpop.permute.xlu0 %1076
      %1078 = vrot.lane.b32.xlu0 %v641, 120
      %v1079 = vpop.permute.xlu0 %1078
      %1080 = vrot.lane.b32.xlu0 %v642, 120
      %v1081 = vpop.permute.xlu0 %1080
      %1082 = vrot.lane.b32.xlu0 %v643, 120
      %v1083 = vpop.permute.xlu0 %1082
      %1084 = vrot.lane.b32.xlu0 %v644, 120
      %v1085 = vpop.permute.xlu0 %1084
      %1086 = vrot.lane.b32.xlu0 %v645, 120
      %v1087 = vpop.permute.xlu0 %1086
      %1088 = vrot.lane.b32.xlu0 %v646, 120
      %v1089 = vpop.permute.xlu0 %1088
      %1090 = vrot.lane.b32.xlu0 %v647, 120
      %v1091 = vpop.permute.xlu0 %1090
      %v1092 = vsel %vm660, %v1053, 0
      %v1094 = vsel %vm660, %v1055, 0
      %v1096 = vsel %vm660, %v1057, 0
      %v1098 = vsel %vm660, %v1059, 0
      %v1100 = vsel %vm660, %v1061, 0
      %v1102 = vsel %vm660, %v1063, 0
      %v1104 = vsel %vm660, %v1065, 0
      %v1106 = vsel %vm660, %v1067, 0
      %v1108 = vsel %vm660, %v1069, 0
      %v1110 = vsel %vm660, %v1071, 0
      %v1112 = vsel %vm660, %v1073, 0
      %v1114 = vsel %vm660, %v1075, 0
      %v1116 = vsel %vm660, %v1077, 0
      %v1118 = vsel %vm660, %v1079, 0
      %v1120 = vsel %vm660, %v1081, 0
      %v1122 = vsel %vm660, %v1083, 0
      %v1124 = vsel %vm660, %v1085, 0
      %v1126 = vsel %vm660, %v1087, 0
      %v1128 = vsel %vm660, %v1089, 0
      %v1130 = vsel %vm660, %v1091, 0
      %1132 = vmatprep.subr.mxu0 0.0
      %1133 = vmatpush1.xpose.msra.mxu0 %v1108
      %1134 = vmatprep.subr.mxu0 0.0
      %1135 = vmatpush1.xpose.msra.mxu0 %v1110
      %1136 = vmatprep.subr.mxu0 0.0
      %1137 = vmatpush1.xpose.msra.mxu0 %v1112
      %1138 = vmatprep.subr.mxu0 0.0
      %1139 = vmatpush1.xpose.msra.mxu0 %v1114
      %1140 = vmatprep.subr.mxu0 0.0
      %1141 = vmatpush1.xpose.msra.mxu0 %v1116
      %1142 = vmatprep.subr.mxu0 0.0
      %1143 = vmatpush1.xpose.msra.mxu0 %v1118
      %1144 = vmatprep.subr.mxu0 0.0
      %1145 = vmatpush1.xpose.msra.mxu0 %v1120
      %1146 = vmatprep.subr.mxu0 0.0
      %1147 = vmatpush1.xpose.msra.mxu0 %v1122
      %1148 = vmatprep.subr.mxu0 0.0
      %1149 = vmatpush1.xpose.msra.mxu0 %v1124
      %1150 = vmatprep.subr.mxu0 0.0
      %1151 = vmatpush1.xpose.msra.mxu0 %v1126
      %1152 = vmatprep.subr.mxu0 0.0
      %1153 = vmatpush1.xpose.msra.mxu0 %v1128
      %1154 = vmatprep.subr.mxu0 0.0
      %1155 = vmatpush1.xpose.msra.mxu0 %v1130
      %1156 = vmatprep.subr.mxu0 0.0
      %1157 = vmatpush1.xpose.msra.mxu0 0.0
      %1158 = vmatprep.subr.mxu0 0.0
      %1159 = vmatpush1.xpose.msra.mxu0 0.0
      %1160 = vmatprep.subr.mxu0 0.0
      %1161 = vmatpush1.xpose.msra.mxu0 0.0
      %1162 = vmatprep.subr.mxu0 0.0
      %1163 = vmatpush1.xpose.msra.mxu0 0.0
      %1164 = vmatprep.subr.mxu0 0.0
      %1165 = vmatpush1.xpose.msra.mxu0 0.0
      %1166 = vmatprep.subr.mxu0 0.0
      %1167 = vmatpush1.xpose.msra.mxu0 0.0
      %1168 = vmatprep.subr.mxu0 0.0
      %1169 = vmatpush1.xpose.msra.mxu0 0.0
      %1170 = vmatprep.subr.mxu0 0.0
      %1171 = vmatpush1.xpose.msra.mxu0 0.0
      %1172 = vmatprep.subr.mxu0 0.0
      %1173 = vmatpush1.xpose.msra.mxu0 0.0
      %1174 = vmatprep.subr.mxu0 0.0
      %1175 = vmatpush1.xpose.msra.mxu0 0.0
      %1176 = vmatprep.subr.mxu0 0.0
      %1177 = vmatpush1.xpose.msra.mxu0 0.0
      %1178 = vmatprep.subr.mxu0 0.0
      %1179 = vmatpush1.xpose.msra.mxu0 0.0
      %1180 = vmatprep.subr.mxu0 0.0
      %1181 = vmatpush1.xpose.msra.mxu0 0.0
      %1182 = vmatprep.subr.mxu0 0.0
      %1183 = vmatpush1.xpose.msra.mxu0 0.0
      %1184 = vmatprep.subr.mxu0 0.0
      %1185 = vmatpush1.xpose.msra.mxu0 0.0
      %1186 = vmatprep.subr.mxu0 0.0
      %1187 = vmatpush1.xpose.msra.mxu0 0.0
      %1188 = vmatprep.subr.mxu0 0.0
      %1189 = vmatpush1.xpose.msra.mxu0 0.0
      %1190 = vmatprep.subr.mxu0 0.0
      %1191 = vmatpush1.xpose.msra.mxu0 0.0
      %1192 = vmatprep.subr.mxu0 0.0
      %1193 = vmatpush1.xpose.msra.mxu0 0.0
      %1194 = vmatprep.subr.mxu0 0.0
      %1195 = vmatpush1.xpose.msra.mxu0 0.0
      %1196 = vmatprep.mubr.f32.mxu0 0.0
      %1197 = vmatmul.mubr.f32.gmra.mrb[0].mxu0 %v1092
      %v1198 = vpop.f32.mrb[0].mxu0
      %v1199 = vadd.f32 0.0, %v1198
      %v1200 = vpop.f32.mrb[0].mxu0
      %1201 = vmatprep.mubr.f32.mxu0 0.0
      %1202 = vmatmul.mubr.f32.gmra.mrb[0].mxu0 %v1094
      %v1203 = vpop.f32.mrb[0].mxu0
      %v1204 = vadd.f32 0.0, %v1203
      %v1205 = vpop.f32.mrb[0].mxu0
      %1206 = vmatprep.mubr.f32.mxu0 0.0
      %1207 = vmatmul.mubr.f32.gmra.mrb[0].mxu0 %v1096
      %v1208 = vpop.f32.mrb[0].mxu0
      %v1209 = vadd.f32 0.0, %v1208
      %v1210 = vpop.f32.mrb[0].mxu0
      %1211 = vmatprep.mubr.f32.mxu0 0.0
      %1212 = vmatmul.mubr.f32.gmra.mrb[0].mxu0 %v1098
      %v1213 = vpop.f32.mrb[0].mxu0
      %v1214 = vadd.f32 0.0, %v1213
      %v1215 = vpop.f32.mrb[0].mxu0
      %1216 = vmatprep.mubr.f32.mxu0 0.0
      %1217 = vmatmul.mubr.f32.gmra.mrb[0].mxu0 %v1100
      %v1218 = vpop.f32.mrb[0].mxu0
      %v1219 = vadd.f32 0.0, %v1218
      %v1220 = vpop.f32.mrb[0].mxu0
      %1221 = vmatprep.mubr.f32.mxu0 0.0
      %1222 = vmatmul.mubr.f32.gmra.mrb[0].mxu0 %v1102
      %v1223 = vpop.f32.mrb[0].mxu0
      %v1224 = vadd.f32 0.0, %v1223
      %v1225 = vpop.f32.mrb[0].mxu0
      %1226 = vmatprep.mubr.f32.mxu0 0.0
      %1227 = vmatmul.mubr.f32.gmra.mrb[0].mxu0 %v1104
      %v1228 = vpop.f32.mrb[0].mxu0
      %v1229 = vadd.f32 0.0, %v1228
      %v1230 = vpop.f32.mrb[0].mxu0
      %1231 = vmatprep.mubr.f32.mxu0 0.0
      %1232 = vmatmul.mubr.f32.gmra.mrb[0].mxu0 %v1106
      %v1233 = vpop.f32.mrb[0].mxu0
      %v1234 = vadd.f32 0.0, %v1233
      %v1235 = vpop.f32.mrb[0].mxu0
      %1236 = vdwg.mxu0
      %v1237 = vsel %vm826, %v1199, -inf
      %1238 = vmax.xlane.f32.xlu0 %v1237
      %v1239 = vpop.xlane.xlu0 %1238
      %v1240 = vsel %vm826, %v1204, -inf
      %1241 = vmax.xlane.f32.xlu0 %v1240
      %v1242 = vpop.xlane.xlu0 %1241
      %v1243 = vsel %vm826, %v1209, -inf
      %1244 = vmax.xlane.f32.xlu0 %v1243
      %v1245 = vpop.xlane.xlu0 %1244
      %v1246 = vsel %vm826, %v1214, -inf
      %1247 = vmax.xlane.f32.xlu0 %v1246
      %v1248 = vpop.xlane.xlu0 %1247
      %v1249 = vsel %vm826, %v1219, -inf
      %1250 = vmax.xlane.f32.xlu0 %v1249
      %v1251 = vpop.xlane.xlu0 %1250
      %v1252 = vsel %vm826, %v1224, -inf
      %1253 = vmax.xlane.f32.xlu0 %v1252
      %v1254 = vpop.xlane.xlu0 %1253
      %v1255 = vsel %vm826, %v1229, -inf
      %1256 = vmax.xlane.f32.xlu0 %v1255
      %v1257 = vpop.xlane.xlu0 %1256
      %v1258 = vsel %vm826, %v1234, -inf
      %1259 = vmax.xlane.f32.xlu0 %v1258
      %v1260 = vpop.xlane.xlu0 %1259
      %v1261 = vsub.f32 %v1199, %v1239
      %v1262 = vsub.f32 %v1204, %v1242
      %v1263 = vsub.f32 %v1209, %v1245
      %v1264 = vsub.f32 %v1214, %v1248
      %v1265 = vsub.f32 %v1219, %v1251
      %v1266 = vsub.f32 %v1224, %v1254
      %v1267 = vsub.f32 %v1229, %v1257
      %v1268 = vsub.f32 %v1234, %v1260
      %v1269 = vmul.f32 %v1261, 1.442695
      %v1270 = vpow.pop %v1269
      %v1271 = vmul.f32 %v1262, 1.442695
      %v1272 = vpow.pop %v1271
      %v1273 = vmul.f32 %v1263, 1.442695
      %v1274 = vpow.pop %v1273
      %v1275 = vmul.f32 %v1264, 1.442695
      %v1276 = vpow.pop %v1275
      %v1277 = vmul.f32 %v1265, 1.442695
      %v1278 = vpow.pop %v1277
      %v1279 = vmul.f32 %v1266, 1.442695
      %v1280 = vpow.pop %v1279
      %v1281 = vmul.f32 %v1267, 1.442695
      %v1282 = vpow.pop %v1281
      %v1283 = vmul.f32 %v1268, 1.442695
      %v1284 = vpow.pop %v1283
      %v1285 = vsel %vm826, %v1270, 0.0
      %1286 = vadd.xlane.f32.xlu0 %v1285
      %v1287 = vpop.xlane.xlu0 %1286
      %v1288 = vsel %vm826, %v1272, 0.0
      %1289 = vadd.xlane.f32.xlu0 %v1288
      %v1290 = vpop.xlane.xlu0 %1289
      %v1291 = vsel %vm826, %v1274, 0.0
      %1292 = vadd.xlane.f32.xlu0 %v1291
      %v1293 = vpop.xlane.xlu0 %1292
      %v1294 = vsel %vm826, %v1276, 0.0
      %1295 = vadd.xlane.f32.xlu0 %v1294
      %v1296 = vpop.xlane.xlu0 %1295
      %v1297 = vsel %vm826, %v1278, 0.0
      %1298 = vadd.xlane.f32.xlu0 %v1297
      %v1299 = vpop.xlane.xlu0 %1298
      %v1300 = vsel %vm826, %v1280, 0.0
      %1301 = vadd.xlane.f32.xlu0 %v1300
      %v1302 = vpop.xlane.xlu0 %1301
      %v1303 = vsel %vm826, %v1282, 0.0
      %1304 = vadd.xlane.f32.xlu0 %v1303
      %v1305 = vpop.xlane.xlu0 %1304
      %v1306 = vsel %vm826, %v1284, 0.0
      %1307 = vadd.xlane.f32.xlu0 %v1306
      %v1308 = vpop.xlane.xlu0 %1307
      %1321 = vrot.lane.b32.xlu0 %v648, 120
      %v1322 = vpop.permute.xlu0 %1321
      %1323 = vrot.lane.b32.xlu0 %v649, 120
      %v1324 = vpop.permute.xlu0 %1323
      %1325 = vrot.lane.b32.xlu0 %v650, 120
      %v1326 = vpop.permute.xlu0 %1325
      %1327 = vrot.lane.b32.xlu0 %v651, 120
      %v1328 = vpop.permute.xlu0 %1327
      %1329 = vrot.lane.b32.xlu0 %v652, 120
      %v1330 = vpop.permute.xlu0 %1329
      %1331 = vrot.lane.b32.xlu0 %v653, 120
      %v1332 = vpop.permute.xlu0 %1331
      %1333 = vrot.lane.b32.xlu0 %v654, 120
      %v1334 = vpop.permute.xlu0 %1333
      %1335 = vrot.lane.b32.xlu0 %v655, 120
      %v1336 = vpop.permute.xlu0 %1335
      %1337 = vrot.lane.b32.xlu0 %v656, 120
      %v1338 = vpop.permute.xlu0 %1337
      %1339 = vrot.lane.b32.xlu0 %v657, 120
      %v1340 = vpop.permute.xlu0 %1339
      %1341 = vrot.lane.b32.xlu0 %v658, 120
      %v1342 = vpop.permute.xlu0 %1341
      %1343 = vrot.lane.b32.xlu0 %v659, 120
      %v1344 = vpop.permute.xlu0 %1343
      %v1358 = vsel %vm826, %v1270, 0
      %v1361 = vsel %vm826, %v1272, 0
      %v1364 = vsel %vm826, %v1274, 0
      %v1367 = vsel %vm826, %v1276, 0
      %v1370 = vsel %vm826, %v1278, 0
      %v1373 = vsel %vm826, %v1280, 0
      %v1376 = vsel %vm826, %v1282, 0
      %v1379 = vsel %vm826, %v1284, 0
      %1381 = vmatprep.subr.mxu0 0.0
      %1382 = vmatpush1.msra.mxu0 %v1322
      %1383 = vmatprep.subr.mxu0 0.0
      %1384 = vmatpush1.msra.mxu0 %v1324
      %1385 = vmatprep.subr.mxu0 0.0
      %1386 = vmatpush1.msra.mxu0 %v1326
      %1387 = vmatprep.subr.mxu0 0.0
      %1388 = vmatpush1.msra.mxu0 %v1328
      %1389 = vmatprep.subr.mxu0 0.0
      %1390 = vmatpush1.msra.mxu0 %v1330
      %1391 = vmatprep.subr.mxu0 0.0
      %1392 = vmatpush1.msra.mxu0 %v1332
      %1393 = vmatprep.subr.mxu0 0.0
      %1394 = vmatpush1.msra.mxu0 %v1334
      %1395 = vmatprep.subr.mxu0 0.0
      %1396 = vmatpush1.msra.mxu0 %v1336
      %1397 = vmatprep.subr.mxu0 0.0
      %1398 = vmatpush1.msra.mxu0 %v1338
      %1399 = vmatprep.subr.mxu0 0.0
      %1400 = vmatpush1.msra.mxu0 %v1340
      %1401 = vmatprep.subr.mxu0 0.0
      %1402 = vmatpush1.msra.mxu0 %v1342
      %1403 = vmatprep.subr.mxu0 0.0
      %1404 = vmatpush1.msra.mxu0 %v1344
      %1405 = vmatprep.subr.mxu0 0.0
      %1406 = vmatpush1.msra.mxu0 0.0
      %1407 = vmatprep.subr.mxu0 0.0
      %1408 = vmatpush1.msra.mxu0 0.0
      %1409 = vmatprep.subr.mxu0 0.0
      %1410 = vmatpush1.msra.mxu0 0.0
      %1411 = vmatprep.subr.mxu0 0.0
      %1412 = vmatpush1.msra.mxu0 0.0
      %1413 = vmatprep.subr.mxu0 0.0
      %1414 = vmatpush1.msra.mxu0 0.0
      %1415 = vmatprep.subr.mxu0 0.0
      %1416 = vmatpush1.msra.mxu0 0.0
      %1417 = vmatprep.subr.mxu0 0.0
      %1418 = vmatpush1.msra.mxu0 0.0
      %1419 = vmatprep.subr.mxu0 0.0
      %1420 = vmatpush1.msra.mxu0 0.0
      %1421 = vmatprep.subr.mxu0 0.0
      %1422 = vmatpush1.msra.mxu0 0.0
      %1423 = vmatprep.subr.mxu0 0.0
      %1424 = vmatpush1.msra.mxu0 0.0
      %1425 = vmatprep.subr.mxu0 0.0
      %1426 = vmatpush1.msra.mxu0 0.0
      %1427 = vmatprep.subr.mxu0 0.0
      %1428 = vmatpush1.msra.mxu0 0.0
      %1429 = vmatprep.subr.mxu0 0.0
      %1430 = vmatpush1.msra.mxu0 0.0
      %1431 = vmatprep.subr.mxu0 0.0
      %1432 = vmatpush1.msra.mxu0 0.0
      %1433 = vmatprep.subr.mxu0 0.0
      %1434 = vmatpush1.msra.mxu0 0.0
      %1435 = vmatprep.subr.mxu0 0.0
      %1436 = vmatpush1.msra.mxu0 0.0
      %1437 = vmatprep.subr.mxu0 0.0
      %1438 = vmatpush1.msra.mxu0 0.0
      %1439 = vmatprep.subr.mxu0 0.0
      %1440 = vmatpush1.msra.mxu0 0.0
      %1441 = vmatprep.subr.mxu0 0.0
      %1442 = vmatpush1.msra.mxu0 0.0
      %1443 = vmatprep.subr.mxu0 0.0
      %1444 = vmatpush1.msra.mxu0 0.0
      %1445 = vmatprep.mubr.f32.mxu0 0.0
      %1446 = vmatmul.mubr.f32.gmra.mrb[0].mxu0 %v1358
      %v1447 = vpop.f32.mrb[0].mxu0
      %v1448 = vadd.f32 0.0, %v1447
      %v1449 = vpop.f32.mrb[0].mxu0
      %1450 = vmatprep.mubr.f32.mxu0 0.0
      %1451 = vmatmul.mubr.f32.gmra.mrb[0].mxu0 %v1361
      %v1452 = vpop.f32.mrb[0].mxu0
      %v1453 = vadd.f32 0.0, %v1452
      %v1454 = vpop.f32.mrb[0].mxu0
      %1455 = vmatprep.mubr.f32.mxu0 0.0
      %1456 = vmatmul.mubr.f32.gmra.mrb[0].mxu0 %v1364
      %v1457 = vpop.f32.mrb[0].mxu0
      %v1458 = vadd.f32 0.0, %v1457
      %v1459 = vpop.f32.mrb[0].mxu0
      %1460 = vmatprep.mubr.f32.mxu0 0.0
      %1461 = vmatmul.mubr.f32.gmra.mrb[0].mxu0 %v1367
      %v1462 = vpop.f32.mrb[0].mxu0
      %v1463 = vadd.f32 0.0, %v1462
      %v1464 = vpop.f32.mrb[0].mxu0
      %1465 = vmatprep.mubr.f32.mxu0 0.0
      %1466 = vmatmul.mubr.f32.gmra.mrb[0].mxu0 %v1370
      %v1467 = vpop.f32.mrb[0].mxu0
      %v1468 = vadd.f32 0.0, %v1467
      %v1469 = vpop.f32.mrb[0].mxu0
      %1470 = vmatprep.mubr.f32.mxu0 0.0
      %1471 = vmatmul.mubr.f32.gmra.mrb[0].mxu0 %v1373
      %v1472 = vpop.f32.mrb[0].mxu0
      %v1473 = vadd.f32 0.0, %v1472
      %v1474 = vpop.f32.mrb[0].mxu0
      %1475 = vmatprep.mubr.f32.mxu0 0.0
      %1476 = vmatmul.mubr.f32.gmra.mrb[0].mxu0 %v1376
      %v1477 = vpop.f32.mrb[0].mxu0
      %v1478 = vadd.f32 0.0, %v1477
      %v1479 = vpop.f32.mrb[0].mxu0
      %1480 = vmatprep.mubr.f32.mxu0 0.0
      %1481 = vmatmul.mubr.f32.gmra.mrb[0].mxu0 %v1379
      %v1482 = vpop.f32.mrb[0].mxu0
      %v1483 = vadd.f32 0.0, %v1482
      %v1484 = vpop.f32.mrb[0].mxu0
      %1485 = vdwg.mxu0
      %v1486 = vrcp.pop %v1287
      %v1487 = vrcp.pop %v1290
      %v1488 = vrcp.pop %v1293
      %v1489 = vrcp.pop %v1296
      %v1490 = vrcp.pop %v1299
      %v1491 = vrcp.pop %v1302
      %v1492 = vrcp.pop %v1305
      %v1493 = vrcp.pop %v1308
      %v1494 = vmul.f32 %v1448, %v1486
      %v1495 = vmul.f32 %v1453, %v1487
      %v1496 = vmul.f32 %v1458, %v1488
      %v1497 = vmul.f32 %v1463, %v1489
      %v1498 = vmul.f32 %v1468, %v1490
      %v1499 = vmul.f32 %v1473, %v1491
      %v1500 = vmul.f32 %v1478, %v1492
      %v1501 = vmul.f32 %v1483, %v1493
      %1510 = vrot.lane.b32.xlu0 %v1494, 8
      %v1511 = vpop.permute.xlu0 %1510
      %1512 = vrot.lane.b32.xlu0 %v1495, 8
      %v1513 = vpop.permute.xlu0 %1512
      %1514 = vrot.lane.b32.xlu0 %v1496, 8
      %v1515 = vpop.permute.xlu0 %1514
      %1516 = vrot.lane.b32.xlu0 %v1497, 8
      %v1517 = vpop.permute.xlu0 %1516
      %1518 = vrot.lane.b32.xlu0 %v1498, 8
      %v1519 = vpop.permute.xlu0 %1518
      %1520 = vrot.lane.b32.xlu0 %v1499, 8
      %v1521 = vpop.permute.xlu0 %1520
      %1522 = vrot.lane.b32.xlu0 %v1500, 8
      %v1523 = vpop.permute.xlu0 %1522
      %1524 = vrot.lane.b32.xlu0 %v1501, 8
      %v1525 = vpop.permute.xlu0 %1524
      %vm1534 = vcmask 130112
      %1535 = vst.msk [vmem:[#allocation2] sm:$0xff] %vm1534, %v1511
      %1536 = vst.msk [vmem:[#allocation2 + $0x8] sm:$0xff] %vm1534, %v1513
      %1537 = vst.msk [vmem:[#allocation2 + $0x10] sm:$0xff] %vm1534, %v1515
      %1538 = vst.msk [vmem:[#allocation2 + $0x18] sm:$0xff] %vm1534, %v1517
      %1539 = vst.msk [vmem:[#allocation2 + $0x20] sm:$0xff] %vm1534, %v1519
      %1540 = vst.msk [vmem:[#allocation2 + $0x28] sm:$0xff] %vm1534, %v1521
      %1541 = vst.msk [vmem:[#allocation2 + $0x30] sm:$0xff] %vm1534, %v1523
      %1542 = vst.msk [vmem:[#allocation2 + $0x38] sm:$0xff] %vm1534, %v1525
      %1543 = vrot.lane.b32.xlu0 %v598, 112
      %v1544 = vpop.permute.xlu0 %1543
      %1545 = vrot.lane.b32.xlu0 %v603, 112
      %v1546 = vpop.permute.xlu0 %1545
      %1547 = vrot.lane.b32.xlu0 %v608, 112
      %v1548 = vpop.permute.xlu0 %1547
      %1549 = vrot.lane.b32.xlu0 %v613, 112
      %v1550 = vpop.permute.xlu0 %1549
      %1551 = vrot.lane.b32.xlu0 %v618, 112
      %v1552 = vpop.permute.xlu0 %1551
      %1553 = vrot.lane.b32.xlu0 %v623, 112
      %v1554 = vpop.permute.xlu0 %1553
      %1555 = vrot.lane.b32.xlu0 %v628, 112
      %v1556 = vpop.permute.xlu0 %1555
      %1557 = vrot.lane.b32.xlu0 %v633, 112
      %v1558 = vpop.permute.xlu0 %1557
      %1559 = vrot.lane.b32.xlu0 %v636, 112
      %v1560 = vpop.permute.xlu0 %1559
      %1561 = vrot.lane.b32.xlu0 %v637, 112
      %v1562 = vpop.permute.xlu0 %1561
      %1563 = vrot.lane.b32.xlu0 %v638, 112
      %v1564 = vpop.permute.xlu0 %1563
      %1565 = vrot.lane.b32.xlu0 %v639, 112
      %v1566 = vpop.permute.xlu0 %1565
      %1567 = vrot.lane.b32.xlu0 %v640, 112
      %v1568 = vpop.permute.xlu0 %1567
      %1569 = vrot.lane.b32.xlu0 %v641, 112
      %v1570 = vpop.permute.xlu0 %1569
      %1571 = vrot.lane.b32.xlu0 %v642, 112
      %v1572 = vpop.permute.xlu0 %1571
      %1573 = vrot.lane.b32.xlu0 %v643, 112
      %v1574 = vpop.permute.xlu0 %1573
      %1575 = vrot.lane.b32.xlu0 %v644, 112
      %v1576 = vpop.permute.xlu0 %1575
      %1577 = vrot.lane.b32.xlu0 %v645, 112
      %v1578 = vpop.permute.xlu0 %1577
      %1579 = vrot.lane.b32.xlu0 %v646, 112
      %v1580 = vpop.permute.xlu0 %1579
      %1581 = vrot.lane.b32.xlu0 %v647, 112
      %v1582 = vpop.permute.xlu0 %1581
      %v1583 = vsel %vm660, %v1544, 0
      %v1585 = vsel %vm660, %v1546, 0
      %v1587 = vsel %vm660, %v1548, 0
      %v1589 = vsel %vm660, %v1550, 0
      %v1591 = vsel %vm660, %v1552, 0
      %v1593 = vsel %vm660, %v1554, 0
      %v1595 = vsel %vm660, %v1556, 0
      %v1597 = vsel %vm660, %v1558, 0
      %v1599 = vsel %vm660, %v1560, 0
      %v1601 = vsel %vm660, %v1562, 0
      %v1603 = vsel %vm660, %v1564, 0
      %v1605 = vsel %vm660, %v1566, 0
      %v1607 = vsel %vm660, %v1568, 0
      %v1609 = vsel %vm660, %v1570, 0
      %v1611 = vsel %vm660, %v1572, 0
      %v1613 = vsel %vm660, %v1574, 0
      %v1615 = vsel %vm660, %v1576, 0
      %v1617 = vsel %vm660, %v1578, 0
      %v1619 = vsel %vm660, %v1580, 0
      %v1621 = vsel %vm660, %v1582, 0
      %1623 = vmatprep.subr.mxu0 0.0
      %1624 = vmatpush1.xpose.msra.mxu0 %v1599
      %1625 = vmatprep.subr.mxu0 0.0
      %1626 = vmatpush1.xpose.msra.mxu0 %v1601
      %1627 = vmatprep.subr.mxu0 0.0
      %1628 = vmatpush1.xpose.msra.mxu0 %v1603
      %1629 = vmatprep.subr.mxu0 0.0
      %1630 = vmatpush1.xpose.msra.mxu0 %v1605
      %1631 = vmatprep.subr.mxu0 0.0
      %1632 = vmatpush1.xpose.msra.mxu0 %v1607
      %1633 = vmatprep.subr.mxu0 0.0
      %1634 = vmatpush1.xpose.msra.mxu0 %v1609
      %1635 = vmatprep.subr.mxu0 0.0
      %1636 = vmatpush1.xpose.msra.mxu0 %v1611
      %1637 = vmatprep.subr.mxu0 0.0
      %1638 = vmatpush1.xpose.msra.mxu0 %v1613
      %1639 = vmatprep.subr.mxu0 0.0
      %1640 = vmatpush1.xpose.msra.mxu0 %v1615
      %1641 = vmatprep.subr.mxu0 0.0
      %1642 = vmatpush1.xpose.msra.mxu0 %v1617
      %1643 = vmatprep.subr.mxu0 0.0
      %1644 = vmatpush1.xpose.msra.mxu0 %v1619
      %1645 = vmatprep.subr.mxu0 0.0
      %1646 = vmatpush1.xpose.msra.mxu0 %v1621
      %1647 = vmatprep.subr.mxu0 0.0
      %1648 = vmatpush1.xpose.msra.mxu0 0.0
      %1649 = vmatprep.subr.mxu0 0.0
      %1650 = vmatpush1.xpose.msra.mxu0 0.0
      %1651 = vmatprep.subr.mxu0 0.0
      %1652 = vmatpush1.xpose.msra.mxu0 0.0
      %1653 = vmatprep.subr.mxu0 0.0
      %1654 = vmatpush1.xpose.msra.mxu0 0.0
      %1655 = vmatprep.subr.mxu0 0.0
      %1656 = vmatpush1.xpose.msra.mxu0 0.0
      %1657 = vmatprep.subr.mxu0 0.0
      %1658 = vmatpush1.xpose.msra.mxu0 0.0
      %1659 = vmatprep.subr.mxu0 0.0
      %1660 = vmatpush1.xpose.msra.mxu0 0.0
      %1661 = vmatprep.subr.mxu0 0.0
      %1662 = vmatpush1.xpose.msra.mxu0 0.0
      %1663 = vmatprep.subr.mxu0 0.0
      %1664 = vmatpush1.xpose.msra.mxu0 0.0
      %1665 = vmatprep.subr.mxu0 0.0
      %1666 = vmatpush1.xpose.msra.mxu0 0.0
      %1667 = vmatprep.subr.mxu0 0.0
      %1668 = vmatpush1.xpose.msra.mxu0 0.0
      %1669 = vmatprep.subr.mxu0 0.0
      %1670 = vmatpush1.xpose.msra.mxu0 0.0
      %1671 = vmatprep.subr.mxu0 0.0
      %1672 = vmatpush1.xpose.msra.mxu0 0.0
      %1673 = vmatprep.subr.mxu0 0.0
      %1674 = vmatpush1.xpose.msra.mxu0 0.0
      %1675 = vmatprep.subr.mxu0 0.0
      %1676 = vmatpush1.xpose.msra.mxu0 0.0
      %1677 = vmatprep.subr.mxu0 0.0
      %1678 = vmatpush1.xpose.msra.mxu0 0.0
      %1679 = vmatprep.subr.mxu0 0.0
      %1680 = vmatpush1.xpose.msra.mxu0 0.0
      %1681 = vmatprep.subr.mxu0 0.0
      %1682 = vmatpush1.xpose.msra.mxu0 0.0
      %1683 = vmatprep.subr.mxu0 0.0
      %1684 = vmatpush1.xpose.msra.mxu0 0.0
      %1685 = vmatprep.subr.mxu0 0.0
      %1686 = vmatpush1.xpose.msra.mxu0 0.0
      %1687 = vmatprep.mubr.f32.mxu0 0.0
      %1688 = vmatmul.mubr.f32.gmra.mrb[0].mxu0 %v1583
      %v1689 = vpop.f32.mrb[0].mxu0
      %v1690 = vadd.f32 0.0, %v1689
      %v1691 = vpop.f32.mrb[0].mxu0
      %1692 = vmatprep.mubr.f32.mxu0 0.0
      %1693 = vmatmul.mubr.f32.gmra.mrb[0].mxu0 %v1585
      %v1694 = vpop.f32.mrb[0].mxu0
      %v1695 = vadd.f32 0.0, %v1694
      %v1696 = vpop.f32.mrb[0].mxu0
      %1697 = vmatprep.mubr.f32.mxu0 0.0
      %1698 = vmatmul.mubr.f32.gmra.mrb[0].mxu0 %v1587
      %v1699 = vpop.f32.mrb[0].mxu0
      %v1700 = vadd.f32 0.0, %v1699
      %v1701 = vpop.f32.mrb[0].mxu0
      %1702 = vmatprep.mubr.f32.mxu0 0.0
      %1703 = vmatmul.mubr.f32.gmra.mrb[0].mxu0 %v1589
      %v1704 = vpop.f32.mrb[0].mxu0
      %v1705 = vadd.f32 0.0, %v1704
      %v1706 = vpop.f32.mrb[0].mxu0
      %1707 = vmatprep.mubr.f32.mxu0 0.0
      %1708 = vmatmul.mubr.f32.gmra.mrb[0].mxu0 %v1591
      %v1709 = vpop.f32.mrb[0].mxu0
      %v1710 = vadd.f32 0.0, %v1709
      %v1711 = vpop.f32.mrb[0].mxu0
      %1712 = vmatprep.mubr.f32.mxu0 0.0
      %1713 = vmatmul.mubr.f32.gmra.mrb[0].mxu0 %v1593
      %v1714 = vpop.f32.mrb[0].mxu0
      %v1715 = vadd.f32 0.0, %v1714
      %v1716 = vpop.f32.mrb[0].mxu0
      %1717 = vmatprep.mubr.f32.mxu0 0.0
      %1718 = vmatmul.mubr.f32.gmra.mrb[0].mxu0 %v1595
      %v1719 = vpop.f32.mrb[0].mxu0
      %v1720 = vadd.f32 0.0, %v1719
      %v1721 = vpop.f32.mrb[0].mxu0
      %1722 = vmatprep.mubr.f32.mxu0 0.0
      %1723 = vmatmul.mubr.f32.gmra.mrb[0].mxu0 %v1597
      %v1724 = vpop.f32.mrb[0].mxu0
      %v1725 = vadd.f32 0.0, %v1724
      %v1726 = vpop.f32.mrb[0].mxu0
      %1727 = vdwg.mxu0
      %v1728 = vsel %vm826, %v1690, -inf
      %1729 = vmax.xlane.f32.xlu0 %v1728
      %v1730 = vpop.xlane.xlu0 %1729
      %v1731 = vsel %vm826, %v1695, -inf
      %1732 = vmax.xlane.f32.xlu0 %v1731
      %v1733 = vpop.xlane.xlu0 %1732
      %v1734 = vsel %vm826, %v1700, -inf
      %1735 = vmax.xlane.f32.xlu0 %v1734
      %v1736 = vpop.xlane.xlu0 %1735
      %v1737 = vsel %vm826, %v1705, -inf
      %1738 = vmax.xlane.f32.xlu0 %v1737
      %v1739 = vpop.xlane.xlu0 %1738
      %v1740 = vsel %vm826, %v1710, -inf
      %1741 = vmax.xlane.f32.xlu0 %v1740
      %v1742 = vpop.xlane.xlu0 %1741
      %v1743 = vsel %vm826, %v1715, -inf
      %1744 = vmax.xlane.f32.xlu0 %v1743
      %v1745 = vpop.xlane.xlu0 %1744
      %v1746 = vsel %vm826, %v1720, -inf
      %1747 = vmax.xlane.f32.xlu0 %v1746
      %v1748 = vpop.xlane.xlu0 %1747
      %v1749 = vsel %vm826, %v1725, -inf
      %1750 = vmax.xlane.f32.xlu0 %v1749
      %v1751 = vpop.xlane.xlu0 %1750
      %v1752 = vsub.f32 %v1690, %v1730
      %v1753 = vsub.f32 %v1695, %v1733
      %v1754 = vsub.f32 %v1700, %v1736
      %v1755 = vsub.f32 %v1705, %v1739
      %v1756 = vsub.f32 %v1710, %v1742
      %v1757 = vsub.f32 %v1715, %v1745
      %v1758 = vsub.f32 %v1720, %v1748
      %v1759 = vsub.f32 %v1725, %v1751
      %v1760 = vmul.f32 %v1752, 1.442695
      %v1761 = vpow.pop %v1760
      %v1762 = vmul.f32 %v1753, 1.442695
      %v1763 = vpow.pop %v1762
      %v1764 = vmul.f32 %v1754, 1.442695
      %v1765 = vpow.pop %v1764
      %v1766 = vmul.f32 %v1755, 1.442695
      %v1767 = vpow.pop %v1766
      %v1768 = vmul.f32 %v1756, 1.442695
      %v1769 = vpow.pop %v1768
      %v1770 = vmul.f32 %v1757, 1.442695
      %v1771 = vpow.pop %v1770
      %v1772 = vmul.f32 %v1758, 1.442695
      %v1773 = vpow.pop %v1772
      %v1774 = vmul.f32 %v1759, 1.442695
      %v1775 = vpow.pop %v1774
      %v1776 = vsel %vm826, %v1761, 0.0
      %1777 = vadd.xlane.f32.xlu0 %v1776
      %v1778 = vpop.xlane.xlu0 %1777
      %v1779 = vsel %vm826, %v1763, 0.0
      %1780 = vadd.xlane.f32.xlu0 %v1779
      %v1781 = vpop.xlane.xlu0 %1780
      %v1782 = vsel %vm826, %v1765, 0.0
      %1783 = vadd.xlane.f32.xlu0 %v1782
      %v1784 = vpop.xlane.xlu0 %1783
      %v1785 = vsel %vm826, %v1767, 0.0
      %1786 = vadd.xlane.f32.xlu0 %v1785
      %v1787 = vpop.xlane.xlu0 %1786
      %v1788 = vsel %vm826, %v1769, 0.0
      %1789 = vadd.xlane.f32.xlu0 %v1788
      %v1790 = vpop.xlane.xlu0 %1789
      %v1791 = vsel %vm826, %v1771, 0.0
      %1792 = vadd.xlane.f32.xlu0 %v1791
      %v1793 = vpop.xlane.xlu0 %1792
      %v1794 = vsel %vm826, %v1773, 0.0
      %1795 = vadd.xlane.f32.xlu0 %v1794
      %v1796 = vpop.xlane.xlu0 %1795
      %v1797 = vsel %vm826, %v1775, 0.0
      %1798 = vadd.xlane.f32.xlu0 %v1797
      %v1799 = vpop.xlane.xlu0 %1798
      %1800 = vrot.lane.b32.xlu0 %v648, 112
      %v1801 = vpop.permute.xlu0 %1800
      %1802 = vrot.lane.b32.xlu0 %v649, 112
      %v1803 = vpop.permute.xlu0 %1802
      %1804 = vrot.lane.b32.xlu0 %v650, 112
      %v1805 = vpop.permute.xlu0 %1804
      %1806 = vrot.lane.b32.xlu0 %v651, 112
      %v1807 = vpop.permute.xlu0 %1806
      %1808 = vrot.lane.b32.xlu0 %v652, 112
      %v1809 = vpop.permute.xlu0 %1808
      %1810 = vrot.lane.b32.xlu0 %v653, 112
      %v1811 = vpop.permute.xlu0 %1810
      %1812 = vrot.lane.b32.xlu0 %v654, 112
      %v1813 = vpop.permute.xlu0 %1812
      %1814 = vrot.lane.b32.xlu0 %v655, 112
      %v1815 = vpop.permute.xlu0 %1814
      %1816 = vrot.lane.b32.xlu0 %v656, 112
      %v1817 = vpop.permute.xlu0 %1816
      %1818 = vrot.lane.b32.xlu0 %v657, 112
      %v1819 = vpop.permute.xlu0 %1818
      %1820 = vrot.lane.b32.xlu0 %v658, 112
      %v1821 = vpop.permute.xlu0 %1820
      %1822 = vrot.lane.b32.xlu0 %v659, 112
      %v1823 = vpop.permute.xlu0 %1822
      %v1837 = vsel %vm826, %v1761, 0
      %v1840 = vsel %vm826, %v1763, 0
      %v1843 = vsel %vm826, %v1765, 0
      %v1846 = vsel %vm826, %v1767, 0
      %v1849 = vsel %vm826, %v1769, 0
      %v1852 = vsel %vm826, %v1771, 0
      %v1855 = vsel %vm826, %v1773, 0
      %v1858 = vsel %vm826, %v1775, 0
      %1860 = vmatprep.subr.mxu0 0.0
      %1861 = vmatpush1.msra.mxu0 %v1801
      %1862 = vmatprep.subr.mxu0 0.0
      %1863 = vmatpush1.msra.mxu0 %v1803
      %1864 = vmatprep.subr.mxu0 0.0
      %1865 = vmatpush1.msra.mxu0 %v1805
      %1866 = vmatprep.subr.mxu0 0.0
      %1867 = vmatpush1.msra.mxu0 %v1807
      %1868 = vmatprep.subr.mxu0 0.0
      %1869 = vmatpush1.msra.mxu0 %v1809
      %1870 = vmatprep.subr.mxu0 0.0
      %1871 = vmatpush1.msra.mxu0 %v1811
      %1872 = vmatprep.subr.mxu0 0.0
      %1873 = vmatpush1.msra.mxu0 %v1813
      %1874 = vmatprep.subr.mxu0 0.0
      %1875 = vmatpush1.msra.mxu0 %v1815
      %1876 = vmatprep.subr.mxu0 0.0
      %1877 = vmatpush1.msra.mxu0 %v1817
      %1878 = vmatprep.subr.mxu0 0.0
      %1879 = vmatpush1.msra.mxu0 %v1819
      %1880 = vmatprep.subr.mxu0 0.0
      %1881 = vmatpush1.msra.mxu0 %v1821
      %1882 = vmatprep.subr.mxu0 0.0
      %1883 = vmatpush1.msra.mxu0 %v1823
      %1884 = vmatprep.subr.mxu0 0.0
      %1885 = vmatpush1.msra.mxu0 0.0
      %1886 = vmatprep.subr.mxu0 0.0
      %1887 = vmatpush1.msra.mxu0 0.0
      %1888 = vmatprep.subr.mxu0 0.0
      %1889 = vmatpush1.msra.mxu0 0.0
      %1890 = vmatprep.subr.mxu0 0.0
      %1891 = vmatpush1.msra.mxu0 0.0
      %1892 = vmatprep.subr.mxu0 0.0
      %1893 = vmatpush1.msra.mxu0 0.0
      %1894 = vmatprep.subr.mxu0 0.0
      %1895 = vmatpush1.msra.mxu0 0.0
      %1896 = vmatprep.subr.mxu0 0.0
      %1897 = vmatpush1.msra.mxu0 0.0
      %1898 = vmatprep.subr.mxu0 0.0
      %1899 = vmatpush1.msra.mxu0 0.0
      %1900 = vmatprep.subr.mxu0 0.0
      %1901 = vmatpush1.msra.mxu0 0.0
      %1902 = vmatprep.subr.mxu0 0.0
      %1903 = vmatpush1.msra.mxu0 0.0
      %1904 = vmatprep.subr.mxu0 0.0
      %1905 = vmatpush1.msra.mxu0 0.0
      %1906 = vmatprep.subr.mxu0 0.0
      %1907 = vmatpush1.msra.mxu0 0.0
      %1908 = vmatprep.subr.mxu0 0.0
      %1909 = vmatpush1.msra.mxu0 0.0
      %1910 = vmatprep.subr.mxu0 0.0
      %1911 = vmatpush1.msra.mxu0 0.0
      %1912 = vmatprep.subr.mxu0 0.0
      %1913 = vmatpush1.msra.mxu0 0.0
      %1914 = vmatprep.subr.mxu0 0.0
      %1915 = vmatpush1.msra.mxu0 0.0
      %1916 = vmatprep.subr.mxu0 0.0
      %1917 = vmatpush1.msra.mxu0 0.0
      %1918 = vmatprep.subr.mxu0 0.0
      %1919 = vmatpush1.msra.mxu0 0.0
      %1920 = vmatprep.subr.mxu0 0.0
      %1921 = vmatpush1.msra.mxu0 0.0
      %1922 = vmatprep.subr.mxu0 0.0
      %1923 = vmatpush1.msra.mxu0 0.0
      %1924 = vmatprep.mubr.f32.mxu0 0.0
      %1925 = vmatmul.mubr.f32.gmra.mrb[0].mxu0 %v1837
      %v1926 = vpop.f32.mrb[0].mxu0
      %v1927 = vadd.f32 0.0, %v1926
      %v1928 = vpop.f32.mrb[0].mxu0
      %1929 = vmatprep.mubr.f32.mxu0 0.0
      %1930 = vmatmul.mubr.f32.gmra.mrb[0].mxu0 %v1840
      %v1931 = vpop.f32.mrb[0].mxu0
      %v1932 = vadd.f32 0.0, %v1931
      %v1933 = vpop.f32.mrb[0].mxu0
      %1934 = vmatprep.mubr.f32.mxu0 0.0
      %1935 = vmatmul.mubr.f32.gmra.mrb[0].mxu0 %v1843
      %v1936 = vpop.f32.mrb[0].mxu0
      %v1937 = vadd.f32 0.0, %v1936
      %v1938 = vpop.f32.mrb[0].mxu0
      %1939 = vmatprep.mubr.f32.mxu0 0.0
      %1940 = vmatmul.mubr.f32.gmra.mrb[0].mxu0 %v1846
      %v1941 = vpop.f32.mrb[0].mxu0
      %v1942 = vadd.f32 0.0, %v1941
      %v1943 = vpop.f32.mrb[0].mxu0
      %1944 = vmatprep.mubr.f32.mxu0 0.0
      %1945 = vmatmul.mubr.f32.gmra.mrb[0].mxu0 %v1849
      %v1946 = vpop.f32.mrb[0].mxu0
      %v1947 = vadd.f32 0.0, %v1946
      %v1948 = vpop.f32.mrb[0].mxu0
      %1949 = vmatprep.mubr.f32.mxu0 0.0
      %1950 = vmatmul.mubr.f32.gmra.mrb[0].mxu0 %v1852
      %v1951 = vpop.f32.mrb[0].mxu0
      %v1952 = vadd.f32 0.0, %v1951
      %v1953 = vpop.f32.mrb[0].mxu0
      %1954 = vmatprep.mubr.f32.mxu0 0.0
      %1955 = vmatmul.mubr.f32.gmra.mrb[0].mxu0 %v1855
      %v1956 = vpop.f32.mrb[0].mxu0
      %v1957 = vadd.f32 0.0, %v1956
      %v1958 = vpop.f32.mrb[0].mxu0
      %1959 = vmatprep.mubr.f32.mxu0 0.0
      %1960 = vmatmul.mubr.f32.gmra.mrb[0].mxu0 %v1858
      %v1961 = vpop.f32.mrb[0].mxu0
      %v1962 = vadd.f32 0.0, %v1961
      %v1963 = vpop.f32.mrb[0].mxu0
      %1964 = vdwg.mxu0
      %v1965 = vrcp.pop %v1778
      %v1966 = vrcp.pop %v1781
      %v1967 = vrcp.pop %v1784
      %v1968 = vrcp.pop %v1787
      %v1969 = vrcp.pop %v1790
      %v1970 = vrcp.pop %v1793
      %v1971 = vrcp.pop %v1796
      %v1972 = vrcp.pop %v1799
      %v1973 = vmul.f32 %v1927, %v1965
      %v1974 = vmul.f32 %v1932, %v1966
      %v1975 = vmul.f32 %v1937, %v1967
      %v1976 = vmul.f32 %v1942, %v1968
      %v1977 = vmul.f32 %v1947, %v1969
      %v1978 = vmul.f32 %v1952, %v1970
      %v1979 = vmul.f32 %v1957, %v1971
      %v1980 = vmul.f32 %v1962, %v1972
      %1989 = vrot.lane.b32.xlu0 %v1973, 16
      %v1990 = vpop.permute.xlu0 %1989
      %1991 = vrot.lane.b32.xlu0 %v1974, 16
      %v1992 = vpop.permute.xlu0 %1991
      %1993 = vrot.lane.b32.xlu0 %v1975, 16
      %v1994 = vpop.permute.xlu0 %1993
      %1995 = vrot.lane.b32.xlu0 %v1976, 16
      %v1996 = vpop.permute.xlu0 %1995
      %1997 = vrot.lane.b32.xlu0 %v1977, 16
      %v1998 = vpop.permute.xlu0 %1997
      %1999 = vrot.lane.b32.xlu0 %v1978, 16
      %v2000 = vpop.permute.xlu0 %1999
      %2001 = vrot.lane.b32.xlu0 %v1979, 16
      %v2002 = vpop.permute.xlu0 %2001
      %2003 = vrot.lane.b32.xlu0 %v1980, 16
      %v2004 = vpop.permute.xlu0 %2003
      %vm2013 = vcmask 195712
      %2014 = vst.msk [vmem:[#allocation2] sm:$0xff] %vm2013, %v1990
      %2015 = vst.msk [vmem:[#allocation2 + $0x8] sm:$0xff] %vm2013, %v1992
      %2016 = vst.msk [vmem:[#allocation2 + $0x10] sm:$0xff] %vm2013, %v1994
      %2017 = vst.msk [vmem:[#allocation2 + $0x18] sm:$0xff] %vm2013, %v1996
      %2018 = vst.msk [vmem:[#allocation2 + $0x20] sm:$0xff] %vm2013, %v1998
      %2019 = vst.msk [vmem:[#allocation2 + $0x28] sm:$0xff] %vm2013, %v2000
      %2020 = vst.msk [vmem:[#allocation2 + $0x30] sm:$0xff] %vm2013, %v2002
      %2021 = vst.msk [vmem:[#allocation2 + $0x38] sm:$0xff] %vm2013, %v2004
      %2022 = vrot.lane.b32.xlu0 %v598, 104
      %v2023 = vpop.permute.xlu0 %2022
      %2024 = vrot.lane.b32.xlu0 %v603, 104
      %v2025 = vpop.permute.xlu0 %2024
      %2026 = vrot.lane.b32.xlu0 %v608, 104
      %v2027 = vpop.permute.xlu0 %2026
      %2028 = vrot.lane.b32.xlu0 %v613, 104
      %v2029 = vpop.permute.xlu0 %2028
      %2030 = vrot.lane.b32.xlu0 %v618, 104
      %v2031 = vpop.permute.xlu0 %2030
      %2032 = vrot.lane.b32.xlu0 %v623, 104
      %v2033 = vpop.permute.xlu0 %2032
      %2034 = vrot.lane.b32.xlu0 %v628, 104
      %v2035 = vpop.permute.xlu0 %2034
      %2036 = vrot.lane.b32.xlu0 %v633, 104
      %v2037 = vpop.permute.xlu0 %2036
      %2038 = vrot.lane.b32.xlu0 %v636, 104
      %v2039 = vpop.permute.xlu0 %2038
      %2040 = vrot.lane.b32.xlu0 %v637, 104
      %v2041 = vpop.permute.xlu0 %2040
      %2042 = vrot.lane.b32.xlu0 %v638, 104
      %v2043 = vpop.permute.xlu0 %2042
      %2044 = vrot.lane.b32.xlu0 %v639, 104
      %v2045 = vpop.permute.xlu0 %2044
      %2046 = vrot.lane.b32.xlu0 %v640, 104
      %v2047 = vpop.permute.xlu0 %2046
      %2048 = vrot.lane.b32.xlu0 %v641, 104
      %v2049 = vpop.permute.xlu0 %2048
      %2050 = vrot.lane.b32.xlu0 %v642, 104
      %v2051 = vpop.permute.xlu0 %2050
      %2052 = vrot.lane.b32.xlu0 %v643, 104
      %v2053 = vpop.permute.xlu0 %2052
      %2054 = vrot.lane.b32.xlu0 %v644, 104
      %v2055 = vpop.permute.xlu0 %2054
      %2056 = vrot.lane.b32.xlu0 %v645, 104
      %v2057 = vpop.permute.xlu0 %2056
      %2058 = vrot.lane.b32.xlu0 %v646, 104
      %v2059 = vpop.permute.xlu0 %2058
      %2060 = vrot.lane.b32.xlu0 %v647, 104
      %v2061 = vpop.permute.xlu0 %2060
      %v2062 = vsel %vm660, %v2023, 0
      %v2064 = vsel %vm660, %v2025, 0
      %v2066 = vsel %vm660, %v2027, 0
      %v2068 = vsel %vm660, %v2029, 0
      %v2070 = vsel %vm660, %v2031, 0
      %v2072 = vsel %vm660, %v2033, 0
      %v2074 = vsel %vm660, %v2035, 0
      %v2076 = vsel %vm660, %v2037, 0
      %v2078 = vsel %vm660, %v2039, 0
      %v2080 = vsel %vm660, %v2041, 0
      %v2082 = vsel %vm660, %v2043, 0
      %v2084 = vsel %vm660, %v2045, 0
      %v2086 = vsel %vm660, %v2047, 0
      %v2088 = vsel %vm660, %v2049, 0
      %v2090 = vsel %vm660, %v2051, 0
      %v2092 = vsel %vm660, %v2053, 0
      %v2094 = vsel %vm660, %v2055, 0
      %v2096 = vsel %vm660, %v2057, 0
      %v2098 = vsel %vm660, %v2059, 0
      %v2100 = vsel %vm660, %v2061, 0
      %2102 = vmatprep.subr.mxu0 0.0
      %2103 = vmatpush1.xpose.msra.mxu0 %v2078
      %2104 = vmatprep.subr.mxu0 0.0
      %2105 = vmatpush1.xpose.msra.mxu0 %v2080
      %2106 = vmatprep.subr.mxu0 0.0
      %2107 = vmatpush1.xpose.msra.mxu0 %v2082
      %2108 = vmatprep.subr.mxu0 0.0
      %2109 = vmatpush1.xpose.msra.mxu0 %v2084
      %2110 = vmatprep.subr.mxu0 0.0
      %2111 = vmatpush1.xpose.msra.mxu0 %v2086
      %2112 = vmatprep.subr.mxu0 0.0
      %2113 = vmatpush1.xpose.msra.mxu0 %v2088
      %2114 = vmatprep.subr.mxu0 0.0
      %2115 = vmatpush1.xpose.msra.mxu0 %v2090
      %2116 = vmatprep.subr.mxu0 0.0
      %2117 = vmatpush1.xpose.msra.mxu0 %v2092
      %2118 = vmatprep.subr.mxu0 0.0
      %2119 = vmatpush1.xpose.msra.mxu0 %v2094
      %2120 = vmatprep.subr.mxu0 0.0
      %2121 = vmatpush1.xpose.msra.mxu0 %v2096
      %2122 = vmatprep.subr.mxu0 0.0
      %2123 = vmatpush1.xpose.msra.mxu0 %v2098
      %2124 = vmatprep.subr.mxu0 0.0
      %2125 = vmatpush1.xpose.msra.mxu0 %v2100
      %2126 = vmatprep.subr.mxu0 0.0
      %2127 = vmatpush1.xpose.msra.mxu0 0.0
      %2128 = vmatprep.subr.mxu0 0.0
      %2129 = vmatpush1.xpose.msra.mxu0 0.0
      %2130 = vmatprep.subr.mxu0 0.0
      %2131 = vmatpush1.xpose.msra.mxu0 0.0
      %2132 = vmatprep.subr.mxu0 0.0
      %2133 = vmatpush1.xpose.msra.mxu0 0.0
      %2134 = vmatprep.subr.mxu0 0.0
      %2135 = vmatpush1.xpose.msra.mxu0 0.0
      %2136 = vmatprep.subr.mxu0 0.0
      %2137 = vmatpush1.xpose.msra.mxu0 0.0
      %2138 = vmatprep.subr.mxu0 0.0
      %2139 = vmatpush1.xpose.msra.mxu0 0.0
      %2140 = vmatprep.subr.mxu0 0.0
      %2141 = vmatpush1.xpose.msra.mxu0 0.0
      %2142 = vmatprep.subr.mxu0 0.0
      %2143 = vmatpush1.xpose.msra.mxu0 0.0
      %2144 = vmatprep.subr.mxu0 0.0
      %2145 = vmatpush1.xpose.msra.mxu0 0.0
      %2146 = vmatprep.subr.mxu0 0.0
      %2147 = vmatpush1.xpose.msra.mxu0 0.0
      %2148 = vmatprep.subr.mxu0 0.0
      %2149 = vmatpush1.xpose.msra.mxu0 0.0
      %2150 = vmatprep.subr.mxu0 0.0
      %2151 = vmatpush1.xpose.msra.mxu0 0.0
      %2152 = vmatprep.subr.mxu0 0.0
      %2153 = vmatpush1.xpose.msra.mxu0 0.0
      %2154 = vmatprep.subr.mxu0 0.0
      %2155 = vmatpush1.xpose.msra.mxu0 0.0
      %2156 = vmatprep.subr.mxu0 0.0
      %2157 = vmatpush1.xpose.msra.mxu0 0.0
      %2158 = vmatprep.subr.mxu0 0.0
      %2159 = vmatpush1.xpose.msra.mxu0 0.0
      %2160 = vmatprep.subr.mxu0 0.0
      %2161 = vmatpush1.xpose.msra.mxu0 0.0
      %2162 = vmatprep.subr.mxu0 0.0
      %2163 = vmatpush1.xpose.msra.mxu0 0.0
      %2164 = vmatprep.subr.mxu0 0.0
      %2165 = vmatpush1.xpose.msra.mxu0 0.0
      %2166 = vmatprep.mubr.f32.mxu0 0.0
      %2167 = vmatmul.mubr.f32.gmra.mrb[0].mxu0 %v2062
      %v2168 = vpop.f32.mrb[0].mxu0
      %v2169 = vadd.f32 0.0, %v2168
      %v2170 = vpop.f32.mrb[0].mxu0
      %2171 = vmatprep.mubr.f32.mxu0 0.0
      %2172 = vmatmul.mubr.f32.gmra.mrb[0].mxu0 %v2064
      %v2173 = vpop.f32.mrb[0].mxu0
      %v2174 = vadd.f32 0.0, %v2173
      %v2175 = vpop.f32.mrb[0].mxu0
      %2176 = vmatprep.mubr.f32.mxu0 0.0
      %2177 = vmatmul.mubr.f32.gmra.mrb[0].mxu0 %v2066
      %v2178 = vpop.f32.mrb[0].mxu0
      %v2179 = vadd.f32 0.0, %v2178
      %v2180 = vpop.f32.mrb[0].mxu0
      %2181 = vmatprep.mubr.f32.mxu0 0.0
      %2182 = vmatmul.mubr.f32.gmra.mrb[0].mxu0 %v2068
      %v2183 = vpop.f32.mrb[0].mxu0
      %v2184 = vadd.f32 0.0, %v2183
      %v2185 = vpop.f32.mrb[0].mxu0
      %2186 = vmatprep.mubr.f32.mxu0 0.0
      %2187 = vmatmul.mubr.f32.gmra.mrb[0].mxu0 %v2070
      %v2188 = vpop.f32.mrb[0].mxu0
      %v2189 = vadd.f32 0.0, %v2188
      %v2190 = vpop.f32.mrb[0].mxu0
      %2191 = vmatprep.mubr.f32.mxu0 0.0
      %2192 = vmatmul.mubr.f32.gmra.mrb[0].mxu0 %v2072
      %v2193 = vpop.f32.mrb[0].mxu0
      %v2194 = vadd.f32 0.0, %v2193
      %v2195 = vpop.f32.mrb[0].mxu0
      %2196 = vmatprep.mubr.f32.mxu0 0.0
      %2197 = vmatmul.mubr.f32.gmra.mrb[0].mxu0 %v2074
      %v2198 = vpop.f32.mrb[0].mxu0
      %v2199 = vadd.f32 0.0, %v2198
      %v2200 = vpop.f32.mrb[0].mxu0
      %2201 = vmatprep.mubr.f32.mxu0 0.0
      %2202 = vmatmul.mubr.f32.gmra.mrb[0].mxu0 %v2076
      %v2203 = vpop.f32.mrb[0].mxu0
      %v2204 = vadd.f32 0.0, %v2203
      %v2205 = vpop.f32.mrb[0].mxu0
      %2206 = vdwg.mxu0
      %v2207 = vsel %vm826, %v2169, -inf
      %2208 = vmax.xlane.f32.xlu0 %v2207
      %v2209 = vpop.xlane.xlu0 %2208
      %v2210 = vsel %vm826, %v2174, -inf
      %2211 = vmax.xlane.f32.xlu0 %v2210
      %v2212 = vpop.xlane.xlu0 %2211
      %v2213 = vsel %vm826, %v2179, -inf
      %2214 = vmax.xlane.f32.xlu0 %v2213
      %v2215 = vpop.xlane.xlu0 %2214
      %v2216 = vsel %vm826, %v2184, -inf
      %2217 = vmax.xlane.f32.xlu0 %v2216
      %v2218 = vpop.xlane.xlu0 %2217
      %v2219 = vsel %vm826, %v2189, -inf
      %2220 = vmax.xlane.f32.xlu0 %v2219
      %v2221 = vpop.xlane.xlu0 %2220
      %v2222 = vsel %vm826, %v2194, -inf
      %2223 = vmax.xlane.f32.xlu0 %v2222
      %v2224 = vpop.xlane.xlu0 %2223
      %v2225 = vsel %vm826, %v2199, -inf
      %2226 = vmax.xlane.f32.xlu0 %v2225
      %v2227 = vpop.xlane.xlu0 %2226
      %v2228 = vsel %vm826, %v2204, -inf
      %2229 = vmax.xlane.f32.xlu0 %v2228
      %v2230 = vpop.xlane.xlu0 %2229
      %v2231 = vsub.f32 %v2169, %v2209
      %v2232 = vsub.f32 %v2174, %v2212
      %v2233 = vsub.f32 %v2179, %v2215
      %v2234 = vsub.f32 %v2184, %v2218
      %v2235 = vsub.f32 %v2189, %v2221
      %v2236 = vsub.f32 %v2194, %v2224
      %v2237 = vsub.f32 %v2199, %v2227
      %v2238 = vsub.f32 %v2204, %v2230
      %v2239 = vmul.f32 %v2231, 1.442695
      %v2240 = vpow.pop %v2239
      %v2241 = vmul.f32 %v2232, 1.442695
      %v2242 = vpow.pop %v2241
      %v2243 = vmul.f32 %v2233, 1.442695
      %v2244 = vpow.pop %v2243
      %v2245 = vmul.f32 %v2234, 1.442695
      %v2246 = vpow.pop %v2245
      %v2247 = vmul.f32 %v2235, 1.442695
      %v2248 = vpow.pop %v2247
      %v2249 = vmul.f32 %v2236, 1.442695
      %v2250 = vpow.pop %v2249
      %v2251 = vmul.f32 %v2237, 1.442695
      %v2252 = vpow.pop %v2251
      %v2253 = vmul.f32 %v2238, 1.442695
      %v2254 = vpow.pop %v2253
      %v2255 = vsel %vm826, %v2240, 0.0
      %2256 = vadd.xlane.f32.xlu0 %v2255
      %v2257 = vpop.xlane.xlu0 %2256
      %v2258 = vsel %vm826, %v2242, 0.0
      %2259 = vadd.xlane.f32.xlu0 %v2258
      %v2260 = vpop.xlane.xlu0 %2259
      %v2261 = vsel %vm826, %v2244, 0.0
      %2262 = vadd.xlane.f32.xlu0 %v2261
      %v2263 = vpop.xlane.xlu0 %2262
      %v2264 = vsel %vm826, %v2246, 0.0
      %2265 = vadd.xlane.f32.xlu0 %v2264
      %v2266 = vpop.xlane.xlu0 %2265
      %v2267 = vsel %vm826, %v2248, 0.0
      %2268 = vadd.xlane.f32.xlu0 %v2267
      %v2269 = vpop.xlane.xlu0 %2268
      %v2270 = vsel %vm826, %v2250, 0.0
      %2271 = vadd.xlane.f32.xlu0 %v2270
      %v2272 = vpop.xlane.xlu0 %2271
      %v2273 = vsel %vm826, %v2252, 0.0
      %2274 = vadd.xlane.f32.xlu0 %v2273
      %v2275 = vpop.xlane.xlu0 %2274
      %v2276 = vsel %vm826, %v2254, 0.0
      %2277 = vadd.xlane.f32.xlu0 %v2276
      %v2278 = vpop.xlane.xlu0 %2277
      %2279 = vrot.lane.b32.xlu0 %v648, 104
      %v2280 = vpop.permute.xlu0 %2279
      %2281 = vrot.lane.b32.xlu0 %v649, 104
      %v2282 = vpop.permute.xlu0 %2281
      %2283 = vrot.lane.b32.xlu0 %v650, 104
      %v2284 = vpop.permute.xlu0 %2283
      %2285 = vrot.lane.b32.xlu0 %v651, 104
      %v2286 = vpop.permute.xlu0 %2285
      %2287 = vrot.lane.b32.xlu0 %v652, 104
      %v2288 = vpop.permute.xlu0 %2287
      %2289 = vrot.lane.b32.xlu0 %v653, 104
      %v2290 = vpop.permute.xlu0 %2289
      %2291 = vrot.lane.b32.xlu0 %v654, 104
      %v2292 = vpop.permute.xlu0 %2291
      %2293 = vrot.lane.b32.xlu0 %v655, 104
      %v2294 = vpop.permute.xlu0 %2293
      %2295 = vrot.lane.b32.xlu0 %v656, 104
      %v2296 = vpop.permute.xlu0 %2295
      %2297 = vrot.lane.b32.xlu0 %v657, 104
      %v2298 = vpop.permute.xlu0 %2297
      %2299 = vrot.lane.b32.xlu0 %v658, 104
      %v2300 = vpop.permute.xlu0 %2299
      %2301 = vrot.lane.b32.xlu0 %v659, 104
      %v2302 = vpop.permute.xlu0 %2301
      %v2316 = vsel %vm826, %v2240, 0
      %v2319 = vsel %vm826, %v2242, 0
      %v2322 = vsel %vm826, %v2244, 0
      %v2325 = vsel %vm826, %v2246, 0
      %v2328 = vsel %vm826, %v2248, 0
      %v2331 = vsel %vm826, %v2250, 0
      %v2334 = vsel %vm826, %v2252, 0
      %v2337 = vsel %vm826, %v2254, 0
      %2339 = vmatprep.subr.mxu0 0.0
      %2340 = vmatpush1.msra.mxu0 %v2280
      %2341 = vmatprep.subr.mxu0 0.0
      %2342 = vmatpush1.msra.mxu0 %v2282
      %2343 = vmatprep.subr.mxu0 0.0
      %2344 = vmatpush1.msra.mxu0 %v2284
      %2345 = vmatprep.subr.mxu0 0.0
      %2346 = vmatpush1.msra.mxu0 %v2286
      %2347 = vmatprep.subr.mxu0 0.0
      %2348 = vmatpush1.msra.mxu0 %v2288
      %2349 = vmatprep.subr.mxu0 0.0
      %2350 = vmatpush1.msra.mxu0 %v2290
      %2351 = vmatprep.subr.mxu0 0.0
      %2352 = vmatpush1.msra.mxu0 %v2292
      %2353 = vmatprep.subr.mxu0 0.0
      %2354 = vmatpush1.msra.mxu0 %v2294
      %2355 = vmatprep.subr.mxu0 0.0
      %2356 = vmatpush1.msra.mxu0 %v2296
      %2357 = vmatprep.subr.mxu0 0.0
      %2358 = vmatpush1.msra.mxu0 %v2298
      %2359 = vmatprep.subr.mxu0 0.0
      %2360 = vmatpush1.msra.mxu0 %v2300
      %2361 = vmatprep.subr.mxu0 0.0
      %2362 = vmatpush1.msra.mxu0 %v2302
      %2363 = vmatprep.subr.mxu0 0.0
      %2364 = vmatpush1.msra.mxu0 0.0
      %2365 = vmatprep.subr.mxu0 0.0
      %2366 = vmatpush1.msra.mxu0 0.0
      %2367 = vmatprep.subr.mxu0 0.0
      %2368 = vmatpush1.msra.mxu0 0.0
      %2369 = vmatprep.subr.mxu0 0.0
      %2370 = vmatpush1.msra.mxu0 0.0
      %2371 = vmatprep.subr.mxu0 0.0
      %2372 = vmatpush1.msra.mxu0 0.0
      %2373 = vmatprep.subr.mxu0 0.0
      %2374 = vmatpush1.msra.mxu0 0.0
      %2375 = vmatprep.subr.mxu0 0.0
      %2376 = vmatpush1.msra.mxu0 0.0
      %2377 = vmatprep.subr.mxu0 0.0
      %2378 = vmatpush1.msra.mxu0 0.0
      %2379 = vmatprep.subr.mxu0 0.0
      %2380 = vmatpush1.msra.mxu0 0.0
      %2381 = vmatprep.subr.mxu0 0.0
      %2382 = vmatpush1.msra.mxu0 0.0
      %2383 = vmatprep.subr.mxu0 0.0
      %2384 = vmatpush1.msra.mxu0 0.0
      %2385 = vmatprep.subr.mxu0 0.0
      %2386 = vmatpush1.msra.mxu0 0.0
      %2387 = vmatprep.subr.mxu0 0.0
      %2388 = vmatpush1.msra.mxu0 0.0
      %2389 = vmatprep.subr.mxu0 0.0
      %2390 = vmatpush1.msra.mxu0 0.0
      %2391 = vmatprep.subr.mxu0 0.0
      %2392 = vmatpush1.msra.mxu0 0.0
      %2393 = vmatprep.subr.mxu0 0.0
      %2394 = vmatpush1.msra.mxu0 0.0
      %2395 = vmatprep.subr.mxu0 0.0
      %2396 = vmatpush1.msra.mxu0 0.0
      %2397 = vmatprep.subr.mxu0 0.0
      %2398 = vmatpush1.msra.mxu0 0.0
      %2399 = vmatprep.subr.mxu0 0.0
      %2400 = vmatpush1.msra.mxu0 0.0
      %2401 = vmatprep.subr.mxu0 0.0
      %2402 = vmatpush1.msra.mxu0 0.0
      %2403 = vmatprep.mubr.f32.mxu0 0.0
      %2404 = vmatmul.mubr.f32.gmra.mrb[0].mxu0 %v2316
      %v2405 = vpop.f32.mrb[0].mxu0
      %v2406 = vadd.f32 0.0, %v2405
      %v2407 = vpop.f32.mrb[0].mxu0
      %2408 = vmatprep.mubr.f32.mxu0 0.0
      %2409 = vmatmul.mubr.f32.gmra.mrb[0].mxu0 %v2319
      %v2410 = vpop.f32.mrb[0].mxu0
      %v2411 = vadd.f32 0.0, %v2410
      %v2412 = vpop.f32.mrb[0].mxu0
      %2413 = vmatprep.mubr.f32.mxu0 0.0
      %2414 = vmatmul.mubr.f32.gmra.mrb[0].mxu0 %v2322
      %v2415 = vpop.f32.mrb[0].mxu0
      %v2416 = vadd.f32 0.0, %v2415
      %v2417 = vpop.f32.mrb[0].mxu0
      %2418 = vmatprep.mubr.f32.mxu0 0.0
      %2419 = vmatmul.mubr.f32.gmra.mrb[0].mxu0 %v2325
      %v2420 = vpop.f32.mrb[0].mxu0
      %v2421 = vadd.f32 0.0, %v2420
      %v2422 = vpop.f32.mrb[0].mxu0
      %2423 = vmatprep.mubr.f32.mxu0 0.0
      %2424 = vmatmul.mubr.f32.gmra.mrb[0].mxu0 %v2328
      %v2425 = vpop.f32.mrb[0].mxu0
      %v2426 = vadd.f32 0.0, %v2425
      %v2427 = vpop.f32.mrb[0].mxu0
      %2428 = vmatprep.mubr.f32.mxu0 0.0
      %2429 = vmatmul.mubr.f32.gmra.mrb[0].mxu0 %v2331
      %v2430 = vpop.f32.mrb[0].mxu0
      %v2431 = vadd.f32 0.0, %v2430
      %v2432 = vpop.f32.mrb[0].mxu0
      %2433 = vmatprep.mubr.f32.mxu0 0.0
      %2434 = vmatmul.mubr.f32.gmra.mrb[0].mxu0 %v2334
      %v2435 = vpop.f32.mrb[0].mxu0
      %v2436 = vadd.f32 0.0, %v2435
      %v2437 = vpop.f32.mrb[0].mxu0
      %2438 = vmatprep.mubr.f32.mxu0 0.0
      %2439 = vmatmul.mubr.f32.gmra.mrb[0].mxu0 %v2337
      %v2440 = vpop.f32.mrb[0].mxu0
      %v2441 = vadd.f32 0.0, %v2440
      %v2442 = vpop.f32.mrb[0].mxu0
      %2443 = vdwg.mxu0
      %v2444 = vrcp.pop %v2257
      %v2445 = vrcp.pop %v2260
      %v2446 = vrcp.pop %v2263
      %v2447 = vrcp.pop %v2266
      %v2448 = vrcp.pop %v2269
      %v2449 = vrcp.pop %v2272
      %v2450 = vrcp.pop %v2275
      %v2451 = vrcp.pop %v2278
      %v2452 = vmul.f32 %v2406, %v2444
      %v2453 = vmul.f32 %v2411, %v2445
      %v2454 = vmul.f32 %v2416, %v2446
      %v2455 = vmul.f32 %v2421, %v2447
      %v2456 = vmul.f32 %v2426, %v2448
      %v2457 = vmul.f32 %v2431, %v2449
      %v2458 = vmul.f32 %v2436, %v2450
      %v2459 = vmul.f32 %v2441, %v2451
      %2468 = vrot.lane.b32.xlu0 %v2452, 24
      %v2469 = vpop.permute.xlu0 %2468
      %2470 = vrot.lane.b32.xlu0 %v2453, 24
      %v2471 = vpop.permute.xlu0 %2470
      %2472 = vrot.lane.b32.xlu0 %v2454, 24
      %v2473 = vpop.permute.xlu0 %2472
      %2474 = vrot.lane.b32.xlu0 %v2455, 24
      %v2475 = vpop.permute.xlu0 %2474
      %2476 = vrot.lane.b32.xlu0 %v2456, 24
      %v2477 = vpop.permute.xlu0 %2476
      %2478 = vrot.lane.b32.xlu0 %v2457, 24
      %v2479 = vpop.permute.xlu0 %2478
      %2480 = vrot.lane.b32.xlu0 %v2458, 24
      %v2481 = vpop.permute.xlu0 %2480
      %2482 = vrot.lane.b32.xlu0 %v2459, 24
      %v2483 = vpop.permute.xlu0 %2482
      %vm2492 = vcmask 261312
      %2493 = vst.msk [vmem:[#allocation2] sm:$0xff] %vm2492, %v2469
      %2494 = vst.msk [vmem:[#allocation2 + $0x8] sm:$0xff] %vm2492, %v2471
      %2495 = vst.msk [vmem:[#allocation2 + $0x10] sm:$0xff] %vm2492, %v2473
      %2496 = vst.msk [vmem:[#allocation2 + $0x18] sm:$0xff] %vm2492, %v2475
      %2497 = vst.msk [vmem:[#allocation2 + $0x20] sm:$0xff] %vm2492, %v2477
      %2498 = vst.msk [vmem:[#allocation2 + $0x28] sm:$0xff] %vm2492, %v2479
      %2499 = vst.msk [vmem:[#allocation2 + $0x30] sm:$0xff] %vm2492, %v2481
      %2500 = vst.msk [vmem:[#allocation2 + $0x38] sm:$0xff] %vm2492, %v2483
      %v2501 = vld [vmem:[#allocation2] sm:$0xff]
      %v2502 = vld [vmem:[#allocation2 + $0x8] sm:$0xff]
      %v2503 = vld [vmem:[#allocation2 + $0x10] sm:$0xff]
      %v2504 = vld [vmem:[#allocation2 + $0x18] sm:$0xff]
      %v2505 = vld [vmem:[#allocation2 + $0x20] sm:$0xff]
      %v2506 = vld [vmem:[#allocation2 + $0x28] sm:$0xff]
      %v2507 = vld [vmem:[#allocation2 + $0x30] sm:$0xff]
      %v2508 = vld [vmem:[#allocation2 + $0x38] sm:$0xff]
      %v2509 = vld [vmem:[%s5] sm:$0xff]
      %v2510 = vld [vmem:[%s5 + $0x8] sm:$0xff]
      %v2511 = vld [vmem:[%s5 + $0x10] sm:$0xff]
      %v2512 = vld [vmem:[%s5 + $0x18] sm:$0xff]
      %v2513 = vld [vmem:[%s6] sm:$0x1]
      %v2515 = vlaneseq
      %v2516 = vshrl.u32 %v2515, 7
      %v2517 = vsub.s32 0, %v2516
      %v2518 = vrot.slane %v2513, %v2517
      %v2521 = vsel %vm506, %v2501, 0
      %v2524 = vsel %vm506, %v2502, 0
      %v2527 = vsel %vm506, %v2503, 0
      %v2530 = vsel %vm506, %v2504, 0
      %v2533 = vsel %vm506, %v2505, 0
      %v2536 = vsel %vm506, %v2506, 0
      %v2539 = vsel %vm506, %v2507, 0
      %v2542 = vsel %vm506, %v2508, 0
      %2544 = vmatprep.subr.mxu0 0.0
      %2545 = vmatpush1.msra.mxu0 %v2509
      %2546 = vmatprep.subr.mxu0 0.0
      %2547 = vmatpush1.msra.mxu0 %v2510
      %2548 = vmatprep.subr.mxu0 0.0
      %2549 = vmatpush1.msra.mxu0 %v2511
      %2550 = vmatprep.subr.mxu0 0.0
      %2551 = vmatpush1.msra.mxu0 %v2512
      %2552 = vmatprep.subr.mxu0 0.0
      %2553 = vmatpush1.msra.mxu0 0.0
      %2554 = vmatprep.subr.mxu0 0.0
      %2555 = vmatpush1.msra.mxu0 0.0
      %2556 = vmatprep.subr.mxu0 0.0
      %2557 = vmatpush1.msra.mxu0 0.0
      %2558 = vmatprep.subr.mxu0 0.0
      %2559 = vmatpush1.msra.mxu0 0.0
      %2560 = vmatprep.subr.mxu0 0.0
      %2561 = vmatpush1.msra.mxu0 0.0
      %2562 = vmatprep.subr.mxu0 0.0
      %2563 = vmatpush1.msra.mxu0 0.0
      %2564 = vmatprep.subr.mxu0 0.0
      %2565 = vmatpush1.msra.mxu0 0.0
      %2566 = vmatprep.subr.mxu0 0.0
      %2567 = vmatpush1.msra.mxu0 0.0
      %2568 = vmatprep.subr.mxu0 0.0
      %2569 = vmatpush1.msra.mxu0 0.0
      %2570 = vmatprep.subr.mxu0 0.0
      %2571 = vmatpush1.msra.mxu0 0.0
      %2572 = vmatprep.subr.mxu0 0.0
      %2573 = vmatpush1.msra.mxu0 0.0
      %2574 = vmatprep.subr.mxu0 0.0
      %2575 = vmatpush1.msra.mxu0 0.0
      %2576 = vmatprep.subr.mxu0 0.0
      %2577 = vmatpush1.msra.mxu0 0.0
      %2578 = vmatprep.subr.mxu0 0.0
      %2579 = vmatpush1.msra.mxu0 0.0
      %2580 = vmatprep.subr.mxu0 0.0
      %2581 = vmatpush1.msra.mxu0 0.0
      %2582 = vmatprep.subr.mxu0 0.0
      %2583 = vmatpush1.msra.mxu0 0.0
      %2584 = vmatprep.subr.mxu0 0.0
      %2585 = vmatpush1.msra.mxu0 0.0
      %2586 = vmatprep.subr.mxu0 0.0
      %2587 = vmatpush1.msra.mxu0 0.0
      %2588 = vmatprep.subr.mxu0 0.0
      %2589 = vmatpush1.msra.mxu0 0.0
      %2590 = vmatprep.subr.mxu0 0.0
      %2591 = vmatpush1.msra.mxu0 0.0
      %2592 = vmatprep.subr.mxu0 0.0
      %2593 = vmatpush1.msra.mxu0 0.0
      %2594 = vmatprep.subr.mxu0 0.0
      %2595 = vmatpush1.msra.mxu0 0.0
      %2596 = vmatprep.subr.mxu0 0.0
      %2597 = vmatpush1.msra.mxu0 0.0
      %2598 = vmatprep.subr.mxu0 0.0
      %2599 = vmatpush1.msra.mxu0 0.0
      %2600 = vmatprep.subr.mxu0 0.0
      %2601 = vmatpush1.msra.mxu0 0.0
      %2602 = vmatprep.subr.mxu0 0.0
      %2603 = vmatpush1.msra.mxu0 0.0
      %2604 = vmatprep.subr.mxu0 0.0
      %2605 = vmatpush1.msra.mxu0 0.0
      %2606 = vmatprep.subr.mxu0 0.0
      %2607 = vmatpush1.msra.mxu0 0.0
      %2608 = vmatprep.mubr.f32.mxu0 0.0
      %2609 = vmatmul.mubr.f32.gmra.mrb[0].mxu0 %v2521
      %v2610 = vpop.f32.mrb[0].mxu0
      %v2611 = vadd.f32 %v2518, %v2610
      %v2612 = vpop.f32.mrb[0].mxu0
      %2613 = vmatprep.mubr.f32.mxu0 0.0
      %2614 = vmatmul.mubr.f32.gmra.mrb[0].mxu0 %v2524
      %v2615 = vpop.f32.mrb[0].mxu0
      %v2616 = vadd.f32 %v2518, %v2615
      %v2617 = vpop.f32.mrb[0].mxu0
      %2618 = vmatprep.mubr.f32.mxu0 0.0
      %2619 = vmatmul.mubr.f32.gmra.mrb[0].mxu0 %v2527
      %v2620 = vpop.f32.mrb[0].mxu0
      %v2621 = vadd.f32 %v2518, %v2620
      %v2622 = vpop.f32.mrb[0].mxu0
      %2623 = vmatprep.mubr.f32.mxu0 0.0
      %2624 = vmatmul.mubr.f32.gmra.mrb[0].mxu0 %v2530
      %v2625 = vpop.f32.mrb[0].mxu0
      %v2626 = vadd.f32 %v2518, %v2625
      %v2627 = vpop.f32.mrb[0].mxu0
      %2628 = vmatprep.mubr.f32.mxu0 0.0
      %2629 = vmatmul.mubr.f32.gmra.mrb[0].mxu0 %v2533
      %v2630 = vpop.f32.mrb[0].mxu0
      %v2631 = vadd.f32 %v2518, %v2630
      %v2632 = vpop.f32.mrb[0].mxu0
      %2633 = vmatprep.mubr.f32.mxu0 0.0
      %2634 = vmatmul.mubr.f32.gmra.mrb[0].mxu0 %v2536
      %v2635 = vpop.f32.mrb[0].mxu0
      %v2636 = vadd.f32 %v2518, %v2635
      %v2637 = vpop.f32.mrb[0].mxu0
      %2638 = vmatprep.mubr.f32.mxu0 0.0
      %2639 = vmatmul.mubr.f32.gmra.mrb[0].mxu0 %v2539
      %v2640 = vpop.f32.mrb[0].mxu0
      %v2641 = vadd.f32 %v2518, %v2640
      %v2642 = vpop.f32.mrb[0].mxu0
      %2643 = vmatprep.mubr.f32.mxu0 0.0
      %2644 = vmatmul.mubr.f32.gmra.mrb[0].mxu0 %v2542
      %v2645 = vpop.f32.mrb[0].mxu0
      %v2646 = vadd.f32 %v2518, %v2645
      %v2647 = vpop.f32.mrb[0].mxu0
      %2648 = vdwg.mxu0
      %v2649 = vld [vmem:[%s7] sm:$0xff]
      %v2650 = vld [vmem:[%s7 + $0x8] sm:$0xff]
      %v2651 = vld [vmem:[%s7 + $0x10] sm:$0xff]
      %v2652 = vld [vmem:[%s7 + $0x18] sm:$0xff]
      %v2653 = vld [vmem:[%s8] sm:$0xff]
      %v2654 = vld [vmem:[%s8 + $0x8] sm:$0xff]
      %v2655 = vld [vmem:[%s8 + $0x10] sm:$0xff]
      %v2656 = vld [vmem:[%s8 + $0x18] sm:$0xff]
      %v2658 = vsel %vm506, %v2611, 0
      %v2661 = vsel %vm506, %v2616, 0
      %v2664 = vsel %vm506, %v2621, 0
      %v2667 = vsel %vm506, %v2626, 0
      %v2670 = vsel %vm506, %v2631, 0
      %v2673 = vsel %vm506, %v2636, 0
      %v2676 = vsel %vm506, %v2641, 0
      %v2679 = vsel %vm506, %v2646, 0
      %2681 = vmatprep.subr.mxu0 0.0
      %2682 = vmatpush1.msra.mxu0 %v2653
      %2683 = vmatprep.subr.mxu0 0.0
      %2684 = vmatpush1.msra.mxu0 %v2654
      %2685 = vmatprep.subr.mxu0 0.0
      %2686 = vmatpush1.msra.mxu0 %v2655
      %2687 = vmatprep.subr.mxu0 0.0
      %2688 = vmatpush1.msra.mxu0 %v2656
      %2689 = vmatprep.subr.mxu0 0.0
      %2690 = vmatpush1.msra.mxu0 0.0
      %2691 = vmatprep.subr.mxu0 0.0
      %2692 = vmatpush1.msra.mxu0 0.0
      %2693 = vmatprep.subr.mxu0 0.0
      %2694 = vmatpush1.msra.mxu0 0.0
      %2695 = vmatprep.subr.mxu0 0.0
      %2696 = vmatpush1.msra.mxu0 0.0
      %2697 = vmatprep.subr.mxu0 0.0
      %2698 = vmatpush1.msra.mxu0 0.0
      %2699 = vmatprep.subr.mxu0 0.0
      %2700 = vmatpush1.msra.mxu0 0.0
      %2701 = vmatprep.subr.mxu0 0.0
      %2702 = vmatpush1.msra.mxu0 0.0
      %2703 = vmatprep.subr.mxu0 0.0
      %2704 = vmatpush1.msra.mxu0 0.0
      %2705 = vmatprep.subr.mxu0 0.0
      %2706 = vmatpush1.msra.mxu0 0.0
      %2707 = vmatprep.subr.mxu0 0.0
      %2708 = vmatpush1.msra.mxu0 0.0
      %2709 = vmatprep.subr.mxu0 0.0
      %2710 = vmatpush1.msra.mxu0 0.0
      %2711 = vmatprep.subr.mxu0 0.0
      %2712 = vmatpush1.msra.mxu0 0.0
      %2713 = vmatprep.subr.mxu0 0.0
      %2714 = vmatpush1.msra.mxu0 0.0
      %2715 = vmatprep.subr.mxu0 0.0
      %2716 = vmatpush1.msra.mxu0 0.0
      %2717 = vmatprep.subr.mxu0 0.0
      %2718 = vmatpush1.msra.mxu0 0.0
      %2719 = vmatprep.subr.mxu0 0.0
      %2720 = vmatpush1.msra.mxu0 0.0
      %2721 = vmatprep.subr.mxu0 0.0
      %2722 = vmatpush1.msra.mxu0 0.0
      %2723 = vmatprep.subr.mxu0 0.0
      %2724 = vmatpush1.msra.mxu0 0.0
      %2725 = vmatprep.subr.mxu0 0.0
      %2726 = vmatpush1.msra.mxu0 0.0
      %2727 = vmatprep.subr.mxu0 0.0
      %2728 = vmatpush1.msra.mxu0 0.0
      %2729 = vmatprep.subr.mxu0 0.0
      %2730 = vmatpush1.msra.mxu0 0.0
      %2731 = vmatprep.subr.mxu0 0.0
      %2732 = vmatpush1.msra.mxu0 0.0
      %2733 = vmatprep.subr.mxu0 0.0
      %2734 = vmatpush1.msra.mxu0 0.0
      %2735 = vmatprep.subr.mxu0 0.0
      %2736 = vmatpush1.msra.mxu0 0.0
      %2737 = vmatprep.subr.mxu0 0.0
      %2738 = vmatpush1.msra.mxu0 0.0
      %2739 = vmatprep.subr.mxu0 0.0
      %2740 = vmatpush1.msra.mxu0 0.0
      %2741 = vmatprep.subr.mxu0 0.0
      %2742 = vmatpush1.msra.mxu0 0.0
      %2743 = vmatprep.subr.mxu0 0.0
      %2744 = vmatpush1.msra.mxu0 0.0
      %2745 = vmatprep.mubr.f32.mxu0 0.0
      %2746 = vmatmul.mubr.f32.gmra.mrb[0].mxu0 %v2658
      %v2747 = vpop.f32.mrb[0].mxu0
      %v2748 = vadd.f32 0.0, %v2747
      %v2749 = vpop.f32.mrb[0].mxu0
      %2750 = vmatprep.mubr.f32.mxu0 0.0
      %2751 = vmatmul.mubr.f32.gmra.mrb[0].mxu0 %v2661
      %v2752 = vpop.f32.mrb[0].mxu0
      %v2753 = vadd.f32 0.0, %v2752
      %v2754 = vpop.f32.mrb[0].mxu0
      %2755 = vmatprep.mubr.f32.mxu0 0.0
      %2756 = vmatmul.mubr.f32.gmra.mrb[0].mxu0 %v2664
      %v2757 = vpop.f32.mrb[0].mxu0
      %v2758 = vadd.f32 0.0, %v2757
      %v2759 = vpop.f32.mrb[0].mxu0
      %2760 = vmatprep.mubr.f32.mxu0 0.0
      %2761 = vmatmul.mubr.f32.gmra.mrb[0].mxu0 %v2667
      %v2762 = vpop.f32.mrb[0].mxu0
      %v2763 = vadd.f32 0.0, %v2762
      %v2764 = vpop.f32.mrb[0].mxu0
      %2765 = vmatprep.mubr.f32.mxu0 0.0
      %2766 = vmatmul.mubr.f32.gmra.mrb[0].mxu0 %v2670
      %v2767 = vpop.f32.mrb[0].mxu0
      %v2768 = vadd.f32 0.0, %v2767
      %v2769 = vpop.f32.mrb[0].mxu0
      %2770 = vmatprep.mubr.f32.mxu0 0.0
      %2771 = vmatmul.mubr.f32.gmra.mrb[0].mxu0 %v2673
      %v2772 = vpop.f32.mrb[0].mxu0
      %v2773 = vadd.f32 0.0, %v2772
      %v2774 = vpop.f32.mrb[0].mxu0
      %2775 = vmatprep.mubr.f32.mxu0 0.0
      %2776 = vmatmul.mubr.f32.gmra.mrb[0].mxu0 %v2676
      %v2777 = vpop.f32.mrb[0].mxu0
      %v2778 = vadd.f32 0.0, %v2777
      %v2779 = vpop.f32.mrb[0].mxu0
      %2780 = vmatprep.mubr.f32.mxu0 0.0
      %2781 = vmatmul.mubr.f32.gmra.mrb[0].mxu0 %v2679
      %v2782 = vpop.f32.mrb[0].mxu0
      %v2783 = vadd.f32 0.0, %v2782
      %v2784 = vpop.f32.mrb[0].mxu0
      %2785 = vdwg.mxu0
      %2786 = vmatprep.subr.mxu0 0.0
      %2787 = vmatpush1.msra.mxu0 %v2649
      %2788 = vmatprep.subr.mxu0 0.0
      %2789 = vmatpush1.msra.mxu0 %v2650
      %2790 = vmatprep.subr.mxu0 0.0
      %2791 = vmatpush1.msra.mxu0 %v2651
      %2792 = vmatprep.subr.mxu0 0.0
      %2793 = vmatpush1.msra.mxu0 %v2652
      %2794 = vmatprep.subr.mxu0 0.0
      %2795 = vmatpush1.msra.mxu0 0.0
      %2796 = vmatprep.subr.mxu0 0.0
      %2797 = vmatpush1.msra.mxu0 0.0
      %2798 = vmatprep.subr.mxu0 0.0
      %2799 = vmatpush1.msra.mxu0 0.0
      %2800 = vmatprep.subr.mxu0 0.0
      %2801 = vmatpush1.msra.mxu0 0.0
      %2802 = vmatprep.subr.mxu0 0.0
      %2803 = vmatpush1.msra.mxu0 0.0
      %2804 = vmatprep.subr.mxu0 0.0
      %2805 = vmatpush1.msra.mxu0 0.0
      %2806 = vmatprep.subr.mxu0 0.0
      %2807 = vmatpush1.msra.mxu0 0.0
      %2808 = vmatprep.subr.mxu0 0.0
      %2809 = vmatpush1.msra.mxu0 0.0
      %2810 = vmatprep.subr.mxu0 0.0
      %2811 = vmatpush1.msra.mxu0 0.0
      %2812 = vmatprep.subr.mxu0 0.0
      %2813 = vmatpush1.msra.mxu0 0.0
      %2814 = vmatprep.subr.mxu0 0.0
      %2815 = vmatpush1.msra.mxu0 0.0
      %2816 = vmatprep.subr.mxu0 0.0
      %2817 = vmatpush1.msra.mxu0 0.0
      %2818 = vmatprep.subr.mxu0 0.0
      %2819 = vmatpush1.msra.mxu0 0.0
      %2820 = vmatprep.subr.mxu0 0.0
      %2821 = vmatpush1.msra.mxu0 0.0
      %2822 = vmatprep.subr.mxu0 0.0
      %2823 = vmatpush1.msra.mxu0 0.0
      %2824 = vmatprep.subr.mxu0 0.0
      %2825 = vmatpush1.msra.mxu0 0.0
      %2826 = vmatprep.subr.mxu0 0.0
      %2827 = vmatpush1.msra.mxu0 0.0
      %2828 = vmatprep.subr.mxu0 0.0
      %2829 = vmatpush1.msra.mxu0 0.0
      %2830 = vmatprep.subr.mxu0 0.0
      %2831 = vmatpush1.msra.mxu0 0.0
      %2832 = vmatprep.subr.mxu0 0.0
      %2833 = vmatpush1.msra.mxu0 0.0
      %2834 = vmatprep.subr.mxu0 0.0
      %2835 = vmatpush1.msra.mxu0 0.0
      %2836 = vmatprep.subr.mxu0 0.0
      %2837 = vmatpush1.msra.mxu0 0.0
      %2838 = vmatprep.subr.mxu0 0.0
      %2839 = vmatpush1.msra.mxu0 0.0
      %2840 = vmatprep.subr.mxu0 0.0
      %2841 = vmatpush1.msra.mxu0 0.0
      %2842 = vmatprep.subr.mxu0 0.0
      %2843 = vmatpush1.msra.mxu0 0.0
      %2844 = vmatprep.subr.mxu0 0.0
      %2845 = vmatpush1.msra.mxu0 0.0
      %2846 = vmatprep.subr.mxu0 0.0
      %2847 = vmatpush1.msra.mxu0 0.0
      %2848 = vmatprep.subr.mxu0 0.0
      %2849 = vmatpush1.msra.mxu0 0.0
      %2850 = vmatprep.mubr.f32.mxu0 0.0
      %2851 = vmatmul.mubr.f32.gmra.mrb[0].mxu0 %v508
      %v2852 = vpop.f32.mrb[0].mxu0
      %v2853 = vadd.f32 %v2748, %v2852
      %v2854 = vpop.f32.mrb[0].mxu0
      %2855 = vmatprep.mubr.f32.mxu0 0.0
      %2856 = vmatmul.mubr.f32.gmra.mrb[0].mxu0 %v511
      %v2857 = vpop.f32.mrb[0].mxu0
      %v2858 = vadd.f32 %v2753, %v2857
      %v2859 = vpop.f32.mrb[0].mxu0
      %2860 = vmatprep.mubr.f32.mxu0 0.0
      %2861 = vmatmul.mubr.f32.gmra.mrb[0].mxu0 %v514
      %v2862 = vpop.f32.mrb[0].mxu0
      %v2863 = vadd.f32 %v2758, %v2862
      %v2864 = vpop.f32.mrb[0].mxu0
      %2865 = vmatprep.mubr.f32.mxu0 0.0
      %2866 = vmatmul.mubr.f32.gmra.mrb[0].mxu0 %v517
      %v2867 = vpop.f32.mrb[0].mxu0
      %v2868 = vadd.f32 %v2763, %v2867
      %v2869 = vpop.f32.mrb[0].mxu0
      %2870 = vmatprep.mubr.f32.mxu0 0.0
      %2871 = vmatmul.mubr.f32.gmra.mrb[0].mxu0 %v520
      %v2872 = vpop.f32.mrb[0].mxu0
      %v2873 = vadd.f32 %v2768, %v2872
      %v2874 = vpop.f32.mrb[0].mxu0
      %2875 = vmatprep.mubr.f32.mxu0 0.0
      %2876 = vmatmul.mubr.f32.gmra.mrb[0].mxu0 %v523
      %v2877 = vpop.f32.mrb[0].mxu0
      %v2878 = vadd.f32 %v2773, %v2877
      %v2879 = vpop.f32.mrb[0].mxu0
      %2880 = vmatprep.mubr.f32.mxu0 0.0
      %2881 = vmatmul.mubr.f32.gmra.mrb[0].mxu0 %v526
      %v2882 = vpop.f32.mrb[0].mxu0
      %v2883 = vadd.f32 %v2778, %v2882
      %v2884 = vpop.f32.mrb[0].mxu0
      %2885 = vmatprep.mubr.f32.mxu0 0.0
      %2886 = vmatmul.mubr.f32.gmra.mrb[0].mxu0 %v529
      %v2887 = vpop.f32.mrb[0].mxu0
      %v2888 = vadd.f32 %v2783, %v2887
      %v2889 = vpop.f32.mrb[0].mxu0
      %2890 = vdwg.mxu0
      %v2891 = vld [vmem:[%s9] sm:$0x1]
      %v2893 = vlaneseq
      %v2894 = vshrl.u32 %v2893, 7
      %v2895 = vsub.s32 0, %v2894
      %v2896 = vrot.slane %v2891, %v2895
      %v2898 = vadd.f32 %v2853, %v2896
      %v2899 = vadd.f32 %v2858, %v2896
      %v2900 = vadd.f32 %v2863, %v2896
      %v2901 = vadd.f32 %v2868, %v2896
      %v2902 = vadd.f32 %v2873, %v2896
      %v2903 = vadd.f32 %v2878, %v2896
      %v2904 = vadd.f32 %v2883, %v2896
      %v2905 = vadd.f32 %v2888, %v2896
      %vm2906 = vcmask 523264
      %2907 = vst.msk [vmem:[%s477] sm:$0xff] %vm2906, %v2898
      %2908 = vst.msk [vmem:[%s477 + $0x8] sm:$0xff] %vm2906, %v2899
      %2909 = vst.msk [vmem:[%s477 + $0x10] sm:$0xff] %vm2906, %v2900
      %2910 = vst.msk [vmem:[%s477 + $0x18] sm:$0xff] %vm2906, %v2901
      %2911 = vst.msk [vmem:[%s477 + $0x20] sm:$0xff] %vm2906, %v2902
      %2912 = vst.msk [vmem:[%s477 + $0x28] sm:$0xff] %vm2906, %v2903
      %2913 = vst.msk [vmem:[%s477 + $0x30] sm:$0xff] %vm2906, %v2904
      %2914 = vst.msk [vmem:[%s477 + $0x38] sm:$0xff] %vm2906, %v2905
      %v2915 = vsel %vm2906, %v2898, 0.0
      %v2916 = vsel %vm2906, %v2899, 0.0
      %v2917 = vadd.f32 %v2915, %v2916
      %v2918 = vsel %vm2906, %v2900, 0.0
      %v2919 = vadd.f32 %v2917, %v2918
      %v2920 = vsel %vm2906, %v2901, 0.0
      %v2921 = vadd.f32 %v2919, %v2920
      %v2922 = vsel %vm2906, %v2902, 0.0
      %v2923 = vadd.f32 %v2921, %v2922
      %v2924 = vsel %vm2906, %v2903, 0.0
      %v2925 = vadd.f32 %v2923, %v2924
      %v2926 = vsel %vm2906, %v2904, 0.0
      %v2927 = vadd.f32 %v2925, %v2926
      %v2928 = vsel %vm2906, %v2905, 0.0
      %v2929 = vadd.f32 %v2927, %v2928
      %v2930 = vrot.slane %v2929, 4
      %v2931 = vadd.f32 %v2929, %v2930
      %v2932 = vrot.slane %v2931, 2
      %v2933 = vadd.f32 %v2931, %v2932
      %v2934 = vrot.slane %v2933, 1
      %v2935 = vadd.f32 %v2933, %v2934
      %v2936 = vmul.f32 %v2898, %v2898
      %v2937 = vmul.f32 %v2899, %v2899
      %v2938 = vmul.f32 %v2900, %v2900
      %v2939 = vmul.f32 %v2901, %v2901
      %v2940 = vmul.f32 %v2902, %v2902
      %v2941 = vmul.f32 %v2903, %v2903
      %v2942 = vmul.f32 %v2904, %v2904
      %v2943 = vmul.f32 %v2905, %v2905
      %v2944 = vsel %vm2906, %v2936, 0.0
      %v2945 = vsel %vm2906, %v2937, 0.0
      %v2946 = vadd.f32 %v2944, %v2945
      %v2947 = vsel %vm2906, %v2938, 0.0
      %v2948 = vadd.f32 %v2946, %v2947
      %v2949 = vsel %vm2906, %v2939, 0.0
      %v2950 = vadd.f32 %v2948, %v2949
      %v2951 = vsel %vm2906, %v2940, 0.0
      %v2952 = vadd.f32 %v2950, %v2951
      %v2953 = vsel %vm2906, %v2941, 0.0
      %v2954 = vadd.f32 %v2952, %v2953
      %v2955 = vsel %vm2906, %v2942, 0.0
      %v2956 = vadd.f32 %v2954, %v2955
      %v2957 = vsel %vm2906, %v2943, 0.0
      %v2958 = vadd.f32 %v2956, %v2957
      %v2959 = vrot.slane %v2958, 4
      %v2960 = vadd.f32 %v2958, %v2959
      %v2961 = vrot.slane %v2960, 2
      %v2962 = vadd.f32 %v2960, %v2961
      %v2963 = vrot.slane %v2962, 1
      %v2964 = vadd.f32 %v2962, %v2963
      %vm2965 = vcmask 1040384
      %v2966 = vsel %vm2965, %v2935, %v2964
      %vm2967 = vcmask 517120
      %2968 = vst.msk [vmem:[%s486] sm:$0x3] %vm2967, %v2966
      %s2969 = smul.u32 8, %s28
      %p2970 = scmp.lt.s32.totalorder %s27, 1
      %s2971 = scalar_select %p2970, %s27, 1
      %p2972 = scmp.lt.s32.totalorder %s2969, 15
      %s2973 = scalar_select %p2972, %s2969, 15
      %s2974 = smul.addr %s2971, 16
      %s2975 = sadd.s32 %s2973, %s2974
      %s2976 = smul.addr %s2975, 8
      %s2977 = scalar_lea.vmem %s10, %s2976
      %p2978 = scmp.lt.s32.totalorder %s27, 1
      %s2979 = scalar_select %p2978, %s27, 1
      %p2980 = scmp.lt.s32.totalorder %s28, 1
      %s2981 = scalar_select %p2980, %s28, 1
      %s2982 = smul.addr %s2979, 2
      %s2983 = sadd.s32 %s2981, %s2982
      %s2984 = smul.addr %s2983, 2
      %s2985 = scalar_lea.vmem %s11, %s2984
      // Predicated region
      $region61: #{attentional_propagation.4} parent=59 // pred_check
        %p2986 = pneg %p282
      $region62: #{attentional_propagation.4} parent=59 // pred_check_branch
        %2988 = sbr.rel (%p2986) target = $region64
      $region63: #{attentional_propagation.4} parent=59 // pred_region
        %s2989 = smul.u32 8, %s28
      $region64: #{attentional_propagation.4} parent=59 // pred_fallthru
        _
      // Predicated region
      $region65: #{attentional_propagation.4} parent=59 // pred_check
        %p2990 = pneg %p310
      $region66: #{attentional_propagation.4} parent=59 // pred_check_branch
        %2992 = sbr.rel (%p2990) target = $region68
      $region67: #{attentional_propagation.4} parent=59 // pred_region
        _
      $region68: #{attentional_propagation.4} parent=59 // pred_fallthru
        _
    $region60: #{attentional_propagation.4} parent=5 // pred_fallthru
      _
    %p2993 = scmp.le.s32.totalorder 2, %s18
    // Predicated region
    $region69: #{attentional_propagation.4} parent=5 // pred_check
      %p2994 = pneg %p2993
    $region70: #{attentional_propagation.4} parent=5 // pred_check_branch
      %2996 = sbr.rel (%p2994) target = $region72
    $region71: #{attentional_propagation.4} parent=5 // pred_region
      %s2997 = ssub.s32 %s18, 2
      // Predicated region
      $region73: #{attentional_propagation.4} parent=71 // pred_check
        %p2998 = pneg %p288
      $region74: #{attentional_propagation.4} parent=71 // pred_check_branch
        %3000 = sbr.rel (%p2998) target = $region76
      $region75: #{attentional_propagation.4} parent=71 // pred_region
        %s3001 = smul.u32 8, %s30
        %p3002 = scmp.lt.s32.totalorder %s29, 1
        %s3003 = scalar_select %p3002, %s29, 1
        %p3004 = scmp.lt.s32.totalorder %s3001, 15
        %s3005 = scalar_select %p3004, %s3001, 15
        %s3006 = smul.addr %s3003, 16
        %s3007 = sadd.s32 %s3005, %s3006
        %s3008 = smul.addr %s3007, 8
        %s3009 = scalar_lea.vmem %s10, %s3008
      $region76: #{attentional_propagation.4} parent=71 // pred_fallthru
        _
      // Predicated region
      $region77: #{attentional_propagation.4} parent=71 // pred_check
        %p3010 = pneg %p316
      $region78: #{attentional_propagation.4} parent=71 // pred_check_branch
        %3012 = sbr.rel (%p3010) target = $region80
      $region79: #{attentional_propagation.4} parent=71 // pred_region
        %p3013 = scmp.lt.s32.totalorder %s29, 1
        %s3014 = scalar_select %p3013, %s29, 1
        %p3015 = scmp.lt.s32.totalorder %s30, 1
        %s3016 = scalar_select %p3015, %s30, 1
        %s3017 = smul.addr %s3014, 2
        %s3018 = sadd.s32 %s3016, %s3017
        %s3019 = smul.addr %s3018, 2
        %s3020 = scalar_lea.vmem %s11, %s3019
      $region80: #{attentional_propagation.4} parent=71 // pred_fallthru
        _
    $region72: #{attentional_propagation.4} parent=5 // pred_fallthru
      _
  $region6: #{attentional_propagation.4} parent=0 // loop_footer
    %s22 = sadd.s32 1, %s18
  $region7: #{attentional_propagation.4} parent=0 // loop_footer_branch
    %17 = sbr.rel target = $region3
  $region8: #{attentional_propagation.4} parent=0 // loop_exit
    _

</llo_original>
